<compile_context>
chip_gen: v7x
topology: tpu7x:2x2x1
jax: 0.10.0
libtpu: 0.0.40
codegen_flags: <defaults>
</compile_context>

<pallas_src>
import functools

import jax
import jax.numpy as jnp
from jax.experimental import pallas as pl
from jax.experimental.pallas import tpu as pltpu


def _round_up(v, m):
    return -(-v // m) * m


def _default_gelu_dtype():
    """bf16 GELU on chips with bf16 VPU/EUP (v6e/v7x); f32 on v5e and older."""
    try:
        kind = jax.devices()[0].device_kind.lower()
    except Exception:  # pragma: no cover - conservative fallback
        return jnp.float32
    if any(tag in kind for tag in ("v2", "v3", "v4", "v5")):
        return jnp.float32
    return jnp.bfloat16


# ----------------------------------------------------------------------------
# Resident-weight kernel (default): grid = (M // tile_m,), whole hidden dim per step.
# ----------------------------------------------------------------------------
def _denoise_resident_kernel(x_ref, w1_ref, b1_ref, w2_ref, b2_ref, o_ref,
                             *, eps, gelu_dtype):
    x = x_ref[...].astype(jnp.float32)                               # (TM, D)
    mu = jnp.mean(x, axis=-1, keepdims=True)
    xc = x - mu
    var = jnp.mean(xc * xc, axis=-1, keepdims=True)
    xhat = (xc * jax.lax.rsqrt(var + eps)).astype(w1_ref.dtype)      # bf16 MXU operand

    # gamma/beta are pre-folded into W1/b1, so xhat is the plain normalized value.
    h = jnp.dot(xhat, w1_ref[...],
                preferred_element_type=jnp.float32) + b1_ref[...]    # (TM, H) f32
    h = jax.nn.gelu(h.astype(gelu_dtype), approximate=True)          # EUP tanh path
    y = jnp.dot(h.astype(w2_ref.dtype), w2_ref[...],
                preferred_element_type=jnp.float32)                  # (TM, D) f32

    o_ref[...] = (y + b2_ref[...] + x).astype(o_ref.dtype)           # bias + residual


# ----------------------------------------------------------------------------
# Streamed fallback kernel: grid = (M // tile_m, H // tile_h); axis 1 is the
# MLP hidden (reduction) axis, output tile resident with an f32 accumulator.
# ----------------------------------------------------------------------------
def _denoise_streamed_kernel(x_ref, w1_ref, b1_ref, w2_ref, b2_ref,
                             o_ref, acc_ref, xhat_ref, *, eps, gelu_dtype):
    j = pl.program_id(1)

    @pl.when(j == 0)
    def _init():
        x = x_ref[...].astype(jnp.float32)
        mu = jnp.mean(x, axis=-1, keepdims=True)
        xc = x - mu
        var = jnp.mean(xc * xc, axis=-1, keepdims=True)
        xhat_ref[...] = (xc * jax.lax.rsqrt(var + eps)).astype(xhat_ref.dtype)
        acc_ref[...] = jnp.zeros_like(acc_ref)

    h = jnp.dot(xhat_ref[...], w1_ref[...],
                preferred_element_type=jnp.float32) + b1_ref[...]    # (TM, TH) f32
    h = jax.nn.gelu(h.astype(gelu_dtype), approximate=True)
    acc_ref[...] += jnp.dot(h.astype(w2_ref.dtype), w2_ref[...],
                            preferred_element_type=jnp.float32)      # (TM, D) f32

    @pl.when(j == pl.num_programs(1) - 1)
    def _finalize():
        y = acc_ref[...] + b2_ref[...] + x_ref[...].astype(jnp.float32)
        o_ref[...] = y.astype(o_ref.dtype)


# ----------------------------------------------------------------------------
# Wrapper
# ----------------------------------------------------------------------------
def denoise_block(x2d, kparams, *, tile_m=512, tile_h=512, eps=1e-5,
                  gelu_dtype=None, force_streamed=False):
    """x2d: (M, D) flattened tokens (f32).  kparams: folded bf16/f32 weights."""
    M, D = x2d.shape
    H = kparams["w1"].shape[1]
    # TODO(synk): pad/mask for non-128-multiple model dims if such configs appear.
    assert D % 128 == 0 and H % 128 == 0, "d_model / d_hidden must be multiples of 128"

    if gelu_dtype is None:
        gelu_dtype = _default_gelu_dtype()

    # --- row-tile selection: multiple of 8; >= 2 tiles when possible (v7x has 2 TCs) ---
    m_ceil8 = _round_up(M, 8)
    tile_m = max(8, (min(int(tile_m), 1024) // 8) * 8)
    tile_m = min(tile_m, m_ceil8)
    if m_ceil8 >= 16:
        tile_m = min(tile_m, _round_up(m_ceil8 // 2, 8))

    M_pad = _round_up(M, tile_m)
    if M_pad != M:
        x2d = jnp.pad(x2d, ((0, M_pad - M), (0, 0)))
    n_row_tiles = M_pad // tile_m

    w1, b1, w2, b2 = kparams["w1"], kparams["b1"], kparams["w2"], kparams["b2"]
    bytes_w = D * H * w1.dtype.itemsize + H * D * w2.dtype.itemsize
    flops = 4 * M_pad * D * H                # two matmuls: 2*M*D*H each
    transcendentals = M_pad * H              # tanh in GELU

    # Resident-weight footprint: x/out double-buffered, weights (budget 2x to be safe),
    # (TM, H) f32 intermediates headroom, biases.
    resident_need = (2 * (2 * tile_m * D * 4)
                     + 2 * bytes_w
                     + 2 * tile_m * H * 4
                     + (H + D) * 8)
    use_resident = (not force_streamed) and resident_need <= 44 * 1024 * 1024

    if use_resident:
        vmem_limit = int(min(100 * 1024 * 1024,
                             max(32 * 1024 * 1024, int(resident_need * 1.3))))
        cost = pl.CostEstimate(
            flops=flops,
            transcendentals=transcendentals,
            bytes_accessed=(M_pad * D * 4 * 2          # x read + out write (f32)
                            + bytes_w                  # weights read once
                            + (H + D) * 4))            # biases
        kernel = functools.partial(_denoise_resident_kernel,
                                   eps=eps, gelu_dtype=gelu_dtype)
        out = pl.pallas_call(
            kernel,
            out_shape=jax.ShapeDtypeStruct((M_pad, D), x2d.dtype),
            grid_spec=pltpu.PrefetchScalarGridSpec(
                num_scalar_prefetch=0,
                grid=(n_row_tiles,),
                in_specs=[
                    pl.BlockSpec((tile_m, D), lambda i: (i, 0)),   # x row tile
                    pl.BlockSpec((D, H),      lambda i: (0, 0)),   # w1 resident (bf16)
                    pl.BlockSpec((1, H),      lambda i: (0, 0)),   # b1 (f32)
                    pl.BlockSpec((H, D),      lambda i: (0, 0)),   # w2 resident (bf16)
                    pl.BlockSpec((1, D),      lambda i: (0, 0)),   # b2 (f32)
                ],
                out_specs=pl.BlockSpec((tile_m, D), lambda i: (i, 0)),
            ),
            compiler_params=pltpu.CompilerParams(
                dimension_semantics=("parallel",),
                vmem_limit_bytes=vmem_limit),
            cost_estimate=cost,
        )(x2d, w1, b1, w2, b2)
    else:
        # Streamed fallback for hidden dims whose weights cannot be VMEM-resident.
        tile_h = min(int(tile_h), H)
        assert H % tile_h == 0, "hidden dim must be divisible by tile_h"
        n_h_tiles = H // tile_h

        streamed_need = (2 * (2 * tile_m * D * 4)                       # x + out, 2-buffered
                         + 3 * (D * tile_h * 2 + tile_h * D * 2)        # weight tiles, 3-buffered
                         + tile_m * D * 4 + tile_m * D * 2              # acc + xhat scratch
                         + 2 * tile_m * tile_h * 4)                     # intermediates headroom
        vmem_limit = int(min(100 * 1024 * 1024,
                             max(32 * 1024 * 1024, int(streamed_need * 1.3))))
        cost = pl.CostEstimate(
            flops=flops,
            transcendentals=transcendentals,
            bytes_accessed=(M_pad * D * 4 * 2
                            + n_row_tiles * (bytes_w + (H + D) * 4)))   # weights re-streamed
        kernel = functools.partial(_denoise_streamed_kernel,
                                   eps=eps, gelu_dtype=gelu_dtype)
        out = pl.pallas_call(
            kernel,
            out_shape=jax.ShapeDtypeStruct((M_pad, D), x2d.dtype),
            grid_spec=pltpu.PrefetchScalarGridSpec(
                num_scalar_prefetch=0,
                grid=(n_row_tiles, n_h_tiles),
                in_specs=[
                    pl.BlockSpec((tile_m, D), lambda i, j: (i, 0)),     # x rows (resident over j)
                    pl.BlockSpec((D, tile_h), lambda i, j: (0, j),
                                 pipeline_mode=pl.Buffered(3)),         # w1 tile (bf16)
                    pl.BlockSpec((1, tile_h), lambda i, j: (0, j)),     # b1 tile (f32)
                    pl.BlockSpec((tile_h, D), lambda i, j: (j, 0),
                                 pipeline_mode=pl.Buffered(3)),         # w2 tile (bf16)
                    pl.BlockSpec((1, D),      lambda i, j: (0, 0)),     # b2 (f32)
                ],
                out_specs=pl.BlockSpec((tile_m, D), lambda i, j: (i, 0)),
                scratch_shapes=[
                    pltpu.VMEM((tile_m, D), jnp.float32),   # y accumulator
                    pltpu.VMEM((tile_m, D), jnp.bfloat16),  # cached normalized xhat
                ],
            ),
            compiler_params=pltpu.CompilerParams(
                dimension_semantics=("parallel", "arbitrary"),
                vmem_limit_bytes=vmem_limit),
            cost_estimate=cost,
        )(x2d, w1, b1, w2, b2)

    return out[:M] if M_pad != M else out


# ----------------------------------------------------------------------------
# Parameter handling: raw params (like the PyTorch module) + kernel-folded params
# ----------------------------------------------------------------------------
class DeModelConfig:
    def __init__(self, d_model, d_hidden, loss="mse"):
        self.d_model = d_model
        self.d_hidden = d_hidden
        self.loss = loss          # returned untouched by forward, like PyTorch


def init_params(key, d_model, d_hidden, dtype=jnp.float32):
    k1, k2, k3, k4 = jax.random.split(key, 4)
    return {
        "gamma": 1.0 + 0.1 * jax.random.normal(k3, (d_model,), dtype),
        "beta": 0.05 * jax.random.normal(k4, (d_model,), dtype),
        "w1": jax.random.normal(k1, (d_model, d_hidden), dtype) / jnp.sqrt(d_model),
        "b1": jnp.zeros((d_hidden,), dtype),
        "w2": jax.random.normal(k2, (d_hidden, d_model), dtype) / jnp.sqrt(d_hidden),
        "b2": jnp.zeros((d_model,), dtype),
    }


def prepare_kernel_params(p):
    """Fold LN affine into the first linear; store matmul weights as bf16."""
    gamma = p["gamma"].astype(jnp.float32)
    beta = p["beta"].astype(jnp.float32)
    w1 = p["w1"].astype(jnp.float32)
    b1 = p["b1"].astype(jnp.float32)
    w1_f = gamma[:, None] * w1                 # (D, H)
    b1_f = beta @ w1 + b1                      # (H,)
    return {
        "w1": w1_f.astype(jnp.bfloat16),
        "b1": b1_f.reshape(1, -1),                        # f32 (1, H)
        "w2": p["w2"].astype(jnp.bfloat16),
        "b2": p["b2"].astype(jnp.float32).reshape(1, -1)  # f32 (1, D)
    }


class DeModelPallas:
    def __init__(self, config, params):
        self.config = config
        self.params = params
        self.kparams = prepare_kernel_params(params)
        self.gelu_dtype = _default_gelu_dtype()

    def forward(self, batch, **kwargs):
        x = batch["x"]                                  # (B, N, D)
        B, N, D = x.shape
        x2d = x.reshape(B * N, D)                       # glue reshape in plain JAX
        out2d = denoise_block(x2d, self.kparams, gelu_dtype=self.gelu_dtype)
        outputs = out2d.reshape(B, N, D)
        return (outputs, self.config.loss)              # same tuple contract as PyTorch


# ----------------------------------------------------------------------------
# Pure-JAX references for correctness
# ----------------------------------------------------------------------------
def _ref_forward_f32(x, p, eps=1e-5):
    mu = jnp.mean(x, axis=-1, keepdims=True)
    var = jnp.mean((x - mu) ** 2, axis=-1, keepdims=True)
    xn = (x - mu) * jax.lax.rsqrt(var + eps)
    xn = xn * p["gamma"] + p["beta"]
    h = jax.nn.gelu(xn @ p["w1"] + p["b1"], approximate=True)
    return x + (h @ p["w2"] + p["b2"])


def _ref_forward_kernel_path(x, kp, *, gelu_dtype, eps=1e-5):
    # Mirrors the kernel's dtype policy (folded weights, bf16 MXU operands, GELU dtype).
    mu = jnp.mean(x, axis=-1, keepdims=True)
    var = jnp.mean((x - mu) ** 2, axis=-1, keepdims=True)
    xhat = ((x - mu) * jax.lax.rsqrt(var + eps)).astype(jnp.bfloat16)
    h = jnp.dot(xhat, kp["w1"], preferred_element_type=jnp.float32) + kp["b1"][0]
    h = jax.nn.gelu(h.astype(gelu_dtype), approximate=True)
    y = jnp.dot(h.astype(jnp.bfloat16), kp["w2"],
                preferred_element_type=jnp.float32) + kp["b2"][0]
    return x + y


if __name__ == "__main__":
    key = jax.random.PRNGKey(0)
    k_x, k_p, k_x2 = jax.random.split(key, 3)

    # M = B*N = 1024 rows -> 2 row-tiles of 512 (keeps both v7x TCs busy), H = 512.
    B, N, D, H = 2, 512, 256, 512
    config = DeModelConfig(d_model=D, d_hidden=H, loss="mse")
    params = init_params(k_p, D, H)

    x = jax.random.normal(k_x, (B, N, D), jnp.float32)
    batch = {"x": x}

    model = DeModelPallas(config, params)
    outputs, loss_spec = model.forward(batch)
    outputs = jax.block_until_ready(outputs)
    assert outputs.shape == (B, N, D)
    assert loss_spec == "mse"

    # Tolerance depends on GELU dtype (bf16 tanh lowering may differ slightly from XLA's).
    if model.gelu_dtype is jnp.float32:
        tight_atol, tight_rtol = 2e-3, 2e-3
    else:
        tight_atol, tight_rtol = 2e-2, 1e-2

    # Tight check vs. a reference that follows the same bf16/folded-weight path.
    ref_tight = _ref_forward_kernel_path(x, model.kparams, gelu_dtype=model.gelu_dtype)
    err_tight = float(jnp.max(jnp.abs(outputs - ref_tight)))
    assert jnp.allclose(outputs, ref_tight, atol=tight_atol, rtol=tight_rtol), err_tight

    # Sanity check vs. the full-f32 unfolded reference (bf16 rounding tolerance).
    ref_f32 = _ref_forward_f32(x, params)
    err_loose = float(jnp.max(jnp.abs(outputs - ref_f32)))
    assert jnp.allclose(outputs, ref_f32, atol=8e-2, rtol=5e-2), err_loose

    # Also exercise the streamed (H-tiled accumulator) fallback path and cross-check it
    # against the resident-weight result.
    x2d = x.reshape(B * N, D)
    out_streamed = denoise_block(x2d, model.kparams, tile_m=256, tile_h=256,
                                 gelu_dtype=model.gelu_dtype, force_streamed=True)
    out_streamed = jax.block_until_ready(out_streamed).reshape(B, N, D)
    err_paths = float(jnp.max(jnp.abs(outputs - out_streamed)))
    assert jnp.allclose(outputs, out_streamed, atol=1e-3, rtol=1e-3), err_paths

    # Ragged row count (exercises row padding + non-power-of-two tile_m selection).
    x_small = jax.random.normal(k_x2, (1, 100, D), jnp.float32)
    out_small = denoise_block(x_small.reshape(100, D), model.kparams,
                              gelu_dtype=model.gelu_dtype).reshape(1, 100, D)
    out_small = jax.block_until_ready(out_small)
    ref_small = _ref_forward_kernel_path(x_small, model.kparams,
                                         gelu_dtype=model.gelu_dtype)
    err_small = float(jnp.max(jnp.abs(out_small - ref_small)))
    assert jnp.allclose(out_small, ref_small, atol=tight_atol, rtol=tight_rtol), err_small

    print("KERNEL_OK")
</pallas_src>

<mosaic_0001>
module attributes {stable_mosaic.version = 11 : i64} {
  func.func @_denoise_resident_kernel(%arg0: i32, %arg1: memref<512x256xf32, #tpu.memory_space<vmem>>, %arg2: memref<256x512xbf16, #tpu.memory_space<vmem>>, %arg3: memref<1x512xf32, #tpu.memory_space<vmem>>, %arg4: memref<512x256xbf16, #tpu.memory_space<vmem>>, %arg5: memref<1x256xf32, #tpu.memory_space<vmem>>, %arg6: memref<512x256xf32, #tpu.memory_space<vmem>>) attributes {dimension_semantics = [#tpu.dimension_semantics<parallel>], iteration_bounds = array<i64: 2>, scalar_prefetch = 0 : i64, scratch_operands = 0 : i64, tpu.core_type = #tpu.core_type<tc>, window_params = [{transform_indices = @transform_0, window_bounds = array<i64: 512, 256>}, {pipeline_mode = #tpu.pipeline_mode<synchronous>, transform_indices = @transform_1, window_bounds = array<i64: 256, 512>}, {pipeline_mode = #tpu.pipeline_mode<synchronous>, transform_indices = @transform_2, window_bounds = array<i64: 1, 512>}, {pipeline_mode = #tpu.pipeline_mode<synchronous>, transform_indices = @transform_3, window_bounds = array<i64: 512, 256>}, {pipeline_mode = #tpu.pipeline_mode<synchronous>, transform_indices = @transform_4, window_bounds = array<i64: 1, 256>}, {transform_indices = @transform_5, window_bounds = array<i64: 512, 256>}]} {
    %c0 = arith.constant 0 : index
    %c0_0 = arith.constant 0 : index
    %0 = vector.load %arg1[%c0, %c0_0] : memref<512x256xf32, #tpu.memory_space<vmem>>, vector<512x256xf32>
    %cst = arith.constant dense<0.000000e+00> : vector<512xf32>
    %1 = vector.multi_reduction <add>, %0, %cst [1] : vector<512x256xf32> to vector<512xf32>
    %2 = vector.shape_cast %1 : vector<512xf32> to vector<512x1xf32>
    %cst_1 = arith.constant 2.560000e+02 : f32
    %3 = vector.broadcast %cst_1 : f32 to vector<512x1xf32>
    %4 = arith.divf %2, %3 : vector<512x1xf32>
    %5 = vector.broadcast %4 : vector<512x1xf32> to vector<512x256xf32>
    %6 = arith.subf %0, %5 : vector<512x256xf32>
    %7 = arith.mulf %6, %6 : vector<512x256xf32>
    %cst_2 = arith.constant dense<0.000000e+00> : vector<512xf32>
    %8 = vector.multi_reduction <add>, %7, %cst_2 [1] : vector<512x256xf32> to vector<512xf32>
    %9 = vector.shape_cast %8 : vector<512xf32> to vector<512x1xf32>
    %cst_3 = arith.constant 2.560000e+02 : f32
    %10 = vector.broadcast %cst_3 : f32 to vector<512x1xf32>
    %11 = arith.divf %9, %10 : vector<512x1xf32>
    %cst_4 = arith.constant 9.99999974E-6 : f32
    %12 = vector.broadcast %cst_4 : f32 to vector<512x1xf32>
    %13 = arith.addf %11, %12 : vector<512x1xf32>
    %14 = math.rsqrt %13 : vector<512x1xf32>
    %15 = vector.broadcast %14 : vector<512x1xf32> to vector<512x256xf32>
    %16 = arith.mulf %6, %15 : vector<512x256xf32>
    %17 = arith.truncf %16 : vector<512x256xf32> to vector<512x256xbf16>
    %c0_5 = arith.constant 0 : index
    %c0_6 = arith.constant 0 : index
    %18 = vector.load %arg2[%c0_5, %c0_6] : memref<256x512xbf16, #tpu.memory_space<vmem>>, vector<256x512xbf16>
    %cst_7 = arith.constant dense<0.000000e+00> : vector<512x512xf32>
    %19 = tpu.matmul %17, %18, %cst_7 {dimension_numbers = #tpu.dot_dimension_numbers<[1], [0], [0], [1], [0, 0, 1, 1], [], []>} : vector<512x256xbf16>, vector<256x512xbf16>, vector<512x512xf32> -> vector<512x512xf32>
    %c0_8 = arith.constant 0 : index
    %c0_9 = arith.constant 0 : index
    %20 = vector.load %arg3[%c0_8, %c0_9] : memref<1x512xf32, #tpu.memory_space<vmem>>, vector<1x512xf32>
    %21 = vector.broadcast %20 : vector<1x512xf32> to vector<512x512xf32>
    %22 = arith.addf %19, %21 : vector<512x512xf32>
    %23 = arith.truncf %22 : vector<512x512xf32> to vector<512x512xbf16>
    %24 = arith.mulf %23, %23 : vector<512x512xbf16>
    %25 = arith.mulf %23, %24 : vector<512x512xbf16>
    %cst_10 = arith.constant 4.467770e-02 : bf16
    %26 = vector.broadcast %cst_10 : bf16 to vector<512x512xbf16>
    %27 = arith.mulf %26, %25 : vector<512x512xbf16>
    %28 = arith.addf %23, %27 : vector<512x512xbf16>
    %cst_11 = arith.constant 7.968750e-01 : bf16
    %29 = vector.broadcast %cst_11 : bf16 to vector<512x512xbf16>
    %30 = arith.mulf %29, %28 : vector<512x512xbf16>
    %31 = math.tanh %30 : vector<512x512xbf16>
    %cst_12 = arith.constant 1.000000e+00 : bf16
    %32 = vector.broadcast %cst_12 : bf16 to vector<512x512xbf16>
    %33 = arith.addf %32, %31 : vector<512x512xbf16>
    %cst_13 = arith.constant 5.000000e-01 : bf16
    %34 = vector.broadcast %cst_13 : bf16 to vector<512x512xbf16>
    %35 = arith.mulf %34, %33 : vector<512x512xbf16>
    %36 = arith.mulf %23, %35 : vector<512x512xbf16>
    %c0_14 = arith.constant 0 : index
    %c0_15 = arith.constant 0 : index
    %37 = vector.load %arg4[%c0_14, %c0_15] : memref<512x256xbf16, #tpu.memory_space<vmem>>, vector<512x256xbf16>
    %cst_16 = arith.constant dense<0.000000e+00> : vector<512x256xf32>
    %38 = tpu.matmul %36, %37, %cst_16 {dimension_numbers = #tpu.dot_dimension_numbers<[1], [0], [0], [1], [0, 0, 1, 1], [], []>} : vector<512x512xbf16>, vector<512x256xbf16>, vector<512x256xf32> -> vector<512x256xf32>
    %c0_17 = arith.constant 0 : index
    %c0_18 = arith.constant 0 : index
    %39 = vector.load %arg5[%c0_17, %c0_18] : memref<1x256xf32, #tpu.memory_space<vmem>>, vector<1x256xf32>
    %40 = vector.broadcast %39 : vector<1x256xf32> to vector<512x256xf32>
    %41 = arith.addf %38, %40 : vector<512x256xf32>
    %42 = arith.addf %41, %0 : vector<512x256xf32>
    %c0_19 = arith.constant 0 : index
    %c0_20 = arith.constant 0 : index
    %43 = vector.load %arg6[%c0_19, %c0_20] : memref<512x256xf32, #tpu.memory_space<vmem>>, vector<512x256xf32>
    tpu.vector_store %arg6[%c0_19, %c0_20], %42 {strides = array<i32>} : memref<512x256xf32, #tpu.memory_space<vmem>>, vector<512x256xf32>,
    return
  }
  func.func @transform_0(%arg0: i32) -> (i32, i32) {
    %c0_i32 = arith.constant 0 : i32
    %c0_i32_0 = arith.constant 0 : i32
    return %arg0, %c0_i32 : i32, i32
  }
  func.func @transform_1(%arg0: i32) -> (i32, i32) {
    %c0_i32 = arith.constant 0 : i32
    %c0_i32_0 = arith.constant 0 : i32
    %c0_i32_1 = arith.constant 0 : i32
    return %c0_i32, %c0_i32_0 : i32, i32
  }
  func.func @transform_2(%arg0: i32) -> (i32, i32) {
    %c0_i32 = arith.constant 0 : i32
    %c0_i32_0 = arith.constant 0 : i32
    %c0_i32_1 = arith.constant 0 : i32
    return %c0_i32, %c0_i32_0 : i32, i32
  }
  func.func @transform_3(%arg0: i32) -> (i32, i32) {
    %c0_i32 = arith.constant 0 : i32
    %c0_i32_0 = arith.constant 0 : i32
    %c0_i32_1 = arith.constant 0 : i32
    return %c0_i32, %c0_i32_0 : i32, i32
  }
  func.func @transform_4(%arg0: i32) -> (i32, i32) {
    %c0_i32 = arith.constant 0 : i32
    %c0_i32_0 = arith.constant 0 : i32
    %c0_i32_1 = arith.constant 0 : i32
    return %c0_i32, %c0_i32_0 : i32, i32
  }
  func.func @transform_5(%arg0: i32) -> (i32, i32) {
    %c0_i32 = arith.constant 0 : i32
    %c0_i32_0 = arith.constant 0 : i32
    return %arg0, %c0_i32 : i32, i32
  }
}

</mosaic_0001>

<llo_original>
// kernel: tpu_custom_call.1
$region0: #{tpu_custom_call.1}
  #allocation0 [shape = 'u32[]', space=smem, size = 0x4, offset = 0x4, fixed_abs, tag = 'smem constant byte address 0x4 - core index']
  #allocation1 [shape = 'u32[144,128]{1,0:T(1,128)}', space=vmem, size = 0x12000, scoped, tag = 'internal scratch']
  %s0 = inlined_call_operand.hbm [shape: f32[1024,256], index: 0, kind: input, shape index: {}]
  %s1 = inlined_call_operand.hbm [shape: bf16[256,512], index: 1, kind: input, shape index: {}]
  %s2 = inlined_call_operand.vmem [shape: f32[1,512], index: 2, kind: input, shape index: {}]
  %s3 = inlined_call_operand.hbm [shape: bf16[512,256], index: 3, kind: input, shape index: {}]
  %s4 = inlined_call_operand.vmem [shape: f32[1,256], index: 4, kind: input, shape index: {}]
  %s5 = inlined_call_operand.hbm [shape: f32[1024,256], index: 5, kind: output, shape index: {}]
  %s6 = sld [smem:[#allocation0]]
  $region65: #{tpu_custom_call.1} parent=0
    _
  %s8 = ssub.s32 1, %s6
  %s9 = scalar_select 0, %s8, %s6
  $region1: #{tpu_custom_call.1} parent=0
    #allocation2 [shape = 'u8[1048576]{0}', space=vmem, size = 0x100000, scoped, tag = 'input window, operand 0']
    #allocation3 [shape = 's32[2]{0}', space=sflag, size = 0x8, scoped, tag = 'scoped memory for tpu_custom_call.1']
    #allocation4 [shape = 's32[2]{0}', space=sflag, size = 0x8, scoped, tag = 'scoped memory for tpu_custom_call.1']
    #allocation5 [shape = 'u8[262144]{0}', space=vmem, size = 0x40000, scoped, tag = 'input window, operand 1, single buffered']
    #allocation6 [shape = 's32[1]{0}', space=sflag, size = 0x4, scoped, tag = 'scoped memory for tpu_custom_call.1']
    #allocation7 [shape = 'u8[262144]{0}', space=vmem, size = 0x40000, scoped, tag = 'input window, operand 3, single buffered']
    #allocation8 [shape = 'u8[1048576]{0}', space=vmem, size = 0x100000, scoped, tag = 'output window, operand 0']
    %10 = vsyncpa [#allocation3], 0
    %s11 = scalar_lea.sflag [#allocation3], 1
    %12 = vsyncpa %s11, 0
    %13 = vsyncpa [#allocation6], 0
    %14 = vsyncpa [#allocation4], 0
    %s15 = scalar_lea.sflag [#allocation4], 1
    %16 = vsyncpa %s15, 0
    loop: start=0, step=1, limit=4
    $region2: #{tpu_custom_call.1} parent=1 // loop_pre_header
      _
    $region3: #{tpu_custom_call.1} parent=1 // loop_header
      %s18 = sphi 0, %s22
      %p19 = scmp.ge.s32.totalorder %s18, 4
      %s28 = sphi 0, %s30
      %s31 = sphi 0, %s28
      %s32 = sphi 0, %s31
      %s48 = sphi 0, %s32
      %s52 = sphi 0, %s52
      %s54 = sphi 0, %s52
      %s55 = sphi 0, %s54
      %s69 = sphi 0, %s55
      %s73 = sphi 0, %s73
      %s75 = sphi 0, %s73
      %s76 = sphi 0, %s75
      %s90 = sphi 0, %s76
      %s94 = sphi 0, %s94
      %s96 = sphi 0, %s94
      %s97 = sphi 0, %s96
      %s111 = sphi 0, %s97
      %s115 = sphi 0, %s115
      %s117 = sphi 0, %s115
      %s118 = sphi 0, %s117
      %s132 = sphi 0, %s118
      %s138 = sphi 0, %s140
      %s141 = sphi 0, %s138
      %s142 = sphi 0, %s141
      %s158 = sphi 0, %s142
    $region4: #{tpu_custom_call.1} parent=1 // loop_header_branch
      %21 = sbr.rel (%p19) target = $region8
    $region5: #{tpu_custom_call.1} parent=1 // loop_body
      %s23 = ssub.s32 %s18, 1
      %s24 = ssub.s32 %s18, 2
      %s25 = sadd.s32 %s18, 1
      %s26 = ssub.s32 %s18, %s25
      %p27 = scmp.eq.s32.totalorder %s26, 0
      %s29 = sadd.s32 %s28, 1
      %s30 = scalar_select %p27, %s28, %s29
      %p33 = pneg %p27
      %p34 = scmp.eq.s32.totalorder %s18, 1
      %p35 = por %p33, %p34
      %p36 = scmp.ne.s32.totalorder %s28, %s31
      %p37 = scmp.eq.s32.totalorder %s18, 0
      %p38 = por %p36, %p37
      %p39 = scmp.ne.s32.totalorder %s28, %s31
      %p40 = scmp.eq.s32.totalorder %s23, 1
      %p41 = por %p39, %p40
      %p42 = scmp.ne.s32.totalorder %s31, %s32
      %p43 = scmp.eq.s32.totalorder %s23, 0
      %p44 = por %p42, %p43
      %p45 = scmp.ne.s32.totalorder %s31, %s32
      %p46 = scmp.eq.s32.totalorder %s24, 1
      %p47 = por %p45, %p46
      %p49 = scmp.ne.s32.totalorder %s32, %s48
      %p50 = scmp.eq.s32.totalorder %s24, 0
      %p51 = por %p49, %p50
      %s53 = sadd.s32 %s52, 1
      %p56 = scmp.eq.s32.totalorder %s18, 1
      %p57 = scmp.ne.s32.totalorder %s52, %s54
      %p58 = scmp.eq.s32.totalorder %s18, 0
      %p59 = por %p57, %p58
      %p60 = scmp.ne.s32.totalorder %s52, %s54
      %p61 = scmp.eq.s32.totalorder %s23, 1
      %p62 = por %p60, %p61
      %p63 = scmp.ne.s32.totalorder %s54, %s55
      %p64 = scmp.eq.s32.totalorder %s23, 0
      %p65 = por %p63, %p64
      %p66 = scmp.ne.s32.totalorder %s54, %s55
      %p67 = scmp.eq.s32.totalorder %s24, 1
      %p68 = por %p66, %p67
      %p70 = scmp.ne.s32.totalorder %s55, %s69
      %p71 = scmp.eq.s32.totalorder %s24, 0
      %p72 = por %p70, %p71
      %s74 = sadd.s32 %s73, 1
      %p77 = scmp.eq.s32.totalorder %s18, 1
      %p78 = scmp.ne.s32.totalorder %s73, %s75
      %p79 = scmp.eq.s32.totalorder %s18, 0
      %p80 = por %p78, %p79
      %p81 = scmp.ne.s32.totalorder %s73, %s75
      %p82 = scmp.eq.s32.totalorder %s23, 1
      %p83 = por %p81, %p82
      %p84 = scmp.ne.s32.totalorder %s75, %s76
      %p85 = scmp.eq.s32.totalorder %s23, 0
      %p86 = por %p84, %p85
      %p87 = scmp.ne.s32.totalorder %s75, %s76
      %p88 = scmp.eq.s32.totalorder %s24, 1
      %p89 = por %p87, %p88
      %p91 = scmp.ne.s32.totalorder %s76, %s90
      %p92 = scmp.eq.s32.totalorder %s24, 0
      %p93 = por %p91, %p92
      %s95 = sadd.s32 %s94, 1
      %p98 = scmp.eq.s32.totalorder %s18, 1
      %p99 = scmp.ne.s32.totalorder %s94, %s96
      %p100 = scmp.eq.s32.totalorder %s18, 0
      %p101 = por %p99, %p100
      %p102 = scmp.ne.s32.totalorder %s94, %s96
      %p103 = scmp.eq.s32.totalorder %s23, 1
      %p104 = por %p102, %p103
      %p105 = scmp.ne.s32.totalorder %s96, %s97
      %p106 = scmp.eq.s32.totalorder %s23, 0
      %p107 = por %p105, %p106
      %p108 = scmp.ne.s32.totalorder %s96, %s97
      %p109 = scmp.eq.s32.totalorder %s24, 1
      %p110 = por %p108, %p109
      %p112 = scmp.ne.s32.totalorder %s97, %s111
      %p113 = scmp.eq.s32.totalorder %s24, 0
      %p114 = por %p112, %p113
      %s116 = sadd.s32 %s115, 1
      %p119 = scmp.eq.s32.totalorder %s18, 1
      %p120 = scmp.ne.s32.totalorder %s115, %s117
      %p121 = scmp.eq.s32.totalorder %s18, 0
      %p122 = por %p120, %p121
      %p123 = scmp.ne.s32.totalorder %s115, %s117
      %p124 = scmp.eq.s32.totalorder %s23, 1
      %p125 = por %p123, %p124
      %p126 = scmp.ne.s32.totalorder %s117, %s118
      %p127 = scmp.eq.s32.totalorder %s23, 0
      %p128 = por %p126, %p127
      %p129 = scmp.ne.s32.totalorder %s117, %s118
      %p130 = scmp.eq.s32.totalorder %s24, 1
      %p131 = por %p129, %p130
      %p133 = scmp.ne.s32.totalorder %s118, %s132
      %p134 = scmp.eq.s32.totalorder %s24, 0
      %p135 = por %p133, %p134
      %s136 = ssub.s32 %s18, %s25
      %p137 = scmp.eq.s32.totalorder %s136, 0
      %s139 = sadd.s32 %s138, 1
      %s140 = scalar_select %p137, %s138, %s139
      %p143 = pneg %p137
      %p144 = scmp.eq.s32.totalorder %s18, 1
      %p145 = por %p143, %p144
      %p146 = scmp.ne.s32.totalorder %s138, %s141
      %p147 = scmp.eq.s32.totalorder %s18, 0
      %p148 = por %p146, %p147
      %p149 = scmp.ne.s32.totalorder %s138, %s141
      %p150 = scmp.eq.s32.totalorder %s23, 1
      %p151 = por %p149, %p150
      %p152 = scmp.ne.s32.totalorder %s141, %s142
      %p153 = scmp.eq.s32.totalorder %s23, 0
      %p154 = por %p152, %p153
      %p155 = scmp.ne.s32.totalorder %s141, %s142
      %p156 = scmp.eq.s32.totalorder %s24, 1
      %p157 = por %p155, %p156
      %p159 = scmp.ne.s32.totalorder %s142, %s158
      %p160 = scmp.eq.s32.totalorder %s24, 0
      %p161 = por %p159, %p160
      %p162 = scmp.le.s32.totalorder 1, %s18
      %p163 = scmp.lt.s32.totalorder %s18, 3
      %p164 = pnand %p162, %p163
      %p165 = pneg %p164
      // Predicated region
      $region9: #{tpu_custom_call.1} parent=5 // pred_check
        _
      $region10: #{tpu_custom_call.1} parent=5 // pred_check_branch
        %167 = sbr.rel (%p164) target = $region12
      $region11: #{tpu_custom_call.1} parent=5 // pred_region
        %s168 = ssub.s32 %s18, 1
        // Predicated region
        $region13: #{tpu_custom_call.1} parent=11 // pred_check
          %p169 = pneg %p65
        $region14: #{tpu_custom_call.1} parent=11 // pred_check_branch
          %171 = sbr.rel (%p169) target = $region16
        $region15: #{tpu_custom_call.1} parent=11 // pred_region
          %s173 = ssub.s32 8192, 8192
          %174 = vsyncadd [#allocation6], %s173
          %s175 = sshll.u32 [#allocation5], 4
          %s176 = int_to_ptr.vmem [resolvable:$true] %s175
          %181 = dma.hbm_to_vmem [thread:$0]  %s1, 8192, %s176, [#allocation6], 256, 256, 16
        $region16: #{tpu_custom_call.1} parent=11 // pred_fallthru
          _
        // Predicated region
        $region17: #{tpu_custom_call.1} parent=11 // pred_check
          %p182 = pneg %p86
        $region18: #{tpu_custom_call.1} parent=11 // pred_check_branch
          %184 = sbr.rel (%p182) target = $region20
        $region19: #{tpu_custom_call.1} parent=11 // pred_region
          _
        $region20: #{tpu_custom_call.1} parent=11 // pred_fallthru
          _
        // Predicated region
        $region21: #{tpu_custom_call.1} parent=11 // pred_check
          %p185 = pneg %p107
        $region22: #{tpu_custom_call.1} parent=11 // pred_check_branch
          %187 = sbr.rel (%p185) target = $region24
        $region23: #{tpu_custom_call.1} parent=11 // pred_region
          %s189 = ssub.s32 8192, 8192
          %190 = vsyncadd [#allocation6], %s189
          %s191 = sshll.u32 [#allocation7], 4
          %s192 = int_to_ptr.vmem [resolvable:$true] %s191
          %197 = dma.hbm_to_vmem [thread:$0]  %s3, 8192, %s192, [#allocation6], 128, 128, 8
        $region24: #{tpu_custom_call.1} parent=11 // pred_fallthru
          _
        // Predicated region
        $region25: #{tpu_custom_call.1} parent=11 // pred_check
          %p198 = pneg %p128
        $region26: #{tpu_custom_call.1} parent=11 // pred_check_branch
          %200 = sbr.rel (%p198) target = $region28
        $region27: #{tpu_custom_call.1} parent=11 // pred_region
          _
        $region28: #{tpu_custom_call.1} parent=11 // pred_fallthru
          _
      $region12: #{tpu_custom_call.1} parent=5 // pred_fallthru
        _
      %p201 = scmp.lt.s32.totalorder %s18, 2
      // Predicated region
      $region29: #{tpu_custom_call.1} parent=5 // pred_check
        %p202 = pneg %p201
      $region30: #{tpu_custom_call.1} parent=5 // pred_check_branch
        %204 = sbr.rel (%p202) target = $region32
      $region31: #{tpu_custom_call.1} parent=5 // pred_region
        // Predicated region
        $region33: #{tpu_custom_call.1} parent=31 // pred_check
          %p205 = pneg %p38
        $region34: #{tpu_custom_call.1} parent=31 // pred_check_branch
          %207 = sbr.rel (%p205) target = $region36
        $region35: #{tpu_custom_call.1} parent=31 // pred_region
          %s208 = sand.u32 %s28, 1
          %s209 = scalar_lea.sflag [#allocation3], %s208
          %s210 = sand.u32 %s28, 1
          %s211 = smul.addr %s210, 1024
          %s212 = scalar_lea.vmem [#allocation2], %s211
          %s213 = smul.u32 64, %s18
          %s215 = ssub.s32 16384, 16384
          %216 = vsyncadd %s209, %s215
          %s217 = smul.addr %s213, 2
          %s218 = smul.addr %s217, 128
          %s219 = scalar_lea.hbm %s0, %s218
          %s220 = sshll.u32 %s212, 4
          %s221 = int_to_ptr.vmem [resolvable:$true] %s220
          %226 = dma.hbm_to_vmem [thread:$0]  %s219, 16384, %s221, %s209, 256, 256, 16
        $region36: #{tpu_custom_call.1} parent=31 // pred_fallthru
          _
      $region32: #{tpu_custom_call.1} parent=5 // pred_fallthru
        _
      %p227 = scmp.le.s32.totalorder 1, %s18
      %p228 = scmp.lt.s32.totalorder %s18, 3
      %p229 = pnand %p227, %p228
      %p230 = pneg %p229
      // Predicated region
      $region37: #{tpu_custom_call.1} parent=5 // pred_check
        _
      $region38: #{tpu_custom_call.1} parent=5 // pred_check_branch
        %232 = sbr.rel (%p229) target = $region40
      $region39: #{tpu_custom_call.1} parent=5 // pred_region
        %s233 = ssub.s32 %s18, 1
        %s234 = sand.u32 %s31, 1
        %s235 = scalar_lea.sflag [#allocation3], %s234
        %s236 = sand.u32 %s31, 1
        %s237 = smul.addr %s236, 1024
        %s238 = scalar_lea.vmem [#allocation2], %s237
        // Predicated region
        $region41: #{tpu_custom_call.1} parent=39 // pred_check
          %p239 = pneg %p44
        $region42: #{tpu_custom_call.1} parent=39 // pred_check_branch
          %241 = sbr.rel (%p239) target = $region44
        $region43: #{tpu_custom_call.1} parent=39 // pred_region
          %242 = dma.done %s235, 16384
        $region44: #{tpu_custom_call.1} parent=39 // pred_fallthru
          _
        // Predicated region
        $region45: #{tpu_custom_call.1} parent=39 // pred_check
          %p243 = pneg %p65
        $region46: #{tpu_custom_call.1} parent=39 // pred_check_branch
          %245 = sbr.rel (%p243) target = $region48
        $region47: #{tpu_custom_call.1} parent=39 // pred_region
          %246 = dma.done [#allocation6], 8192
        $region48: #{tpu_custom_call.1} parent=39 // pred_fallthru
          _
        // Predicated region
        $region49: #{tpu_custom_call.1} parent=39 // pred_check
          %p247 = pneg %p107
        $region50: #{tpu_custom_call.1} parent=39 // pred_check_branch
          %249 = sbr.rel (%p247) target = $region52
        $region51: #{tpu_custom_call.1} parent=39 // pred_region
          %250 = dma.done [#allocation6], 8192
        $region52: #{tpu_custom_call.1} parent=39 // pred_fallthru
          _
        %s251 = sand.u32 %s31, 1
        %s252 = scalar_lea.sflag [#allocation3], %s251
        %s253 = sand.u32 %s31, 1
        %s254 = smul.addr %s253, 1024
        %s255 = scalar_lea.vmem [#allocation2], %s254
        %p256 = pneg %p44
        %p257 = pneg %p41
        %p258 = pneg %p65
        %p259 = pneg %p62
        %p260 = pneg %p86
        %p261 = pneg %p83
        %p262 = pneg %p107
        %p263 = pneg %p104
        %p264 = pneg %p128
        %p265 = pneg %p125
        %p266 = pneg %p154
        %p267 = pneg %p151
        %s268 = sand.u32 %s141, 1
        %s269 = scalar_lea.sflag [#allocation4], %s268
        %s270 = sand.u32 %s141, 1
        %s271 = smul.addr %s270, 1024
        %s272 = scalar_lea.vmem [#allocation8], %s271
        %s273 = smul.u32 64, %s23
        %s274 = smul.u32 64, %s23
        %v279 = vld [vmem:[%s238] sm:$0xff]
        %v280 = vld [vmem:[%s238 + $0x8] sm:$0xff]
        %v281 = vld [vmem:[%s238 + $0x10] sm:$0xff]
        %v282 = vld [vmem:[%s238 + $0x18] sm:$0xff]
        %v283 = vld [vmem:[%s238 + $0x20] sm:$0xff]
        %v284 = vld [vmem:[%s238 + $0x28] sm:$0xff]
        %v285 = vld [vmem:[%s238 + $0x30] sm:$0xff]
        %v286 = vld [vmem:[%s238 + $0x38] sm:$0xff]
        %v287 = vld [vmem:[%s238 + $0x40] sm:$0xff]
        %v288 = vld [vmem:[%s238 + $0x48] sm:$0xff]
        %v289 = vld [vmem:[%s238 + $0x50] sm:$0xff]
        %v290 = vld [vmem:[%s238 + $0x58] sm:$0xff]
        %v291 = vld [vmem:[%s238 + $0x60] sm:$0xff]
        %v292 = vld [vmem:[%s238 + $0x68] sm:$0xff]
        %v293 = vld [vmem:[%s238 + $0x70] sm:$0xff]
        %v294 = vld [vmem:[%s238 + $0x78] sm:$0xff]
        %v295 = vld [vmem:[%s238 + $0x80] sm:$0xff]
        %v296 = vld [vmem:[%s238 + $0x88] sm:$0xff]
        %v297 = vld [vmem:[%s238 + $0x90] sm:$0xff]
        %v298 = vld [vmem:[%s238 + $0x98] sm:$0xff]
        %v299 = vld [vmem:[%s238 + $0xa0] sm:$0xff]
        %v300 = vld [vmem:[%s238 + $0xa8] sm:$0xff]
        %v301 = vld [vmem:[%s238 + $0xb0] sm:$0xff]
        %v302 = vld [vmem:[%s238 + $0xb8] sm:$0xff]
        %v303 = vld [vmem:[%s238 + $0xc0] sm:$0xff]
        %v304 = vld [vmem:[%s238 + $0xc8] sm:$0xff]
        %v305 = vld [vmem:[%s238 + $0xd0] sm:$0xff]
        %v306 = vld [vmem:[%s238 + $0xd8] sm:$0xff]
        %v307 = vld [vmem:[%s238 + $0xe0] sm:$0xff]
        %v308 = vld [vmem:[%s238 + $0xe8] sm:$0xff]
        %v309 = vld [vmem:[%s238 + $0xf0] sm:$0xff]
        %v310 = vld [vmem:[%s238 + $0xf8] sm:$0xff]
        %v311 = vld [vmem:[%s238 + $0x100] sm:$0xff]
        %v312 = vld [vmem:[%s238 + $0x108] sm:$0xff]
        %v313 = vld [vmem:[%s238 + $0x110] sm:$0xff]
        %v314 = vld [vmem:[%s238 + $0x118] sm:$0xff]
        %v315 = vld [vmem:[%s238 + $0x120] sm:$0xff]
        %v316 = vld [vmem:[%s238 + $0x128] sm:$0xff]
        %v317 = vld [vmem:[%s238 + $0x130] sm:$0xff]
        %v318 = vld [vmem:[%s238 + $0x138] sm:$0xff]
        %v319 = vld [vmem:[%s238 + $0x140] sm:$0xff]
        %v320 = vld [vmem:[%s238 + $0x148] sm:$0xff]
        %v321 = vld [vmem:[%s238 + $0x150] sm:$0xff]
        %v322 = vld [vmem:[%s238 + $0x158] sm:$0xff]
        %v323 = vld [vmem:[%s238 + $0x160] sm:$0xff]
        %v324 = vld [vmem:[%s238 + $0x168] sm:$0xff]
        %v325 = vld [vmem:[%s238 + $0x170] sm:$0xff]
        %v326 = vld [vmem:[%s238 + $0x178] sm:$0xff]
        %v327 = vld [vmem:[%s238 + $0x180] sm:$0xff]
        %v328 = vld [vmem:[%s238 + $0x188] sm:$0xff]
        %v329 = vld [vmem:[%s238 + $0x190] sm:$0xff]
        %v330 = vld [vmem:[%s238 + $0x198] sm:$0xff]
        %v331 = vld [vmem:[%s238 + $0x1a0] sm:$0xff]
        %v332 = vld [vmem:[%s238 + $0x1a8] sm:$0xff]
        %v333 = vld [vmem:[%s238 + $0x1b0] sm:$0xff]
        %v334 = vld [vmem:[%s238 + $0x1b8] sm:$0xff]
        %v335 = vld [vmem:[%s238 + $0x1c0] sm:$0xff]
        %v336 = vld [vmem:[%s238 + $0x1c8] sm:$0xff]
        %v337 = vld [vmem:[%s238 + $0x1d0] sm:$0xff]
        %v338 = vld [vmem:[%s238 + $0x1d8] sm:$0xff]
        %v339 = vld [vmem:[%s238 + $0x1e0] sm:$0xff]
        %v340 = vld [vmem:[%s238 + $0x1e8] sm:$0xff]
        %v341 = vld [vmem:[%s238 + $0x1f0] sm:$0xff]
        %v342 = vld [vmem:[%s238 + $0x1f8] sm:$0xff]
        %v343 = vld [vmem:[%s238 + $0x200] sm:$0xff]
        %v344 = vld [vmem:[%s238 + $0x208] sm:$0xff]
        %v345 = vld [vmem:[%s238 + $0x210] sm:$0xff]
        %v346 = vld [vmem:[%s238 + $0x218] sm:$0xff]
        %v347 = vld [vmem:[%s238 + $0x220] sm:$0xff]
        %v348 = vld [vmem:[%s238 + $0x228] sm:$0xff]
        %v349 = vld [vmem:[%s238 + $0x230] sm:$0xff]
        %v350 = vld [vmem:[%s238 + $0x238] sm:$0xff]
        %v351 = vld [vmem:[%s238 + $0x240] sm:$0xff]
        %v352 = vld [vmem:[%s238 + $0x248] sm:$0xff]
        %v353 = vld [vmem:[%s238 + $0x250] sm:$0xff]
        %v354 = vld [vmem:[%s238 + $0x258] sm:$0xff]
        %v355 = vld [vmem:[%s238 + $0x260] sm:$0xff]
        %v356 = vld [vmem:[%s238 + $0x268] sm:$0xff]
        %v357 = vld [vmem:[%s238 + $0x270] sm:$0xff]
        %v358 = vld [vmem:[%s238 + $0x278] sm:$0xff]
        %v359 = vld [vmem:[%s238 + $0x280] sm:$0xff]
        %v360 = vld [vmem:[%s238 + $0x288] sm:$0xff]
        %v361 = vld [vmem:[%s238 + $0x290] sm:$0xff]
        %v362 = vld [vmem:[%s238 + $0x298] sm:$0xff]
        %v363 = vld [vmem:[%s238 + $0x2a0] sm:$0xff]
        %v364 = vld [vmem:[%s238 + $0x2a8] sm:$0xff]
        %v365 = vld [vmem:[%s238 + $0x2b0] sm:$0xff]
        %v366 = vld [vmem:[%s238 + $0x2b8] sm:$0xff]
        %v367 = vld [vmem:[%s238 + $0x2c0] sm:$0xff]
        %v368 = vld [vmem:[%s238 + $0x2c8] sm:$0xff]
        %v369 = vld [vmem:[%s238 + $0x2d0] sm:$0xff]
        %v370 = vld [vmem:[%s238 + $0x2d8] sm:$0xff]
        %v371 = vld [vmem:[%s238 + $0x2e0] sm:$0xff]
        %v372 = vld [vmem:[%s238 + $0x2e8] sm:$0xff]
        %v373 = vld [vmem:[%s238 + $0x2f0] sm:$0xff]
        %v374 = vld [vmem:[%s238 + $0x2f8] sm:$0xff]
        %v375 = vld [vmem:[%s238 + $0x300] sm:$0xff]
        %v376 = vld [vmem:[%s238 + $0x308] sm:$0xff]
        %v377 = vld [vmem:[%s238 + $0x310] sm:$0xff]
        %v378 = vld [vmem:[%s238 + $0x318] sm:$0xff]
        %v379 = vld [vmem:[%s238 + $0x320] sm:$0xff]
        %v380 = vld [vmem:[%s238 + $0x328] sm:$0xff]
        %v381 = vld [vmem:[%s238 + $0x330] sm:$0xff]
        %v382 = vld [vmem:[%s238 + $0x338] sm:$0xff]
        %v383 = vld [vmem:[%s238 + $0x340] sm:$0xff]
        %v384 = vld [vmem:[%s238 + $0x348] sm:$0xff]
        %v385 = vld [vmem:[%s238 + $0x350] sm:$0xff]
        %v386 = vld [vmem:[%s238 + $0x358] sm:$0xff]
        %v387 = vld [vmem:[%s238 + $0x360] sm:$0xff]
        %v388 = vld [vmem:[%s238 + $0x368] sm:$0xff]
        %v389 = vld [vmem:[%s238 + $0x370] sm:$0xff]
        %v390 = vld [vmem:[%s238 + $0x378] sm:$0xff]
        %v391 = vld [vmem:[%s238 + $0x380] sm:$0xff]
        %v392 = vld [vmem:[%s238 + $0x388] sm:$0xff]
        %v393 = vld [vmem:[%s238 + $0x390] sm:$0xff]
        %v394 = vld [vmem:[%s238 + $0x398] sm:$0xff]
        %v395 = vld [vmem:[%s238 + $0x3a0] sm:$0xff]
        %v396 = vld [vmem:[%s238 + $0x3a8] sm:$0xff]
        %v397 = vld [vmem:[%s238 + $0x3b0] sm:$0xff]
        %v398 = vld [vmem:[%s238 + $0x3b8] sm:$0xff]
        %v399 = vld [vmem:[%s238 + $0x3c0] sm:$0xff]
        %v400 = vld [vmem:[%s238 + $0x3c8] sm:$0xff]
        %v401 = vld [vmem:[%s238 + $0x3d0] sm:$0xff]
        %v402 = vld [vmem:[%s238 + $0x3d8] sm:$0xff]
        %v403 = vld [vmem:[%s238 + $0x3e0] sm:$0xff]
        %v404 = vld [vmem:[%s238 + $0x3e8] sm:$0xff]
        %v405 = vld [vmem:[%s238 + $0x3f0] sm:$0xff]
        %v406 = vld [vmem:[%s238 + $0x3f8] sm:$0xff]
        %v407 = vadd.f32 %v279, %v280
        %408 = vadd.xlane.f32.xlu0 %v407
        %v409 = vpop.xlane.xlu0 %408
        %v410 = vadd.f32 %v281, %v282
        %411 = vadd.xlane.f32.xlu0 %v410
        %v412 = vpop.xlane.xlu0 %411
        %v413 = vadd.f32 %v283, %v284
        %414 = vadd.xlane.f32.xlu0 %v413
        %v415 = vpop.xlane.xlu0 %414
        %v416 = vadd.f32 %v285, %v286
        %417 = vadd.xlane.f32.xlu0 %v416
        %v418 = vpop.xlane.xlu0 %417
        %v419 = vadd.f32 %v287, %v288
        %420 = vadd.xlane.f32.xlu0 %v419
        %v421 = vpop.xlane.xlu0 %420
        %v422 = vadd.f32 %v289, %v290
        %423 = vadd.xlane.f32.xlu0 %v422
        %v424 = vpop.xlane.xlu0 %423
        %v425 = vadd.f32 %v291, %v292
        %426 = vadd.xlane.f32.xlu0 %v425
        %v427 = vpop.xlane.xlu0 %426
        %v428 = vadd.f32 %v293, %v294
        %429 = vadd.xlane.f32.xlu0 %v428
        %v430 = vpop.xlane.xlu0 %429
        %v431 = vadd.f32 %v295, %v296
        %432 = vadd.xlane.f32.xlu0 %v431
        %v433 = vpop.xlane.xlu0 %432
        %v434 = vadd.f32 %v297, %v298
        %435 = vadd.xlane.f32.xlu0 %v434
        %v436 = vpop.xlane.xlu0 %435
        %v437 = vadd.f32 %v299, %v300
        %438 = vadd.xlane.f32.xlu0 %v437
        %v439 = vpop.xlane.xlu0 %438
        %v440 = vadd.f32 %v301, %v302
        %441 = vadd.xlane.f32.xlu0 %v440
        %v442 = vpop.xlane.xlu0 %441
        %v443 = vadd.f32 %v303, %v304
        %444 = vadd.xlane.f32.xlu0 %v443
        %v445 = vpop.xlane.xlu0 %444
        %v446 = vadd.f32 %v305, %v306
        %447 = vadd.xlane.f32.xlu0 %v446
        %v448 = vpop.xlane.xlu0 %447
        %v449 = vadd.f32 %v307, %v308
        %450 = vadd.xlane.f32.xlu0 %v449
        %v451 = vpop.xlane.xlu0 %450
        %v452 = vadd.f32 %v309, %v310
        %453 = vadd.xlane.f32.xlu0 %v452
        %v454 = vpop.xlane.xlu0 %453
        %v455 = vadd.f32 %v311, %v312
        %456 = vadd.xlane.f32.xlu0 %v455
        %v457 = vpop.xlane.xlu0 %456
        %v458 = vadd.f32 %v313, %v314
        %459 = vadd.xlane.f32.xlu0 %v458
        %v460 = vpop.xlane.xlu0 %459
        %v461 = vadd.f32 %v315, %v316
        %462 = vadd.xlane.f32.xlu0 %v461
        %v463 = vpop.xlane.xlu0 %462
        %v464 = vadd.f32 %v317, %v318
        %465 = vadd.xlane.f32.xlu0 %v464
        %v466 = vpop.xlane.xlu0 %465
        %v467 = vadd.f32 %v319, %v320
        %468 = vadd.xlane.f32.xlu0 %v467
        %v469 = vpop.xlane.xlu0 %468
        %v470 = vadd.f32 %v321, %v322
        %471 = vadd.xlane.f32.xlu0 %v470
        %v472 = vpop.xlane.xlu0 %471
        %v473 = vadd.f32 %v323, %v324
        %474 = vadd.xlane.f32.xlu0 %v473
        %v475 = vpop.xlane.xlu0 %474
        %v476 = vadd.f32 %v325, %v326
        %477 = vadd.xlane.f32.xlu0 %v476
        %v478 = vpop.xlane.xlu0 %477
        %v479 = vadd.f32 %v327, %v328
        %480 = vadd.xlane.f32.xlu0 %v479
        %v481 = vpop.xlane.xlu0 %480
        %v482 = vadd.f32 %v329, %v330
        %483 = vadd.xlane.f32.xlu0 %v482
        %v484 = vpop.xlane.xlu0 %483
        %v485 = vadd.f32 %v331, %v332
        %486 = vadd.xlane.f32.xlu0 %v485
        %v487 = vpop.xlane.xlu0 %486
        %v488 = vadd.f32 %v333, %v334
        %489 = vadd.xlane.f32.xlu0 %v488
        %v490 = vpop.xlane.xlu0 %489
        %v491 = vadd.f32 %v335, %v336
        %492 = vadd.xlane.f32.xlu0 %v491
        %v493 = vpop.xlane.xlu0 %492
        %v494 = vadd.f32 %v337, %v338
        %495 = vadd.xlane.f32.xlu0 %v494
        %v496 = vpop.xlane.xlu0 %495
        %v497 = vadd.f32 %v339, %v340
        %498 = vadd.xlane.f32.xlu0 %v497
        %v499 = vpop.xlane.xlu0 %498
        %v500 = vadd.f32 %v341, %v342
        %501 = vadd.xlane.f32.xlu0 %v500
        %v502 = vpop.xlane.xlu0 %501
        %v503 = vadd.f32 %v343, %v344
        %504 = vadd.xlane.f32.xlu0 %v503
        %v505 = vpop.xlane.xlu0 %504
        %v506 = vadd.f32 %v345, %v346
        %507 = vadd.xlane.f32.xlu0 %v506
        %v508 = vpop.xlane.xlu0 %507
        %v509 = vadd.f32 %v347, %v348
        %510 = vadd.xlane.f32.xlu0 %v509
        %v511 = vpop.xlane.xlu0 %510
        %v512 = vadd.f32 %v349, %v350
        %513 = vadd.xlane.f32.xlu0 %v512
        %v514 = vpop.xlane.xlu0 %513
        %v515 = vadd.f32 %v351, %v352
        %516 = vadd.xlane.f32.xlu0 %v515
        %v517 = vpop.xlane.xlu0 %516
        %v518 = vadd.f32 %v353, %v354
        %519 = vadd.xlane.f32.xlu0 %v518
        %v520 = vpop.xlane.xlu0 %519
        %v521 = vadd.f32 %v355, %v356
        %522 = vadd.xlane.f32.xlu0 %v521
        %v523 = vpop.xlane.xlu0 %522
        %v524 = vadd.f32 %v357, %v358
        %525 = vadd.xlane.f32.xlu0 %v524
        %v526 = vpop.xlane.xlu0 %525
        %v527 = vadd.f32 %v359, %v360
        %528 = vadd.xlane.f32.xlu0 %v527
        %v529 = vpop.xlane.xlu0 %528
        %v530 = vadd.f32 %v361, %v362
        %531 = vadd.xlane.f32.xlu0 %v530
        %v532 = vpop.xlane.xlu0 %531
        %v533 = vadd.f32 %v363, %v364
        %534 = vadd.xlane.f32.xlu0 %v533
        %v535 = vpop.xlane.xlu0 %534
        %v536 = vadd.f32 %v365, %v366
        %537 = vadd.xlane.f32.xlu0 %v536
        %v538 = vpop.xlane.xlu0 %537
        %v539 = vadd.f32 %v367, %v368
        %540 = vadd.xlane.f32.xlu0 %v539
        %v541 = vpop.xlane.xlu0 %540
        %v542 = vadd.f32 %v369, %v370
        %543 = vadd.xlane.f32.xlu0 %v542
        %v544 = vpop.xlane.xlu0 %543
        %v545 = vadd.f32 %v371, %v372
        %546 = vadd.xlane.f32.xlu0 %v545
        %v547 = vpop.xlane.xlu0 %546
        %v548 = vadd.f32 %v373, %v374
        %549 = vadd.xlane.f32.xlu0 %v548
        %v550 = vpop.xlane.xlu0 %549
        %v551 = vadd.f32 %v375, %v376
        %552 = vadd.xlane.f32.xlu0 %v551
        %v553 = vpop.xlane.xlu0 %552
        %v554 = vadd.f32 %v377, %v378
        %555 = vadd.xlane.f32.xlu0 %v554
        %v556 = vpop.xlane.xlu0 %555
        %v557 = vadd.f32 %v379, %v380
        %558 = vadd.xlane.f32.xlu0 %v557
        %v559 = vpop.xlane.xlu0 %558
        %v560 = vadd.f32 %v381, %v382
        %561 = vadd.xlane.f32.xlu0 %v560
        %v562 = vpop.xlane.xlu0 %561
        %v563 = vadd.f32 %v383, %v384
        %564 = vadd.xlane.f32.xlu0 %v563
        %v565 = vpop.xlane.xlu0 %564
        %v566 = vadd.f32 %v385, %v386
        %567 = vadd.xlane.f32.xlu0 %v566
        %v568 = vpop.xlane.xlu0 %567
        %v569 = vadd.f32 %v387, %v388
        %570 = vadd.xlane.f32.xlu0 %v569
        %v571 = vpop.xlane.xlu0 %570
        %v572 = vadd.f32 %v389, %v390
        %573 = vadd.xlane.f32.xlu0 %v572
        %v574 = vpop.xlane.xlu0 %573
        %v575 = vadd.f32 %v391, %v392
        %576 = vadd.xlane.f32.xlu0 %v575
        %v577 = vpop.xlane.xlu0 %576
        %v578 = vadd.f32 %v393, %v394
        %579 = vadd.xlane.f32.xlu0 %v578
        %v580 = vpop.xlane.xlu0 %579
        %v581 = vadd.f32 %v395, %v396
        %582 = vadd.xlane.f32.xlu0 %v581
        %v583 = vpop.xlane.xlu0 %582
        %v584 = vadd.f32 %v397, %v398
        %585 = vadd.xlane.f32.xlu0 %v584
        %v586 = vpop.xlane.xlu0 %585
        %v587 = vadd.f32 %v399, %v400
        %588 = vadd.xlane.f32.xlu0 %v587
        %v589 = vpop.xlane.xlu0 %588
        %v590 = vadd.f32 %v401, %v402
        %591 = vadd.xlane.f32.xlu0 %v590
        %v592 = vpop.xlane.xlu0 %591
        %v593 = vadd.f32 %v403, %v404
        %594 = vadd.xlane.f32.xlu0 %v593
        %v595 = vpop.xlane.xlu0 %594
        %v596 = vadd.f32 %v405, %v406
        %597 = vadd.xlane.f32.xlu0 %v596
        %v598 = vpop.xlane.xlu0 %597
        %v599 = vrcp.pop 256.0
        %v600 = vmul.f32 %v409, %v599
        %v601 = vmul.f32 %v412, %v599
        %v602 = vmul.f32 %v415, %v599
        %v603 = vmul.f32 %v418, %v599
        %v604 = vmul.f32 %v421, %v599
        %v605 = vmul.f32 %v424, %v599
        %v606 = vmul.f32 %v427, %v599
        %v607 = vmul.f32 %v430, %v599
        %v608 = vmul.f32 %v433, %v599
        %v609 = vmul.f32 %v436, %v599
        %v610 = vmul.f32 %v439, %v599
        %v611 = vmul.f32 %v442, %v599
        %v612 = vmul.f32 %v445, %v599
        %v613 = vmul.f32 %v448, %v599
        %v614 = vmul.f32 %v451, %v599
        %v615 = vmul.f32 %v454, %v599
        %v616 = vmul.f32 %v457, %v599
        %v617 = vmul.f32 %v460, %v599
        %v618 = vmul.f32 %v463, %v599
        %v619 = vmul.f32 %v466, %v599
        %v620 = vmul.f32 %v469, %v599
        %v621 = vmul.f32 %v472, %v599
        %v622 = vmul.f32 %v475, %v599
        %v623 = vmul.f32 %v478, %v599
        %v624 = vmul.f32 %v481, %v599
        %v625 = vmul.f32 %v484, %v599
        %v626 = vmul.f32 %v487, %v599
        %v627 = vmul.f32 %v490, %v599
        %v628 = vmul.f32 %v493, %v599
        %v629 = vmul.f32 %v496, %v599
        %v630 = vmul.f32 %v499, %v599
        %v631 = vmul.f32 %v502, %v599
        %v632 = vmul.f32 %v505, %v599
        %v633 = vmul.f32 %v508, %v599
        %v634 = vmul.f32 %v511, %v599
        %v635 = vmul.f32 %v514, %v599
        %v636 = vmul.f32 %v517, %v599
        %v637 = vmul.f32 %v520, %v599
        %v638 = vmul.f32 %v523, %v599
        %v639 = vmul.f32 %v526, %v599
        %v640 = vmul.f32 %v529, %v599
        %v641 = vmul.f32 %v532, %v599
        %v642 = vmul.f32 %v535, %v599
        %v643 = vmul.f32 %v538, %v599
        %v644 = vmul.f32 %v541, %v599
        %v645 = vmul.f32 %v544, %v599
        %v646 = vmul.f32 %v547, %v599
        %v647 = vmul.f32 %v550, %v599
        %v648 = vmul.f32 %v553, %v599
        %v649 = vmul.f32 %v556, %v599
        %v650 = vmul.f32 %v559, %v599
        %v651 = vmul.f32 %v562, %v599
        %v652 = vmul.f32 %v565, %v599
        %v653 = vmul.f32 %v568, %v599
        %v654 = vmul.f32 %v571, %v599
        %v655 = vmul.f32 %v574, %v599
        %v656 = vmul.f32 %v577, %v599
        %v657 = vmul.f32 %v580, %v599
        %v658 = vmul.f32 %v583, %v599
        %v659 = vmul.f32 %v586, %v599
        %v660 = vmul.f32 %v589, %v599
        %v661 = vmul.f32 %v592, %v599
        %v662 = vmul.f32 %v595, %v599
        %v663 = vmul.f32 %v598, %v599
        %v664 = vsub.f32 %v279, %v600
        %v665 = vsub.f32 %v280, %v600
        %v666 = vsub.f32 %v281, %v601
        %v667 = vsub.f32 %v282, %v601
        %v668 = vsub.f32 %v283, %v602
        %v669 = vsub.f32 %v284, %v602
        %v670 = vsub.f32 %v285, %v603
        %v671 = vsub.f32 %v286, %v603
        %v672 = vsub.f32 %v287, %v604
        %v673 = vsub.f32 %v288, %v604
        %v674 = vsub.f32 %v289, %v605
        %v675 = vsub.f32 %v290, %v605
        %v676 = vsub.f32 %v291, %v606
        %v677 = vsub.f32 %v292, %v606
        %v678 = vsub.f32 %v293, %v607
        %v679 = vsub.f32 %v294, %v607
        %v680 = vsub.f32 %v295, %v608
        %v681 = vsub.f32 %v296, %v608
        %v682 = vsub.f32 %v297, %v609
        %v683 = vsub.f32 %v298, %v609
        %v684 = vsub.f32 %v299, %v610
        %v685 = vsub.f32 %v300, %v610
        %v686 = vsub.f32 %v301, %v611
        %v687 = vsub.f32 %v302, %v611
        %v688 = vsub.f32 %v303, %v612
        %v689 = vsub.f32 %v304, %v612
        %v690 = vsub.f32 %v305, %v613
        %v691 = vsub.f32 %v306, %v613
        %v692 = vsub.f32 %v307, %v614
        %v693 = vsub.f32 %v308, %v614
        %v694 = vsub.f32 %v309, %v615
        %v695 = vsub.f32 %v310, %v615
        %v696 = vsub.f32 %v311, %v616
        %v697 = vsub.f32 %v312, %v616
        %v698 = vsub.f32 %v313, %v617
        %v699 = vsub.f32 %v314, %v617
        %v700 = vsub.f32 %v315, %v618
        %v701 = vsub.f32 %v316, %v618
        %v702 = vsub.f32 %v317, %v619
        %v703 = vsub.f32 %v318, %v619
        %v704 = vsub.f32 %v319, %v620
        %v705 = vsub.f32 %v320, %v620
        %v706 = vsub.f32 %v321, %v621
        %v707 = vsub.f32 %v322, %v621
        %v708 = vsub.f32 %v323, %v622
        %v709 = vsub.f32 %v324, %v622
        %v710 = vsub.f32 %v325, %v623
        %v711 = vsub.f32 %v326, %v623
        %v712 = vsub.f32 %v327, %v624
        %v713 = vsub.f32 %v328, %v624
        %v714 = vsub.f32 %v329, %v625
        %v715 = vsub.f32 %v330, %v625
        %v716 = vsub.f32 %v331, %v626
        %v717 = vsub.f32 %v332, %v626
        %v718 = vsub.f32 %v333, %v627
        %v719 = vsub.f32 %v334, %v627
        %v720 = vsub.f32 %v335, %v628
        %v721 = vsub.f32 %v336, %v628
        %v722 = vsub.f32 %v337, %v629
        %v723 = vsub.f32 %v338, %v629
        %v724 = vsub.f32 %v339, %v630
        %v725 = vsub.f32 %v340, %v630
        %v726 = vsub.f32 %v341, %v631
        %v727 = vsub.f32 %v342, %v631
        %v728 = vsub.f32 %v343, %v632
        %v729 = vsub.f32 %v344, %v632
        %v730 = vsub.f32 %v345, %v633
        %v731 = vsub.f32 %v346, %v633
        %v732 = vsub.f32 %v347, %v634
        %v733 = vsub.f32 %v348, %v634
        %v734 = vsub.f32 %v349, %v635
        %v735 = vsub.f32 %v350, %v635
        %v736 = vsub.f32 %v351, %v636
        %v737 = vsub.f32 %v352, %v636
        %v738 = vsub.f32 %v353, %v637
        %v739 = vsub.f32 %v354, %v637
        %v740 = vsub.f32 %v355, %v638
        %v741 = vsub.f32 %v356, %v638
        %v742 = vsub.f32 %v357, %v639
        %v743 = vsub.f32 %v358, %v639
        %v744 = vsub.f32 %v359, %v640
        %v745 = vsub.f32 %v360, %v640
        %v746 = vsub.f32 %v361, %v641
        %v747 = vsub.f32 %v362, %v641
        %v748 = vsub.f32 %v363, %v642
        %v749 = vsub.f32 %v364, %v642
        %v750 = vsub.f32 %v365, %v643
        %v751 = vsub.f32 %v366, %v643
        %v752 = vsub.f32 %v367, %v644
        %v753 = vsub.f32 %v368, %v644
        %v754 = vsub.f32 %v369, %v645
        %v755 = vsub.f32 %v370, %v645
        %v756 = vsub.f32 %v371, %v646
        %v757 = vsub.f32 %v372, %v646
        %v758 = vsub.f32 %v373, %v647
        %v759 = vsub.f32 %v374, %v647
        %v760 = vsub.f32 %v375, %v648
        %v761 = vsub.f32 %v376, %v648
        %v762 = vsub.f32 %v377, %v649
        %v763 = vsub.f32 %v378, %v649
        %v764 = vsub.f32 %v379, %v650
        %v765 = vsub.f32 %v380, %v650
        %v766 = vsub.f32 %v381, %v651
        %v767 = vsub.f32 %v382, %v651
        %v768 = vsub.f32 %v383, %v652
        %v769 = vsub.f32 %v384, %v652
        %v770 = vsub.f32 %v385, %v653
        %v771 = vsub.f32 %v386, %v653
        %v772 = vsub.f32 %v387, %v654
        %v773 = vsub.f32 %v388, %v654
        %v774 = vsub.f32 %v389, %v655
        %v775 = vsub.f32 %v390, %v655
        %v776 = vsub.f32 %v391, %v656
        %v777 = vsub.f32 %v392, %v656
        %v778 = vsub.f32 %v393, %v657
        %v779 = vsub.f32 %v394, %v657
        %v780 = vsub.f32 %v395, %v658
        %v781 = vsub.f32 %v396, %v658
        %v782 = vsub.f32 %v397, %v659
        %v783 = vsub.f32 %v398, %v659
        %v784 = vsub.f32 %v399, %v660
        %v785 = vsub.f32 %v400, %v660
        %v786 = vsub.f32 %v401, %v661
        %v787 = vsub.f32 %v402, %v661
        %v788 = vsub.f32 %v403, %v662
        %v789 = vsub.f32 %v404, %v662
        %v790 = vsub.f32 %v405, %v663
        %v791 = vsub.f32 %v406, %v663
        %v792 = vmul.f32 %v664, %v664
        %v793 = vmul.f32 %v665, %v665
        %v794 = vmul.f32 %v666, %v666
        %v795 = vmul.f32 %v667, %v667
        %v796 = vmul.f32 %v668, %v668
        %v797 = vmul.f32 %v669, %v669
        %v798 = vmul.f32 %v670, %v670
        %v799 = vmul.f32 %v671, %v671
        %v800 = vmul.f32 %v672, %v672
        %v801 = vmul.f32 %v673, %v673
        %v802 = vmul.f32 %v674, %v674
        %v803 = vmul.f32 %v675, %v675
        %v804 = vmul.f32 %v676, %v676
        %v805 = vmul.f32 %v677, %v677
        %v806 = vmul.f32 %v678, %v678
        %v807 = vmul.f32 %v679, %v679
        %v808 = vmul.f32 %v680, %v680
        %v809 = vmul.f32 %v681, %v681
        %v810 = vmul.f32 %v682, %v682
        %v811 = vmul.f32 %v683, %v683
        %v812 = vmul.f32 %v684, %v684
        %v813 = vmul.f32 %v685, %v685
        %v814 = vmul.f32 %v686, %v686
        %v815 = vmul.f32 %v687, %v687
        %v816 = vmul.f32 %v688, %v688
        %v817 = vmul.f32 %v689, %v689
        %v818 = vmul.f32 %v690, %v690
        %v819 = vmul.f32 %v691, %v691
        %v820 = vmul.f32 %v692, %v692
        %v821 = vmul.f32 %v693, %v693
        %v822 = vmul.f32 %v694, %v694
        %v823 = vmul.f32 %v695, %v695
        %v824 = vmul.f32 %v696, %v696
        %v825 = vmul.f32 %v697, %v697
        %v826 = vmul.f32 %v698, %v698
        %v827 = vmul.f32 %v699, %v699
        %v828 = vmul.f32 %v700, %v700
        %v829 = vmul.f32 %v701, %v701
        %v830 = vmul.f32 %v702, %v702
        %v831 = vmul.f32 %v703, %v703
        %v832 = vmul.f32 %v704, %v704
        %v833 = vmul.f32 %v705, %v705
        %v834 = vmul.f32 %v706, %v706
        %v835 = vmul.f32 %v707, %v707
        %v836 = vmul.f32 %v708, %v708
        %v837 = vmul.f32 %v709, %v709
        %v838 = vmul.f32 %v710, %v710
        %v839 = vmul.f32 %v711, %v711
        %v840 = vmul.f32 %v712, %v712
        %v841 = vmul.f32 %v713, %v713
        %v842 = vmul.f32 %v714, %v714
        %v843 = vmul.f32 %v715, %v715
        %v844 = vmul.f32 %v716, %v716
        %v845 = vmul.f32 %v717, %v717
        %v846 = vmul.f32 %v718, %v718
        %v847 = vmul.f32 %v719, %v719
        %v848 = vmul.f32 %v720, %v720
        %v849 = vmul.f32 %v721, %v721
        %v850 = vmul.f32 %v722, %v722
        %v851 = vmul.f32 %v723, %v723
        %v852 = vmul.f32 %v724, %v724
        %v853 = vmul.f32 %v725, %v725
        %v854 = vmul.f32 %v726, %v726
        %v855 = vmul.f32 %v727, %v727
        %v856 = vmul.f32 %v728, %v728
        %v857 = vmul.f32 %v729, %v729
        %v858 = vmul.f32 %v730, %v730
        %v859 = vmul.f32 %v731, %v731
        %v860 = vmul.f32 %v732, %v732
        %v861 = vmul.f32 %v733, %v733
        %v862 = vmul.f32 %v734, %v734
        %v863 = vmul.f32 %v735, %v735
        %v864 = vmul.f32 %v736, %v736
        %v865 = vmul.f32 %v737, %v737
        %v866 = vmul.f32 %v738, %v738
        %v867 = vmul.f32 %v739, %v739
        %v868 = vmul.f32 %v740, %v740
        %v869 = vmul.f32 %v741, %v741
        %v870 = vmul.f32 %v742, %v742
        %v871 = vmul.f32 %v743, %v743
        %v872 = vmul.f32 %v744, %v744
        %v873 = vmul.f32 %v745, %v745
        %v874 = vmul.f32 %v746, %v746
        %v875 = vmul.f32 %v747, %v747
        %v876 = vmul.f32 %v748, %v748
        %v877 = vmul.f32 %v749, %v749
        %v878 = vmul.f32 %v750, %v750
        %v879 = vmul.f32 %v751, %v751
        %v880 = vmul.f32 %v752, %v752
        %v881 = vmul.f32 %v753, %v753
        %v882 = vmul.f32 %v754, %v754
        %v883 = vmul.f32 %v755, %v755
        %v884 = vmul.f32 %v756, %v756
        %v885 = vmul.f32 %v757, %v757
        %v886 = vmul.f32 %v758, %v758
        %v887 = vmul.f32 %v759, %v759
        %v888 = vmul.f32 %v760, %v760
        %v889 = vmul.f32 %v761, %v761
        %v890 = vmul.f32 %v762, %v762
        %v891 = vmul.f32 %v763, %v763
        %v892 = vmul.f32 %v764, %v764
        %v893 = vmul.f32 %v765, %v765
        %v894 = vmul.f32 %v766, %v766
        %v895 = vmul.f32 %v767, %v767
        %v896 = vmul.f32 %v768, %v768
        %v897 = vmul.f32 %v769, %v769
        %v898 = vmul.f32 %v770, %v770
        %v899 = vmul.f32 %v771, %v771
        %v900 = vmul.f32 %v772, %v772
        %v901 = vmul.f32 %v773, %v773
        %v902 = vmul.f32 %v774, %v774
        %v903 = vmul.f32 %v775, %v775
        %v904 = vmul.f32 %v776, %v776
        %v905 = vmul.f32 %v777, %v777
        %v906 = vmul.f32 %v778, %v778
        %v907 = vmul.f32 %v779, %v779
        %v908 = vmul.f32 %v780, %v780
        %v909 = vmul.f32 %v781, %v781
        %v910 = vmul.f32 %v782, %v782
        %v911 = vmul.f32 %v783, %v783
        %v912 = vmul.f32 %v784, %v784
        %v913 = vmul.f32 %v785, %v785
        %v914 = vmul.f32 %v786, %v786
        %v915 = vmul.f32 %v787, %v787
        %v916 = vmul.f32 %v788, %v788
        %v917 = vmul.f32 %v789, %v789
        %v918 = vmul.f32 %v790, %v790
        %v919 = vmul.f32 %v791, %v791
        %v920 = vadd.f32 %v792, %v793
        %921 = vadd.xlane.f32.xlu0 %v920
        %v922 = vpop.xlane.xlu0 %921
        %v923 = vadd.f32 %v794, %v795
        %924 = vadd.xlane.f32.xlu0 %v923
        %v925 = vpop.xlane.xlu0 %924
        %v926 = vadd.f32 %v796, %v797
        %927 = vadd.xlane.f32.xlu0 %v926
        %v928 = vpop.xlane.xlu0 %927
        %v929 = vadd.f32 %v798, %v799
        %930 = vadd.xlane.f32.xlu0 %v929
        %v931 = vpop.xlane.xlu0 %930
        %v932 = vadd.f32 %v800, %v801
        %933 = vadd.xlane.f32.xlu0 %v932
        %v934 = vpop.xlane.xlu0 %933
        %v935 = vadd.f32 %v802, %v803
        %936 = vadd.xlane.f32.xlu0 %v935
        %v937 = vpop.xlane.xlu0 %936
        %v938 = vadd.f32 %v804, %v805
        %939 = vadd.xlane.f32.xlu0 %v938
        %v940 = vpop.xlane.xlu0 %939
        %v941 = vadd.f32 %v806, %v807
        %942 = vadd.xlane.f32.xlu0 %v941
        %v943 = vpop.xlane.xlu0 %942
        %v944 = vadd.f32 %v808, %v809
        %945 = vadd.xlane.f32.xlu0 %v944
        %v946 = vpop.xlane.xlu0 %945
        %v947 = vadd.f32 %v810, %v811
        %948 = vadd.xlane.f32.xlu0 %v947
        %v949 = vpop.xlane.xlu0 %948
        %v950 = vadd.f32 %v812, %v813
        %951 = vadd.xlane.f32.xlu0 %v950
        %v952 = vpop.xlane.xlu0 %951
        %v953 = vadd.f32 %v814, %v815
        %954 = vadd.xlane.f32.xlu0 %v953
        %v955 = vpop.xlane.xlu0 %954
        %v956 = vadd.f32 %v816, %v817
        %957 = vadd.xlane.f32.xlu0 %v956
        %v958 = vpop.xlane.xlu0 %957
        %v959 = vadd.f32 %v818, %v819
        %960 = vadd.xlane.f32.xlu0 %v959
        %v961 = vpop.xlane.xlu0 %960
        %v962 = vadd.f32 %v820, %v821
        %963 = vadd.xlane.f32.xlu0 %v962
        %v964 = vpop.xlane.xlu0 %963
        %v965 = vadd.f32 %v822, %v823
        %966 = vadd.xlane.f32.xlu0 %v965
        %v967 = vpop.xlane.xlu0 %966
        %v968 = vadd.f32 %v824, %v825
        %969 = vadd.xlane.f32.xlu0 %v968
        %v970 = vpop.xlane.xlu0 %969
        %v971 = vadd.f32 %v826, %v827
        %972 = vadd.xlane.f32.xlu0 %v971
        %v973 = vpop.xlane.xlu0 %972
        %v974 = vadd.f32 %v828, %v829
        %975 = vadd.xlane.f32.xlu0 %v974
        %v976 = vpop.xlane.xlu0 %975
        %v977 = vadd.f32 %v830, %v831
        %978 = vadd.xlane.f32.xlu0 %v977
        %v979 = vpop.xlane.xlu0 %978
        %v980 = vadd.f32 %v832, %v833
        %981 = vadd.xlane.f32.xlu0 %v980
        %v982 = vpop.xlane.xlu0 %981
        %v983 = vadd.f32 %v834, %v835
        %984 = vadd.xlane.f32.xlu0 %v983
        %v985 = vpop.xlane.xlu0 %984
        %v986 = vadd.f32 %v836, %v837
        %987 = vadd.xlane.f32.xlu0 %v986
        %v988 = vpop.xlane.xlu0 %987
        %v989 = vadd.f32 %v838, %v839
        %990 = vadd.xlane.f32.xlu0 %v989
        %v991 = vpop.xlane.xlu0 %990
        %v992 = vadd.f32 %v840, %v841
        %993 = vadd.xlane.f32.xlu0 %v992
        %v994 = vpop.xlane.xlu0 %993
        %v995 = vadd.f32 %v842, %v843
        %996 = vadd.xlane.f32.xlu0 %v995
        %v997 = vpop.xlane.xlu0 %996
        %v998 = vadd.f32 %v844, %v845
        %999 = vadd.xlane.f32.xlu0 %v998
        %v1000 = vpop.xlane.xlu0 %999
        %v1001 = vadd.f32 %v846, %v847
        %1002 = vadd.xlane.f32.xlu0 %v1001
        %v1003 = vpop.xlane.xlu0 %1002
        %v1004 = vadd.f32 %v848, %v849
        %1005 = vadd.xlane.f32.xlu0 %v1004
        %v1006 = vpop.xlane.xlu0 %1005
        %v1007 = vadd.f32 %v850, %v851
        %1008 = vadd.xlane.f32.xlu0 %v1007
        %v1009 = vpop.xlane.xlu0 %1008
        %v1010 = vadd.f32 %v852, %v853
        %1011 = vadd.xlane.f32.xlu0 %v1010
        %v1012 = vpop.xlane.xlu0 %1011
        %v1013 = vadd.f32 %v854, %v855
        %1014 = vadd.xlane.f32.xlu0 %v1013
        %v1015 = vpop.xlane.xlu0 %1014
        %v1016 = vadd.f32 %v856, %v857
        %1017 = vadd.xlane.f32.xlu0 %v1016
        %v1018 = vpop.xlane.xlu0 %1017
        %v1019 = vadd.f32 %v858, %v859
        %1020 = vadd.xlane.f32.xlu0 %v1019
        %v1021 = vpop.xlane.xlu0 %1020
        %v1022 = vadd.f32 %v860, %v861
        %1023 = vadd.xlane.f32.xlu0 %v1022
        %v1024 = vpop.xlane.xlu0 %1023
        %v1025 = vadd.f32 %v862, %v863
        %1026 = vadd.xlane.f32.xlu0 %v1025
        %v1027 = vpop.xlane.xlu0 %1026
        %v1028 = vadd.f32 %v864, %v865
        %1029 = vadd.xlane.f32.xlu0 %v1028
        %v1030 = vpop.xlane.xlu0 %1029
        %v1031 = vadd.f32 %v866, %v867
        %1032 = vadd.xlane.f32.xlu0 %v1031
        %v1033 = vpop.xlane.xlu0 %1032
        %v1034 = vadd.f32 %v868, %v869
        %1035 = vadd.xlane.f32.xlu0 %v1034
        %v1036 = vpop.xlane.xlu0 %1035
        %v1037 = vadd.f32 %v870, %v871
        %1038 = vadd.xlane.f32.xlu0 %v1037
        %v1039 = vpop.xlane.xlu0 %1038
        %v1040 = vadd.f32 %v872, %v873
        %1041 = vadd.xlane.f32.xlu0 %v1040
        %v1042 = vpop.xlane.xlu0 %1041
        %v1043 = vadd.f32 %v874, %v875
        %1044 = vadd.xlane.f32.xlu0 %v1043
        %v1045 = vpop.xlane.xlu0 %1044
        %v1046 = vadd.f32 %v876, %v877
        %1047 = vadd.xlane.f32.xlu0 %v1046
        %v1048 = vpop.xlane.xlu0 %1047
        %v1049 = vadd.f32 %v878, %v879
        %1050 = vadd.xlane.f32.xlu0 %v1049
        %v1051 = vpop.xlane.xlu0 %1050
        %v1052 = vadd.f32 %v880, %v881
        %1053 = vadd.xlane.f32.xlu0 %v1052
        %v1054 = vpop.xlane.xlu0 %1053
        %v1055 = vadd.f32 %v882, %v883
        %1056 = vadd.xlane.f32.xlu0 %v1055
        %v1057 = vpop.xlane.xlu0 %1056
        %v1058 = vadd.f32 %v884, %v885
        %1059 = vadd.xlane.f32.xlu0 %v1058
        %v1060 = vpop.xlane.xlu0 %1059
        %v1061 = vadd.f32 %v886, %v887
        %1062 = vadd.xlane.f32.xlu0 %v1061
        %v1063 = vpop.xlane.xlu0 %1062
        %v1064 = vadd.f32 %v888, %v889
        %1065 = vadd.xlane.f32.xlu0 %v1064
        %v1066 = vpop.xlane.xlu0 %1065
        %v1067 = vadd.f32 %v890, %v891
        %1068 = vadd.xlane.f32.xlu0 %v1067
        %v1069 = vpop.xlane.xlu0 %1068
        %v1070 = vadd.f32 %v892, %v893
        %1071 = vadd.xlane.f32.xlu0 %v1070
        %v1072 = vpop.xlane.xlu0 %1071
        %v1073 = vadd.f32 %v894, %v895
        %1074 = vadd.xlane.f32.xlu0 %v1073
        %v1075 = vpop.xlane.xlu0 %1074
        %v1076 = vadd.f32 %v896, %v897
        %1077 = vadd.xlane.f32.xlu0 %v1076
        %v1078 = vpop.xlane.xlu0 %1077
        %v1079 = vadd.f32 %v898, %v899
        %1080 = vadd.xlane.f32.xlu0 %v1079
        %v1081 = vpop.xlane.xlu0 %1080
        %v1082 = vadd.f32 %v900, %v901
        %1083 = vadd.xlane.f32.xlu0 %v1082
        %v1084 = vpop.xlane.xlu0 %1083
        %v1085 = vadd.f32 %v902, %v903
        %1086 = vadd.xlane.f32.xlu0 %v1085
        %v1087 = vpop.xlane.xlu0 %1086
        %v1088 = vadd.f32 %v904, %v905
        %1089 = vadd.xlane.f32.xlu0 %v1088
        %v1090 = vpop.xlane.xlu0 %1089
        %v1091 = vadd.f32 %v906, %v907
        %1092 = vadd.xlane.f32.xlu0 %v1091
        %v1093 = vpop.xlane.xlu0 %1092
        %v1094 = vadd.f32 %v908, %v909
        %1095 = vadd.xlane.f32.xlu0 %v1094
        %v1096 = vpop.xlane.xlu0 %1095
        %v1097 = vadd.f32 %v910, %v911
        %1098 = vadd.xlane.f32.xlu0 %v1097
        %v1099 = vpop.xlane.xlu0 %1098
        %v1100 = vadd.f32 %v912, %v913
        %1101 = vadd.xlane.f32.xlu0 %v1100
        %v1102 = vpop.xlane.xlu0 %1101
        %v1103 = vadd.f32 %v914, %v915
        %1104 = vadd.xlane.f32.xlu0 %v1103
        %v1105 = vpop.xlane.xlu0 %1104
        %v1106 = vadd.f32 %v916, %v917
        %1107 = vadd.xlane.f32.xlu0 %v1106
        %v1108 = vpop.xlane.xlu0 %1107
        %v1109 = vadd.f32 %v918, %v919
        %1110 = vadd.xlane.f32.xlu0 %v1109
        %v1111 = vpop.xlane.xlu0 %1110
        %v1112 = vmul.f32 %v922, %v599
        %v1113 = vmul.f32 %v925, %v599
        %v1114 = vmul.f32 %v928, %v599
        %v1115 = vmul.f32 %v931, %v599
        %v1116 = vmul.f32 %v934, %v599
        %v1117 = vmul.f32 %v937, %v599
        %v1118 = vmul.f32 %v940, %v599
        %v1119 = vmul.f32 %v943, %v599
        %v1120 = vmul.f32 %v946, %v599
        %v1121 = vmul.f32 %v949, %v599
        %v1122 = vmul.f32 %v952, %v599
        %v1123 = vmul.f32 %v955, %v599
        %v1124 = vmul.f32 %v958, %v599
        %v1125 = vmul.f32 %v961, %v599
        %v1126 = vmul.f32 %v964, %v599
        %v1127 = vmul.f32 %v967, %v599
        %v1128 = vmul.f32 %v970, %v599
        %v1129 = vmul.f32 %v973, %v599
        %v1130 = vmul.f32 %v976, %v599
        %v1131 = vmul.f32 %v979, %v599
        %v1132 = vmul.f32 %v982, %v599
        %v1133 = vmul.f32 %v985, %v599
        %v1134 = vmul.f32 %v988, %v599
        %v1135 = vmul.f32 %v991, %v599
        %v1136 = vmul.f32 %v994, %v599
        %v1137 = vmul.f32 %v997, %v599
        %v1138 = vmul.f32 %v1000, %v599
        %v1139 = vmul.f32 %v1003, %v599
        %v1140 = vmul.f32 %v1006, %v599
        %v1141 = vmul.f32 %v1009, %v599
        %v1142 = vmul.f32 %v1012, %v599
        %v1143 = vmul.f32 %v1015, %v599
        %v1144 = vmul.f32 %v1018, %v599
        %v1145 = vmul.f32 %v1021, %v599
        %v1146 = vmul.f32 %v1024, %v599
        %v1147 = vmul.f32 %v1027, %v599
        %v1148 = vmul.f32 %v1030, %v599
        %v1149 = vmul.f32 %v1033, %v599
        %v1150 = vmul.f32 %v1036, %v599
        %v1151 = vmul.f32 %v1039, %v599
        %v1152 = vmul.f32 %v1042, %v599
        %v1153 = vmul.f32 %v1045, %v599
        %v1154 = vmul.f32 %v1048, %v599
        %v1155 = vmul.f32 %v1051, %v599
        %v1156 = vmul.f32 %v1054, %v599
        %v1157 = vmul.f32 %v1057, %v599
        %v1158 = vmul.f32 %v1060, %v599
        %v1159 = vmul.f32 %v1063, %v599
        %v1160 = vmul.f32 %v1066, %v599
        %v1161 = vmul.f32 %v1069, %v599
        %v1162 = vmul.f32 %v1072, %v599
        %v1163 = vmul.f32 %v1075, %v599
        %v1164 = vmul.f32 %v1078, %v599
        %v1165 = vmul.f32 %v1081, %v599
        %v1166 = vmul.f32 %v1084, %v599
        %v1167 = vmul.f32 %v1087, %v599
        %v1168 = vmul.f32 %v1090, %v599
        %v1169 = vmul.f32 %v1093, %v599
        %v1170 = vmul.f32 %v1096, %v599
        %v1171 = vmul.f32 %v1099, %v599
        %v1172 = vmul.f32 %v1102, %v599
        %v1173 = vmul.f32 %v1105, %v599
        %v1174 = vmul.f32 %v1108, %v599
        %v1175 = vmul.f32 %v1111, %v599
        %v1176 = vadd.f32 %v1112, 1e-05
        %v1177 = vadd.f32 %v1113, 1e-05
        %v1178 = vadd.f32 %v1114, 1e-05
        %v1179 = vadd.f32 %v1115, 1e-05
        %v1180 = vadd.f32 %v1116, 1e-05
        %v1181 = vadd.f32 %v1117, 1e-05
        %v1182 = vadd.f32 %v1118, 1e-05
        %v1183 = vadd.f32 %v1119, 1e-05
        %v1184 = vadd.f32 %v1120, 1e-05
        %v1185 = vadd.f32 %v1121, 1e-05
        %v1186 = vadd.f32 %v1122, 1e-05
        %v1187 = vadd.f32 %v1123, 1e-05
        %v1188 = vadd.f32 %v1124, 1e-05
        %v1189 = vadd.f32 %v1125, 1e-05
        %v1190 = vadd.f32 %v1126, 1e-05
        %v1191 = vadd.f32 %v1127, 1e-05
        %v1192 = vadd.f32 %v1128, 1e-05
        %v1193 = vadd.f32 %v1129, 1e-05
        %v1194 = vadd.f32 %v1130, 1e-05
        %v1195 = vadd.f32 %v1131, 1e-05
        %v1196 = vadd.f32 %v1132, 1e-05
        %v1197 = vadd.f32 %v1133, 1e-05
        %v1198 = vadd.f32 %v1134, 1e-05
        %v1199 = vadd.f32 %v1135, 1e-05
        %v1200 = vadd.f32 %v1136, 1e-05
        %v1201 = vadd.f32 %v1137, 1e-05
        %v1202 = vadd.f32 %v1138, 1e-05
        %v1203 = vadd.f32 %v1139, 1e-05
        %v1204 = vadd.f32 %v1140, 1e-05
        %v1205 = vadd.f32 %v1141, 1e-05
        %v1206 = vadd.f32 %v1142, 1e-05
        %v1207 = vadd.f32 %v1143, 1e-05
        %v1208 = vadd.f32 %v1144, 1e-05
        %v1209 = vadd.f32 %v1145, 1e-05
        %v1210 = vadd.f32 %v1146, 1e-05
        %v1211 = vadd.f32 %v1147, 1e-05
        %v1212 = vadd.f32 %v1148, 1e-05
        %v1213 = vadd.f32 %v1149, 1e-05
        %v1214 = vadd.f32 %v1150, 1e-05
        %v1215 = vadd.f32 %v1151, 1e-05
        %v1216 = vadd.f32 %v1152, 1e-05
        %v1217 = vadd.f32 %v1153, 1e-05
        %v1218 = vadd.f32 %v1154, 1e-05
        %v1219 = vadd.f32 %v1155, 1e-05
        %v1220 = vadd.f32 %v1156, 1e-05
        %v1221 = vadd.f32 %v1157, 1e-05
        %v1222 = vadd.f32 %v1158, 1e-05
        %v1223 = vadd.f32 %v1159, 1e-05
        %v1224 = vadd.f32 %v1160, 1e-05
        %v1225 = vadd.f32 %v1161, 1e-05
        %v1226 = vadd.f32 %v1162, 1e-05
        %v1227 = vadd.f32 %v1163, 1e-05
        %v1228 = vadd.f32 %v1164, 1e-05
        %v1229 = vadd.f32 %v1165, 1e-05
        %v1230 = vadd.f32 %v1166, 1e-05
        %v1231 = vadd.f32 %v1167, 1e-05
        %v1232 = vadd.f32 %v1168, 1e-05
        %v1233 = vadd.f32 %v1169, 1e-05
        %v1234 = vadd.f32 %v1170, 1e-05
        %v1235 = vadd.f32 %v1171, 1e-05
        %v1236 = vadd.f32 %v1172, 1e-05
        %v1237 = vadd.f32 %v1173, 1e-05
        %v1238 = vadd.f32 %v1174, 1e-05
        %v1239 = vadd.f32 %v1175, 1e-05
        %v1240 = vrsqrt.pop %v1176
        %v1241 = vrsqrt.pop %v1177
        %v1242 = vrsqrt.pop %v1178
        %v1243 = vrsqrt.pop %v1179
        %v1244 = vrsqrt.pop %v1180
        %v1245 = vrsqrt.pop %v1181
        %v1246 = vrsqrt.pop %v1182
        %v1247 = vrsqrt.pop %v1183
        %v1248 = vrsqrt.pop %v1184
        %v1249 = vrsqrt.pop %v1185
        %v1250 = vrsqrt.pop %v1186
        %v1251 = vrsqrt.pop %v1187
        %v1252 = vrsqrt.pop %v1188
        %v1253 = vrsqrt.pop %v1189
        %v1254 = vrsqrt.pop %v1190
        %v1255 = vrsqrt.pop %v1191
        %v1256 = vrsqrt.pop %v1192
        %v1257 = vrsqrt.pop %v1193
        %v1258 = vrsqrt.pop %v1194
        %v1259 = vrsqrt.pop %v1195
        %v1260 = vrsqrt.pop %v1196
        %v1261 = vrsqrt.pop %v1197
        %v1262 = vrsqrt.pop %v1198
        %v1263 = vrsqrt.pop %v1199
        %v1264 = vrsqrt.pop %v1200
        %v1265 = vrsqrt.pop %v1201
        %v1266 = vrsqrt.pop %v1202
        %v1267 = vrsqrt.pop %v1203
        %v1268 = vrsqrt.pop %v1204
        %v1269 = vrsqrt.pop %v1205
        %v1270 = vrsqrt.pop %v1206
        %v1271 = vrsqrt.pop %v1207
        %v1272 = vrsqrt.pop %v1208
        %v1273 = vrsqrt.pop %v1209
        %v1274 = vrsqrt.pop %v1210
        %v1275 = vrsqrt.pop %v1211
        %v1276 = vrsqrt.pop %v1212
        %v1277 = vrsqrt.pop %v1213
        %v1278 = vrsqrt.pop %v1214
        %v1279 = vrsqrt.pop %v1215
        %v1280 = vrsqrt.pop %v1216
        %v1281 = vrsqrt.pop %v1217
        %v1282 = vrsqrt.pop %v1218
        %v1283 = vrsqrt.pop %v1219
        %v1284 = vrsqrt.pop %v1220
        %v1285 = vrsqrt.pop %v1221
        %v1286 = vrsqrt.pop %v1222
        %v1287 = vrsqrt.pop %v1223
        %v1288 = vrsqrt.pop %v1224
        %v1289 = vrsqrt.pop %v1225
        %v1290 = vrsqrt.pop %v1226
        %v1291 = vrsqrt.pop %v1227
        %v1292 = vrsqrt.pop %v1228
        %v1293 = vrsqrt.pop %v1229
        %v1294 = vrsqrt.pop %v1230
        %v1295 = vrsqrt.pop %v1231
        %v1296 = vrsqrt.pop %v1232
        %v1297 = vrsqrt.pop %v1233
        %v1298 = vrsqrt.pop %v1234
        %v1299 = vrsqrt.pop %v1235
        %v1300 = vrsqrt.pop %v1236
        %v1301 = vrsqrt.pop %v1237
        %v1302 = vrsqrt.pop %v1238
        %v1303 = vrsqrt.pop %v1239
        %v1304 = vmul.f32 %v664, %v1240
        %v1305 = vmul.f32 %v665, %v1240
        %v1306 = vmul.f32 %v666, %v1241
        %v1307 = vmul.f32 %v667, %v1241
        %v1308 = vmul.f32 %v668, %v1242
        %v1309 = vmul.f32 %v669, %v1242
        %v1310 = vmul.f32 %v670, %v1243
        %v1311 = vmul.f32 %v671, %v1243
        %v1312 = vmul.f32 %v672, %v1244
        %v1313 = vmul.f32 %v673, %v1244
        %v1314 = vmul.f32 %v674, %v1245
        %v1315 = vmul.f32 %v675, %v1245
        %v1316 = vmul.f32 %v676, %v1246
        %v1317 = vmul.f32 %v677, %v1246
        %v1318 = vmul.f32 %v678, %v1247
        %v1319 = vmul.f32 %v679, %v1247
        %v1320 = vmul.f32 %v680, %v1248
        %v1321 = vmul.f32 %v681, %v1248
        %v1322 = vmul.f32 %v682, %v1249
        %v1323 = vmul.f32 %v683, %v1249
        %v1324 = vmul.f32 %v684, %v1250
        %v1325 = vmul.f32 %v685, %v1250
        %v1326 = vmul.f32 %v686, %v1251
        %v1327 = vmul.f32 %v687, %v1251
        %v1328 = vmul.f32 %v688, %v1252
        %v1329 = vmul.f32 %v689, %v1252
        %v1330 = vmul.f32 %v690, %v1253
        %v1331 = vmul.f32 %v691, %v1253
        %v1332 = vmul.f32 %v692, %v1254
        %v1333 = vmul.f32 %v693, %v1254
        %v1334 = vmul.f32 %v694, %v1255
        %v1335 = vmul.f32 %v695, %v1255
        %v1336 = vmul.f32 %v696, %v1256
        %v1337 = vmul.f32 %v697, %v1256
        %v1338 = vmul.f32 %v698, %v1257
        %v1339 = vmul.f32 %v699, %v1257
        %v1340 = vmul.f32 %v700, %v1258
        %v1341 = vmul.f32 %v701, %v1258
        %v1342 = vmul.f32 %v702, %v1259
        %v1343 = vmul.f32 %v703, %v1259
        %v1344 = vmul.f32 %v704, %v1260
        %v1345 = vmul.f32 %v705, %v1260
        %v1346 = vmul.f32 %v706, %v1261
        %v1347 = vmul.f32 %v707, %v1261
        %v1348 = vmul.f32 %v708, %v1262
        %v1349 = vmul.f32 %v709, %v1262
        %v1350 = vmul.f32 %v710, %v1263
        %v1351 = vmul.f32 %v711, %v1263
        %v1352 = vmul.f32 %v712, %v1264
        %v1353 = vmul.f32 %v713, %v1264
        %v1354 = vmul.f32 %v714, %v1265
        %v1355 = vmul.f32 %v715, %v1265
        %v1356 = vmul.f32 %v716, %v1266
        %v1357 = vmul.f32 %v717, %v1266
        %v1358 = vmul.f32 %v718, %v1267
        %v1359 = vmul.f32 %v719, %v1267
        %v1360 = vmul.f32 %v720, %v1268
        %v1361 = vmul.f32 %v721, %v1268
        %v1362 = vmul.f32 %v722, %v1269
        %v1363 = vmul.f32 %v723, %v1269
        %v1364 = vmul.f32 %v724, %v1270
        %v1365 = vmul.f32 %v725, %v1270
        %v1366 = vmul.f32 %v726, %v1271
        %v1367 = vmul.f32 %v727, %v1271
        %v1368 = vmul.f32 %v728, %v1272
        %v1369 = vmul.f32 %v729, %v1272
        %v1370 = vmul.f32 %v730, %v1273
        %v1371 = vmul.f32 %v731, %v1273
        %v1372 = vmul.f32 %v732, %v1274
        %v1373 = vmul.f32 %v733, %v1274
        %v1374 = vmul.f32 %v734, %v1275
        %v1375 = vmul.f32 %v735, %v1275
        %v1376 = vmul.f32 %v736, %v1276
        %v1377 = vmul.f32 %v737, %v1276
        %v1378 = vmul.f32 %v738, %v1277
        %v1379 = vmul.f32 %v739, %v1277
        %v1380 = vmul.f32 %v740, %v1278
        %v1381 = vmul.f32 %v741, %v1278
        %v1382 = vmul.f32 %v742, %v1279
        %v1383 = vmul.f32 %v743, %v1279
        %v1384 = vmul.f32 %v744, %v1280
        %v1385 = vmul.f32 %v745, %v1280
        %v1386 = vmul.f32 %v746, %v1281
        %v1387 = vmul.f32 %v747, %v1281
        %v1388 = vmul.f32 %v748, %v1282
        %v1389 = vmul.f32 %v749, %v1282
        %v1390 = vmul.f32 %v750, %v1283
        %v1391 = vmul.f32 %v751, %v1283
        %v1392 = vmul.f32 %v752, %v1284
        %v1393 = vmul.f32 %v753, %v1284
        %v1394 = vmul.f32 %v754, %v1285
        %v1395 = vmul.f32 %v755, %v1285
        %v1396 = vmul.f32 %v756, %v1286
        %v1397 = vmul.f32 %v757, %v1286
        %v1398 = vmul.f32 %v758, %v1287
        %v1399 = vmul.f32 %v759, %v1287
        %v1400 = vmul.f32 %v760, %v1288
        %v1401 = vmul.f32 %v761, %v1288
        %v1402 = vmul.f32 %v762, %v1289
        %v1403 = vmul.f32 %v763, %v1289
        %v1404 = vmul.f32 %v764, %v1290
        %v1405 = vmul.f32 %v765, %v1290
        %v1406 = vmul.f32 %v766, %v1291
        %v1407 = vmul.f32 %v767, %v1291
        %v1408 = vmul.f32 %v768, %v1292
        %v1409 = vmul.f32 %v769, %v1292
        %v1410 = vmul.f32 %v770, %v1293
        %v1411 = vmul.f32 %v771, %v1293
        %v1412 = vmul.f32 %v772, %v1294
        %v1413 = vmul.f32 %v773, %v1294
        %v1414 = vmul.f32 %v774, %v1295
        %v1415 = vmul.f32 %v775, %v1295
        %v1416 = vmul.f32 %v776, %v1296
        %v1417 = vmul.f32 %v777, %v1296
        %v1418 = vmul.f32 %v778, %v1297
        %v1419 = vmul.f32 %v779, %v1297
        %v1420 = vmul.f32 %v780, %v1298
        %v1421 = vmul.f32 %v781, %v1298
        %v1422 = vmul.f32 %v782, %v1299
        %v1423 = vmul.f32 %v783, %v1299
        %v1424 = vmul.f32 %v784, %v1300
        %v1425 = vmul.f32 %v785, %v1300
        %v1426 = vmul.f32 %v786, %v1301
        %v1427 = vmul.f32 %v787, %v1301
        %v1428 = vmul.f32 %v788, %v1302
        %v1429 = vmul.f32 %v789, %v1302
        %v1430 = vmul.f32 %v790, %v1303
        %v1431 = vmul.f32 %v791, %v1303
        %v1432 = vpack.c.bf16 %v1306, %v1304
        %v1433 = vpack.c.bf16 %v1307, %v1305
        %v1434 = vpack.c.bf16 %v1310, %v1308
        %v1435 = vpack.c.bf16 %v1311, %v1309
        %v1436 = vpack.c.bf16 %v1314, %v1312
        %v1437 = vpack.c.bf16 %v1315, %v1313
        %v1438 = vpack.c.bf16 %v1318, %v1316
        %v1439 = vpack.c.bf16 %v1319, %v1317
        %v1440 = vpack.c.bf16 %v1322, %v1320
        %v1441 = vpack.c.bf16 %v1323, %v1321
        %v1442 = vpack.c.bf16 %v1326, %v1324
        %v1443 = vpack.c.bf16 %v1327, %v1325
        %v1444 = vpack.c.bf16 %v1330, %v1328
        %v1445 = vpack.c.bf16 %v1331, %v1329
        %v1446 = vpack.c.bf16 %v1334, %v1332
        %v1447 = vpack.c.bf16 %v1335, %v1333
        %v1448 = vpack.c.bf16 %v1338, %v1336
        %v1449 = vpack.c.bf16 %v1339, %v1337
        %v1450 = vpack.c.bf16 %v1342, %v1340
        %v1451 = vpack.c.bf16 %v1343, %v1341
        %v1452 = vpack.c.bf16 %v1346, %v1344
        %v1453 = vpack.c.bf16 %v1347, %v1345
        %v1454 = vpack.c.bf16 %v1350, %v1348
        %v1455 = vpack.c.bf16 %v1351, %v1349
        %v1456 = vpack.c.bf16 %v1354, %v1352
        %v1457 = vpack.c.bf16 %v1355, %v1353
        %v1458 = vpack.c.bf16 %v1358, %v1356
        %v1459 = vpack.c.bf16 %v1359, %v1357
        %v1460 = vpack.c.bf16 %v1362, %v1360
        %v1461 = vpack.c.bf16 %v1363, %v1361
        %v1462 = vpack.c.bf16 %v1366, %v1364
        %v1463 = vpack.c.bf16 %v1367, %v1365
        %v1464 = vpack.c.bf16 %v1370, %v1368
        %v1465 = vpack.c.bf16 %v1371, %v1369
        %v1466 = vpack.c.bf16 %v1374, %v1372
        %v1467 = vpack.c.bf16 %v1375, %v1373
        %v1468 = vpack.c.bf16 %v1378, %v1376
        %v1469 = vpack.c.bf16 %v1379, %v1377
        %v1470 = vpack.c.bf16 %v1382, %v1380
        %v1471 = vpack.c.bf16 %v1383, %v1381
        %v1472 = vpack.c.bf16 %v1386, %v1384
        %v1473 = vpack.c.bf16 %v1387, %v1385
        %v1474 = vpack.c.bf16 %v1390, %v1388
        %v1475 = vpack.c.bf16 %v1391, %v1389
        %v1476 = vpack.c.bf16 %v1394, %v1392
        %v1477 = vpack.c.bf16 %v1395, %v1393
        %v1478 = vpack.c.bf16 %v1398, %v1396
        %v1479 = vpack.c.bf16 %v1399, %v1397
        %v1480 = vpack.c.bf16 %v1402, %v1400
        %v1481 = vpack.c.bf16 %v1403, %v1401
        %v1482 = vpack.c.bf16 %v1406, %v1404
        %v1483 = vpack.c.bf16 %v1407, %v1405
        %v1484 = vpack.c.bf16 %v1410, %v1408
        %v1485 = vpack.c.bf16 %v1411, %v1409
        %v1486 = vpack.c.bf16 %v1414, %v1412
        %v1487 = vpack.c.bf16 %v1415, %v1413
        %v1488 = vpack.c.bf16 %v1418, %v1416
        %v1489 = vpack.c.bf16 %v1419, %v1417
        %v1490 = vpack.c.bf16 %v1422, %v1420
        %v1491 = vpack.c.bf16 %v1423, %v1421
        %v1492 = vpack.c.bf16 %v1426, %v1424
        %v1493 = vpack.c.bf16 %v1427, %v1425
        %v1494 = vpack.c.bf16 %v1430, %v1428
        %v1495 = vpack.c.bf16 %v1431, %v1429
        %v1496 = vld [vmem:[#allocation5] sm:$0xff]
        %v1497 = vld [vmem:[#allocation5 + $0x8] sm:$0xff]
        %v1498 = vld [vmem:[#allocation5 + $0x10] sm:$0xff]
        %v1499 = vld [vmem:[#allocation5 + $0x18] sm:$0xff]
        %v1500 = vld [vmem:[#allocation5 + $0x20] sm:$0xff]
        %v1501 = vld [vmem:[#allocation5 + $0x28] sm:$0xff]
        %v1502 = vld [vmem:[#allocation5 + $0x30] sm:$0xff]
        %v1503 = vld [vmem:[#allocation5 + $0x38] sm:$0xff]
        %v1504 = vld [vmem:[#allocation5 + $0x40] sm:$0xff]
        %v1505 = vld [vmem:[#allocation5 + $0x48] sm:$0xff]
        %v1506 = vld [vmem:[#allocation5 + $0x50] sm:$0xff]
        %v1507 = vld [vmem:[#allocation5 + $0x58] sm:$0xff]
        %v1508 = vld [vmem:[#allocation5 + $0x60] sm:$0xff]
        %v1509 = vld [vmem:[#allocation5 + $0x68] sm:$0xff]
        %v1510 = vld [vmem:[#allocation5 + $0x70] sm:$0xff]
        %v1511 = vld [vmem:[#allocation5 + $0x78] sm:$0xff]
        %v1512 = vld [vmem:[#allocation5 + $0x80] sm:$0xff]
        %v1513 = vld [vmem:[#allocation5 + $0x88] sm:$0xff]
        %v1514 = vld [vmem:[#allocation5 + $0x90] sm:$0xff]
        %v1515 = vld [vmem:[#allocation5 + $0x98] sm:$0xff]
        %v1516 = vld [vmem:[#allocation5 + $0xa0] sm:$0xff]
        %v1517 = vld [vmem:[#allocation5 + $0xa8] sm:$0xff]
        %v1518 = vld [vmem:[#allocation5 + $0xb0] sm:$0xff]
        %v1519 = vld [vmem:[#allocation5 + $0xb8] sm:$0xff]
        %v1520 = vld [vmem:[#allocation5 + $0xc0] sm:$0xff]
        %v1521 = vld [vmem:[#allocation5 + $0xc8] sm:$0xff]
        %v1522 = vld [vmem:[#allocation5 + $0xd0] sm:$0xff]
        %v1523 = vld [vmem:[#allocation5 + $0xd8] sm:$0xff]
        %v1524 = vld [vmem:[#allocation5 + $0xe0] sm:$0xff]
        %v1525 = vld [vmem:[#allocation5 + $0xe8] sm:$0xff]
        %v1526 = vld [vmem:[#allocation5 + $0xf0] sm:$0xff]
        %v1527 = vld [vmem:[#allocation5 + $0xf8] sm:$0xff]
        %v1528 = vld [vmem:[#allocation5 + $0x100] sm:$0xff]
        %v1529 = vld [vmem:[#allocation5 + $0x108] sm:$0xff]
        %v1530 = vld [vmem:[#allocation5 + $0x110] sm:$0xff]
        %v1531 = vld [vmem:[#allocation5 + $0x118] sm:$0xff]
        %v1532 = vld [vmem:[#allocation5 + $0x120] sm:$0xff]
        %v1533 = vld [vmem:[#allocation5 + $0x128] sm:$0xff]
        %v1534 = vld [vmem:[#allocation5 + $0x130] sm:$0xff]
        %v1535 = vld [vmem:[#allocation5 + $0x138] sm:$0xff]
        %v1536 = vld [vmem:[#allocation5 + $0x140] sm:$0xff]
        %v1537 = vld [vmem:[#allocation5 + $0x148] sm:$0xff]
        %v1538 = vld [vmem:[#allocation5 + $0x150] sm:$0xff]
        %v1539 = vld [vmem:[#allocation5 + $0x158] sm:$0xff]
        %v1540 = vld [vmem:[#allocation5 + $0x160] sm:$0xff]
        %v1541 = vld [vmem:[#allocation5 + $0x168] sm:$0xff]
        %v1542 = vld [vmem:[#allocation5 + $0x170] sm:$0xff]
        %v1543 = vld [vmem:[#allocation5 + $0x178] sm:$0xff]
        %v1544 = vld [vmem:[#allocation5 + $0x180] sm:$0xff]
        %v1545 = vld [vmem:[#allocation5 + $0x188] sm:$0xff]
        %v1546 = vld [vmem:[#allocation5 + $0x190] sm:$0xff]
        %v1547 = vld [vmem:[#allocation5 + $0x198] sm:$0xff]
        %v1548 = vld [vmem:[#allocation5 + $0x1a0] sm:$0xff]
        %v1549 = vld [vmem:[#allocation5 + $0x1a8] sm:$0xff]
        %v1550 = vld [vmem:[#allocation5 + $0x1b0] sm:$0xff]
        %v1551 = vld [vmem:[#allocation5 + $0x1b8] sm:$0xff]
        %v1552 = vld [vmem:[#allocation5 + $0x1c0] sm:$0xff]
        %v1553 = vld [vmem:[#allocation5 + $0x1c8] sm:$0xff]
        %v1554 = vld [vmem:[#allocation5 + $0x1d0] sm:$0xff]
        %v1555 = vld [vmem:[#allocation5 + $0x1d8] sm:$0xff]
        %v1556 = vld [vmem:[#allocation5 + $0x1e0] sm:$0xff]
        %v1557 = vld [vmem:[#allocation5 + $0x1e8] sm:$0xff]
        %v1558 = vld [vmem:[#allocation5 + $0x1f0] sm:$0xff]
        %v1559 = vld [vmem:[#allocation5 + $0x1f8] sm:$0xff]
        %v1560 = vld [vmem:[%s2] sm:$0xf]
        %v1562 = vlaneseq
        %v1563 = vshrl.u32 %v1562, 7
        %v1564 = vsub.s32 0, %v1563
        %v1565 = vrot.slane %v1560, %v1564
        %v1566 = vlaneseq
        %v1567 = vshrl.u32 %v1566, 7
        %v1568 = vsub.s32 1, %v1567
        %v1569 = vrot.slane %v1560, %v1568
        %v1570 = vlaneseq
        %v1571 = vshrl.u32 %v1570, 7
        %v1572 = vsub.s32 2, %v1571
        %v1573 = vrot.slane %v1560, %v1572
        %v1574 = vlaneseq
        %v1575 = vshrl.u32 %v1574, 7
        %v1576 = vsub.s32 3, %v1575
        %v1577 = vrot.slane %v1560, %v1576
        %v1646 = vunpack.c.l.b16 %v1496
        %v1647 = vunpack.c.h.b16 %v1496
        %v1648 = vunpack.c.l.b16 %v1497
        %v1649 = vunpack.c.h.b16 %v1497
        %v1650 = vunpack.c.l.b16 %v1498
        %v1651 = vunpack.c.h.b16 %v1498
        %v1652 = vunpack.c.l.b16 %v1499
        %v1653 = vunpack.c.h.b16 %v1499
        %v1654 = vunpack.c.l.b16 %v1500
        %v1655 = vunpack.c.h.b16 %v1500
        %v1656 = vunpack.c.l.b16 %v1501
        %v1657 = vunpack.c.h.b16 %v1501
        %v1658 = vunpack.c.l.b16 %v1502
        %v1659 = vunpack.c.h.b16 %v1502
        %v1660 = vunpack.c.l.b16 %v1503
        %v1661 = vunpack.c.h.b16 %v1503
        %v1662 = vunpack.c.l.b16 %v1504
        %v1663 = vunpack.c.h.b16 %v1504
        %v1664 = vunpack.c.l.b16 %v1505
        %v1665 = vunpack.c.h.b16 %v1505
        %v1666 = vunpack.c.l.b16 %v1506
        %v1667 = vunpack.c.h.b16 %v1506
        %v1668 = vunpack.c.l.b16 %v1507
        %v1669 = vunpack.c.h.b16 %v1507
        %v1670 = vunpack.c.l.b16 %v1508
        %v1671 = vunpack.c.h.b16 %v1508
        %v1672 = vunpack.c.l.b16 %v1509
        %v1673 = vunpack.c.h.b16 %v1509
        %v1674 = vunpack.c.l.b16 %v1510
        %v1675 = vunpack.c.h.b16 %v1510
        %v1676 = vunpack.c.l.b16 %v1511
        %v1677 = vunpack.c.h.b16 %v1511
        %v1678 = vunpack.c.l.b16 %v1512
        %v1679 = vunpack.c.h.b16 %v1512
        %v1680 = vunpack.c.l.b16 %v1513
        %v1681 = vunpack.c.h.b16 %v1513
        %v1682 = vunpack.c.l.b16 %v1514
        %v1683 = vunpack.c.h.b16 %v1514
        %v1684 = vunpack.c.l.b16 %v1515
        %v1685 = vunpack.c.h.b16 %v1515
        %v1686 = vunpack.c.l.b16 %v1516
        %v1687 = vunpack.c.h.b16 %v1516
        %v1688 = vunpack.c.l.b16 %v1517
        %v1689 = vunpack.c.h.b16 %v1517
        %v1690 = vunpack.c.l.b16 %v1518
        %v1691 = vunpack.c.h.b16 %v1518
        %v1692 = vunpack.c.l.b16 %v1519
        %v1693 = vunpack.c.h.b16 %v1519
        %v1694 = vunpack.c.l.b16 %v1520
        %v1695 = vunpack.c.h.b16 %v1520
        %v1696 = vunpack.c.l.b16 %v1521
        %v1697 = vunpack.c.h.b16 %v1521
        %v1698 = vunpack.c.l.b16 %v1522
        %v1699 = vunpack.c.h.b16 %v1522
        %v1700 = vunpack.c.l.b16 %v1523
        %v1701 = vunpack.c.h.b16 %v1523
        %v1702 = vunpack.c.l.b16 %v1524
        %v1703 = vunpack.c.h.b16 %v1524
        %v1704 = vunpack.c.l.b16 %v1525
        %v1705 = vunpack.c.h.b16 %v1525
        %v1706 = vunpack.c.l.b16 %v1526
        %v1707 = vunpack.c.h.b16 %v1526
        %v1708 = vunpack.c.l.b16 %v1527
        %v1709 = vunpack.c.h.b16 %v1527
        %v1710 = vunpack.c.l.b16 %v1528
        %v1711 = vunpack.c.h.b16 %v1528
        %v1712 = vunpack.c.l.b16 %v1529
        %v1713 = vunpack.c.h.b16 %v1529
        %v1714 = vunpack.c.l.b16 %v1530
        %v1715 = vunpack.c.h.b16 %v1530
        %v1716 = vunpack.c.l.b16 %v1531
        %v1717 = vunpack.c.h.b16 %v1531
        %v1718 = vunpack.c.l.b16 %v1532
        %v1719 = vunpack.c.h.b16 %v1532
        %v1720 = vunpack.c.l.b16 %v1533
        %v1721 = vunpack.c.h.b16 %v1533
        %v1722 = vunpack.c.l.b16 %v1534
        %v1723 = vunpack.c.h.b16 %v1534
        %v1724 = vunpack.c.l.b16 %v1535
        %v1725 = vunpack.c.h.b16 %v1535
        %v1726 = vunpack.c.l.b16 %v1536
        %v1727 = vunpack.c.h.b16 %v1536
        %v1728 = vunpack.c.l.b16 %v1537
        %v1729 = vunpack.c.h.b16 %v1537
        %v1730 = vunpack.c.l.b16 %v1538
        %v1731 = vunpack.c.h.b16 %v1538
        %v1732 = vunpack.c.l.b16 %v1539
        %v1733 = vunpack.c.h.b16 %v1539
        %v1734 = vunpack.c.l.b16 %v1540
        %v1735 = vunpack.c.h.b16 %v1540
        %v1736 = vunpack.c.l.b16 %v1541
        %v1737 = vunpack.c.h.b16 %v1541
        %v1738 = vunpack.c.l.b16 %v1542
        %v1739 = vunpack.c.h.b16 %v1542
        %v1740 = vunpack.c.l.b16 %v1543
        %v1741 = vunpack.c.h.b16 %v1543
        %v1742 = vunpack.c.l.b16 %v1544
        %v1743 = vunpack.c.h.b16 %v1544
        %v1744 = vunpack.c.l.b16 %v1545
        %v1745 = vunpack.c.h.b16 %v1545
        %v1746 = vunpack.c.l.b16 %v1546
        %v1747 = vunpack.c.h.b16 %v1546
        %v1748 = vunpack.c.l.b16 %v1547
        %v1749 = vunpack.c.h.b16 %v1547
        %v1750 = vunpack.c.l.b16 %v1548
        %v1751 = vunpack.c.h.b16 %v1548
        %v1752 = vunpack.c.l.b16 %v1549
        %v1753 = vunpack.c.h.b16 %v1549
        %v1754 = vunpack.c.l.b16 %v1550
        %v1755 = vunpack.c.h.b16 %v1550
        %v1756 = vunpack.c.l.b16 %v1551
        %v1757 = vunpack.c.h.b16 %v1551
        %v1758 = vunpack.c.l.b16 %v1552
        %v1759 = vunpack.c.h.b16 %v1552
        %v1760 = vunpack.c.l.b16 %v1553
        %v1761 = vunpack.c.h.b16 %v1553
        %v1762 = vunpack.c.l.b16 %v1554
        %v1763 = vunpack.c.h.b16 %v1554
        %v1764 = vunpack.c.l.b16 %v1555
        %v1765 = vunpack.c.h.b16 %v1555
        %v1766 = vunpack.c.l.b16 %v1556
        %v1767 = vunpack.c.h.b16 %v1556
        %v1768 = vunpack.c.l.b16 %v1557
        %v1769 = vunpack.c.h.b16 %v1557
        %v1770 = vunpack.c.l.b16 %v1558
        %v1771 = vunpack.c.h.b16 %v1558
        %v1772 = vunpack.c.l.b16 %v1559
        %v1773 = vunpack.c.h.b16 %v1559
        %v1774 = vpack.c.b16 %v1650, %v1646
        %v1775 = vpack.c.b16 %v1651, %v1647
        %v1776 = vpack.c.b16 %v1652, %v1648
        %v1777 = vpack.c.b16 %v1653, %v1649
        %v1778 = vpack.c.b16 %v1658, %v1654
        %v1779 = vpack.c.b16 %v1659, %v1655
        %v1780 = vpack.c.b16 %v1660, %v1656
        %v1781 = vpack.c.b16 %v1661, %v1657
        %v1782 = vpack.c.b16 %v1666, %v1662
        %v1783 = vpack.c.b16 %v1667, %v1663
        %v1784 = vpack.c.b16 %v1668, %v1664
        %v1785 = vpack.c.b16 %v1669, %v1665
        %v1786 = vpack.c.b16 %v1674, %v1670
        %v1787 = vpack.c.b16 %v1675, %v1671
        %v1788 = vpack.c.b16 %v1676, %v1672
        %v1789 = vpack.c.b16 %v1677, %v1673
        %v1790 = vpack.c.b16 %v1682, %v1678
        %v1791 = vpack.c.b16 %v1683, %v1679
        %v1792 = vpack.c.b16 %v1684, %v1680
        %v1793 = vpack.c.b16 %v1685, %v1681
        %v1794 = vpack.c.b16 %v1690, %v1686
        %v1795 = vpack.c.b16 %v1691, %v1687
        %v1796 = vpack.c.b16 %v1692, %v1688
        %v1797 = vpack.c.b16 %v1693, %v1689
        %v1798 = vpack.c.b16 %v1698, %v1694
        %v1799 = vpack.c.b16 %v1699, %v1695
        %v1800 = vpack.c.b16 %v1700, %v1696
        %v1801 = vpack.c.b16 %v1701, %v1697
        %v1802 = vpack.c.b16 %v1706, %v1702
        %v1803 = vpack.c.b16 %v1707, %v1703
        %v1804 = vpack.c.b16 %v1708, %v1704
        %v1805 = vpack.c.b16 %v1709, %v1705
        %v1806 = vpack.c.b16 %v1714, %v1710
        %v1807 = vpack.c.b16 %v1715, %v1711
        %v1808 = vpack.c.b16 %v1716, %v1712
        %v1809 = vpack.c.b16 %v1717, %v1713
        %v1810 = vpack.c.b16 %v1722, %v1718
        %v1811 = vpack.c.b16 %v1723, %v1719
        %v1812 = vpack.c.b16 %v1724, %v1720
        %v1813 = vpack.c.b16 %v1725, %v1721
        %v1814 = vpack.c.b16 %v1730, %v1726
        %v1815 = vpack.c.b16 %v1731, %v1727
        %v1816 = vpack.c.b16 %v1732, %v1728
        %v1817 = vpack.c.b16 %v1733, %v1729
        %v1818 = vpack.c.b16 %v1738, %v1734
        %v1819 = vpack.c.b16 %v1739, %v1735
        %v1820 = vpack.c.b16 %v1740, %v1736
        %v1821 = vpack.c.b16 %v1741, %v1737
        %v1822 = vpack.c.b16 %v1746, %v1742
        %v1823 = vpack.c.b16 %v1747, %v1743
        %v1824 = vpack.c.b16 %v1748, %v1744
        %v1825 = vpack.c.b16 %v1749, %v1745
        %v1826 = vpack.c.b16 %v1754, %v1750
        %v1827 = vpack.c.b16 %v1755, %v1751
        %v1828 = vpack.c.b16 %v1756, %v1752
        %v1829 = vpack.c.b16 %v1757, %v1753
        %v1830 = vpack.c.b16 %v1762, %v1758
        %v1831 = vpack.c.b16 %v1763, %v1759
        %v1832 = vpack.c.b16 %v1764, %v1760
        %v1833 = vpack.c.b16 %v1765, %v1761
        %v1834 = vpack.c.b16 %v1770, %v1766
        %v1835 = vpack.c.b16 %v1771, %v1767
        %v1836 = vpack.c.b16 %v1772, %v1768
        %v1837 = vpack.c.b16 %v1773, %v1769
        %1902 = vmatprep.subr.bf16.mxu0 %v1775
        %1903 = vmatpush1.bf16.msra.mxu0 %v1774
        %1904 = vmatprep.subr.bf16.mxu0 %v1779
        %1905 = vmatpush1.bf16.msra.mxu0 %v1778
        %1906 = vmatprep.subr.bf16.mxu0 %v1783
        %1907 = vmatpush1.bf16.msra.mxu0 %v1782
        %1908 = vmatprep.subr.bf16.mxu0 %v1787
        %1909 = vmatpush1.bf16.msra.mxu0 %v1786
        %1910 = vmatprep.subr.bf16.mxu0 %v1791
        %1911 = vmatpush1.bf16.msra.mxu0 %v1790
        %1912 = vmatprep.subr.bf16.mxu0 %v1795
        %1913 = vmatpush1.bf16.msra.mxu0 %v1794
        %1914 = vmatprep.subr.bf16.mxu0 %v1799
        %1915 = vmatpush1.bf16.msra.mxu0 %v1798
        %1916 = vmatprep.subr.bf16.mxu0 %v1803
        %1917 = vmatpush1.bf16.msra.mxu0 %v1802
        %1918 = vmatprep.subr.bf16.mxu0 %v1807
        %1919 = vmatpush1.bf16.msra.mxu0 %v1806
        %1920 = vmatprep.subr.bf16.mxu0 %v1811
        %1921 = vmatpush1.bf16.msra.mxu0 %v1810
        %1922 = vmatprep.subr.bf16.mxu0 %v1815
        %1923 = vmatpush1.bf16.msra.mxu0 %v1814
        %1924 = vmatprep.subr.bf16.mxu0 %v1819
        %1925 = vmatpush1.bf16.msra.mxu0 %v1818
        %1926 = vmatprep.subr.bf16.mxu0 %v1823
        %1927 = vmatpush1.bf16.msra.mxu0 %v1822
        %1928 = vmatprep.subr.bf16.mxu0 %v1827
        %1929 = vmatpush1.bf16.msra.mxu0 %v1826
        %1930 = vmatprep.subr.bf16.mxu0 %v1831
        %1931 = vmatpush1.bf16.msra.mxu0 %v1830
        %1932 = vmatprep.subr.bf16.mxu0 %v1835
        %1933 = vmatpush1.bf16.msra.mxu0 %v1834
        %1934 = vmatprep.mubr.bf16.mxu0 %v1433
        %1935 = vmatmul.mubr.bf16.gmra.mrb[0].mxu0 %v1432
        %v1936 = vpop.f32.mrb[0].mxu0
        %v1937 = vadd.f32 %v1565, %v1936
        %v1938 = vpop.f32.mrb[0].mxu0
        %v1939 = vadd.f32 %v1569, %v1938
        %v1940 = vpop.f32.mrb[0].mxu0
        %v1941 = vadd.f32 %v1565, %v1940
        %v1942 = vpop.f32.mrb[0].mxu0
        %v1943 = vadd.f32 %v1569, %v1942
        %1944 = vmatprep.mubr.bf16.mxu0 %v1435
        %1945 = vmatmul.mubr.bf16.gmra.mrb[0].mxu0 %v1434
        %v1946 = vpop.f32.mrb[0].mxu0
        %v1947 = vadd.f32 %v1565, %v1946
        %v1948 = vpop.f32.mrb[0].mxu0
        %v1949 = vadd.f32 %v1569, %v1948
        %v1950 = vpop.f32.mrb[0].mxu0
        %v1951 = vadd.f32 %v1565, %v1950
        %v1952 = vpop.f32.mrb[0].mxu0
        %v1953 = vadd.f32 %v1569, %v1952
        %1954 = vmatprep.mubr.bf16.mxu0 %v1437
        %1955 = vmatmul.mubr.bf16.gmra.mrb[0].mxu0 %v1436
        %v1956 = vpop.f32.mrb[0].mxu0
        %v1957 = vadd.f32 %v1565, %v1956
        %v1958 = vpop.f32.mrb[0].mxu0
        %v1959 = vadd.f32 %v1569, %v1958
        %v1960 = vpop.f32.mrb[0].mxu0
        %v1961 = vadd.f32 %v1565, %v1960
        %v1962 = vpop.f32.mrb[0].mxu0
        %v1963 = vadd.f32 %v1569, %v1962
        %1964 = vmatprep.mubr.bf16.mxu0 %v1439
        %1965 = vmatmul.mubr.bf16.gmra.mrb[0].mxu0 %v1438
        %v1966 = vpop.f32.mrb[0].mxu0
        %v1967 = vadd.f32 %v1565, %v1966
        %v1968 = vpop.f32.mrb[0].mxu0
        %v1969 = vadd.f32 %v1569, %v1968
        %v1970 = vpop.f32.mrb[0].mxu0
        %v1971 = vadd.f32 %v1565, %v1970
        %v1972 = vpop.f32.mrb[0].mxu0
        %v1973 = vadd.f32 %v1569, %v1972
        %1974 = vmatprep.mubr.bf16.mxu0 %v1441
        %1975 = vmatmul.mubr.bf16.gmra.mrb[0].mxu0 %v1440
        %v1976 = vpop.f32.mrb[0].mxu0
        %v1977 = vadd.f32 %v1565, %v1976
        %v1978 = vpop.f32.mrb[0].mxu0
        %v1979 = vadd.f32 %v1569, %v1978
        %v1980 = vpop.f32.mrb[0].mxu0
        %v1981 = vadd.f32 %v1565, %v1980
        %v1982 = vpop.f32.mrb[0].mxu0
        %v1983 = vadd.f32 %v1569, %v1982
        %1984 = vmatprep.mubr.bf16.mxu0 %v1443
        %1985 = vmatmul.mubr.bf16.gmra.mrb[0].mxu0 %v1442
        %v1986 = vpop.f32.mrb[0].mxu0
        %v1987 = vadd.f32 %v1565, %v1986
        %v1988 = vpop.f32.mrb[0].mxu0
        %v1989 = vadd.f32 %v1569, %v1988
        %v1990 = vpop.f32.mrb[0].mxu0
        %v1991 = vadd.f32 %v1565, %v1990
        %v1992 = vpop.f32.mrb[0].mxu0
        %v1993 = vadd.f32 %v1569, %v1992
        %1994 = vmatprep.mubr.bf16.mxu0 %v1445
        %1995 = vmatmul.mubr.bf16.gmra.mrb[0].mxu0 %v1444
        %v1996 = vpop.f32.mrb[0].mxu0
        %v1997 = vadd.f32 %v1565, %v1996
        %v1998 = vpop.f32.mrb[0].mxu0
        %v1999 = vadd.f32 %v1569, %v1998
        %v2000 = vpop.f32.mrb[0].mxu0
        %v2001 = vadd.f32 %v1565, %v2000
        %v2002 = vpop.f32.mrb[0].mxu0
        %v2003 = vadd.f32 %v1569, %v2002
        %2004 = vmatprep.mubr.bf16.mxu0 %v1447
        %2005 = vmatmul.mubr.bf16.gmra.mrb[0].mxu0 %v1446
        %v2006 = vpop.f32.mrb[0].mxu0
        %v2007 = vadd.f32 %v1565, %v2006
        %v2008 = vpop.f32.mrb[0].mxu0
        %v2009 = vadd.f32 %v1569, %v2008
        %v2010 = vpop.f32.mrb[0].mxu0
        %v2011 = vadd.f32 %v1565, %v2010
        %v2012 = vpop.f32.mrb[0].mxu0
        %v2013 = vadd.f32 %v1569, %v2012
        %2014 = vmatprep.mubr.bf16.mxu0 %v1449
        %2015 = vmatmul.mubr.bf16.gmra.mrb[0].mxu0 %v1448
        %v2016 = vpop.f32.mrb[0].mxu0
        %v2017 = vadd.f32 %v1565, %v2016
        %v2018 = vpop.f32.mrb[0].mxu0
        %v2019 = vadd.f32 %v1569, %v2018
        %v2020 = vpop.f32.mrb[0].mxu0
        %v2021 = vadd.f32 %v1565, %v2020
        %v2022 = vpop.f32.mrb[0].mxu0
        %v2023 = vadd.f32 %v1569, %v2022
        %2024 = vmatprep.mubr.bf16.mxu0 %v1451
        %2025 = vmatmul.mubr.bf16.gmra.mrb[0].mxu0 %v1450
        %v2026 = vpop.f32.mrb[0].mxu0
        %v2027 = vadd.f32 %v1565, %v2026
        %v2028 = vpop.f32.mrb[0].mxu0
        %v2029 = vadd.f32 %v1569, %v2028
        %v2030 = vpop.f32.mrb[0].mxu0
        %v2031 = vadd.f32 %v1565, %v2030
        %v2032 = vpop.f32.mrb[0].mxu0
        %v2033 = vadd.f32 %v1569, %v2032
        %2034 = vmatprep.mubr.bf16.mxu0 %v1453
        %2035 = vmatmul.mubr.bf16.gmra.mrb[0].mxu0 %v1452
        %v2036 = vpop.f32.mrb[0].mxu0
        %v2037 = vadd.f32 %v1565, %v2036
        %v2038 = vpop.f32.mrb[0].mxu0
        %v2039 = vadd.f32 %v1569, %v2038
        %v2040 = vpop.f32.mrb[0].mxu0
        %v2041 = vadd.f32 %v1565, %v2040
        %v2042 = vpop.f32.mrb[0].mxu0
        %v2043 = vadd.f32 %v1569, %v2042
        %2044 = vmatprep.mubr.bf16.mxu0 %v1455
        %2045 = vmatmul.mubr.bf16.gmra.mrb[0].mxu0 %v1454
        %v2046 = vpop.f32.mrb[0].mxu0
        %v2047 = vadd.f32 %v1565, %v2046
        %v2048 = vpop.f32.mrb[0].mxu0
        %v2049 = vadd.f32 %v1569, %v2048
        %v2050 = vpop.f32.mrb[0].mxu0
        %v2051 = vadd.f32 %v1565, %v2050
        %v2052 = vpop.f32.mrb[0].mxu0
        %v2053 = vadd.f32 %v1569, %v2052
        %2054 = vmatprep.mubr.bf16.mxu0 %v1457
        %2055 = vmatmul.mubr.bf16.gmra.mrb[0].mxu0 %v1456
        %v2056 = vpop.f32.mrb[0].mxu0
        %v2057 = vadd.f32 %v1565, %v2056
        %v2058 = vpop.f32.mrb[0].mxu0
        %v2059 = vadd.f32 %v1569, %v2058
        %v2060 = vpop.f32.mrb[0].mxu0
        %v2061 = vadd.f32 %v1565, %v2060
        %v2062 = vpop.f32.mrb[0].mxu0
        %v2063 = vadd.f32 %v1569, %v2062
        %2064 = vmatprep.mubr.bf16.mxu0 %v1459
        %2065 = vmatmul.mubr.bf16.gmra.mrb[0].mxu0 %v1458
        %v2066 = vpop.f32.mrb[0].mxu0
        %v2067 = vadd.f32 %v1565, %v2066
        %v2068 = vpop.f32.mrb[0].mxu0
        %v2069 = vadd.f32 %v1569, %v2068
        %v2070 = vpop.f32.mrb[0].mxu0
        %v2071 = vadd.f32 %v1565, %v2070
        %v2072 = vpop.f32.mrb[0].mxu0
        %v2073 = vadd.f32 %v1569, %v2072
        %2074 = vmatprep.mubr.bf16.mxu0 %v1461
        %2075 = vmatmul.mubr.bf16.gmra.mrb[0].mxu0 %v1460
        %v2076 = vpop.f32.mrb[0].mxu0
        %v2077 = vadd.f32 %v1565, %v2076
        %v2078 = vpop.f32.mrb[0].mxu0
        %v2079 = vadd.f32 %v1569, %v2078
        %v2080 = vpop.f32.mrb[0].mxu0
        %v2081 = vadd.f32 %v1565, %v2080
        %v2082 = vpop.f32.mrb[0].mxu0
        %v2083 = vadd.f32 %v1569, %v2082
        %2084 = vmatprep.mubr.bf16.mxu0 %v1463
        %2085 = vmatmul.mubr.bf16.gmra.mrb[0].mxu0 %v1462
        %v2086 = vpop.f32.mrb[0].mxu0
        %v2087 = vadd.f32 %v1565, %v2086
        %v2088 = vpop.f32.mrb[0].mxu0
        %v2089 = vadd.f32 %v1569, %v2088
        %v2090 = vpop.f32.mrb[0].mxu0
        %v2091 = vadd.f32 %v1565, %v2090
        %v2092 = vpop.f32.mrb[0].mxu0
        %v2093 = vadd.f32 %v1569, %v2092
        %2094 = vmatprep.mubr.bf16.mxu0 %v1465
        %2095 = vmatmul.mubr.bf16.gmra.mrb[0].mxu0 %v1464
        %v2096 = vpop.f32.mrb[0].mxu0
        %v2097 = vadd.f32 %v1565, %v2096
        %v2098 = vpop.f32.mrb[0].mxu0
        %v2099 = vadd.f32 %v1569, %v2098
        %v2100 = vpop.f32.mrb[0].mxu0
        %v2101 = vadd.f32 %v1565, %v2100
        %v2102 = vpop.f32.mrb[0].mxu0
        %v2103 = vadd.f32 %v1569, %v2102
        %2104 = vmatprep.mubr.bf16.mxu0 %v1467
        %2105 = vmatmul.mubr.bf16.gmra.mrb[0].mxu0 %v1466
        %v2106 = vpop.f32.mrb[0].mxu0
        %v2107 = vadd.f32 %v1565, %v2106
        %v2108 = vpop.f32.mrb[0].mxu0
        %v2109 = vadd.f32 %v1569, %v2108
        %v2110 = vpop.f32.mrb[0].mxu0
        %v2111 = vadd.f32 %v1565, %v2110
        %v2112 = vpop.f32.mrb[0].mxu0
        %v2113 = vadd.f32 %v1569, %v2112
        %2114 = vmatprep.mubr.bf16.mxu0 %v1469
        %2115 = vmatmul.mubr.bf16.gmra.mrb[0].mxu0 %v1468
        %v2116 = vpop.f32.mrb[0].mxu0
        %v2117 = vadd.f32 %v1565, %v2116
        %v2118 = vpop.f32.mrb[0].mxu0
        %v2119 = vadd.f32 %v1569, %v2118
        %v2120 = vpop.f32.mrb[0].mxu0
        %v2121 = vadd.f32 %v1565, %v2120
        %v2122 = vpop.f32.mrb[0].mxu0
        %v2123 = vadd.f32 %v1569, %v2122
        %2124 = vmatprep.mubr.bf16.mxu0 %v1471
        %2125 = vmatmul.mubr.bf16.gmra.mrb[0].mxu0 %v1470
        %v2126 = vpop.f32.mrb[0].mxu0
        %v2127 = vadd.f32 %v1565, %v2126
        %v2128 = vpop.f32.mrb[0].mxu0
        %v2129 = vadd.f32 %v1569, %v2128
        %v2130 = vpop.f32.mrb[0].mxu0
        %v2131 = vadd.f32 %v1565, %v2130
        %v2132 = vpop.f32.mrb[0].mxu0
        %v2133 = vadd.f32 %v1569, %v2132
        %2134 = vmatprep.mubr.bf16.mxu0 %v1473
        %2135 = vmatmul.mubr.bf16.gmra.mrb[0].mxu0 %v1472
        %v2136 = vpop.f32.mrb[0].mxu0
        %v2137 = vadd.f32 %v1565, %v2136
        %v2138 = vpop.f32.mrb[0].mxu0
        %v2139 = vadd.f32 %v1569, %v2138
        %v2140 = vpop.f32.mrb[0].mxu0
        %v2141 = vadd.f32 %v1565, %v2140
        %v2142 = vpop.f32.mrb[0].mxu0
        %v2143 = vadd.f32 %v1569, %v2142
        %2144 = vmatprep.mubr.bf16.mxu0 %v1475
        %2145 = vmatmul.mubr.bf16.gmra.mrb[0].mxu0 %v1474
        %v2146 = vpop.f32.mrb[0].mxu0
        %v2147 = vadd.f32 %v1565, %v2146
        %v2148 = vpop.f32.mrb[0].mxu0
        %v2149 = vadd.f32 %v1569, %v2148
        %v2150 = vpop.f32.mrb[0].mxu0
        %v2151 = vadd.f32 %v1565, %v2150
        %v2152 = vpop.f32.mrb[0].mxu0
        %v2153 = vadd.f32 %v1569, %v2152
        %2154 = vmatprep.mubr.bf16.mxu0 %v1477
        %2155 = vmatmul.mubr.bf16.gmra.mrb[0].mxu0 %v1476
        %v2156 = vpop.f32.mrb[0].mxu0
        %v2157 = vadd.f32 %v1565, %v2156
        %v2158 = vpop.f32.mrb[0].mxu0
        %v2159 = vadd.f32 %v1569, %v2158
        %v2160 = vpop.f32.mrb[0].mxu0
        %v2161 = vadd.f32 %v1565, %v2160
        %v2162 = vpop.f32.mrb[0].mxu0
        %v2163 = vadd.f32 %v1569, %v2162
        %2164 = vmatprep.mubr.bf16.mxu0 %v1479
        %2165 = vmatmul.mubr.bf16.gmra.mrb[0].mxu0 %v1478
        %v2166 = vpop.f32.mrb[0].mxu0
        %v2167 = vadd.f32 %v1565, %v2166
        %v2168 = vpop.f32.mrb[0].mxu0
        %v2169 = vadd.f32 %v1569, %v2168
        %v2170 = vpop.f32.mrb[0].mxu0
        %v2171 = vadd.f32 %v1565, %v2170
        %v2172 = vpop.f32.mrb[0].mxu0
        %v2173 = vadd.f32 %v1569, %v2172
        %2174 = vmatprep.mubr.bf16.mxu0 %v1481
        %2175 = vmatmul.mubr.bf16.gmra.mrb[0].mxu0 %v1480
        %v2176 = vpop.f32.mrb[0].mxu0
        %v2177 = vadd.f32 %v1565, %v2176
        %v2178 = vpop.f32.mrb[0].mxu0
        %v2179 = vadd.f32 %v1569, %v2178
        %v2180 = vpop.f32.mrb[0].mxu0
        %v2181 = vadd.f32 %v1565, %v2180
        %v2182 = vpop.f32.mrb[0].mxu0
        %v2183 = vadd.f32 %v1569, %v2182
        %2184 = vmatprep.mubr.bf16.mxu0 %v1483
        %2185 = vmatmul.mubr.bf16.gmra.mrb[0].mxu0 %v1482
        %v2186 = vpop.f32.mrb[0].mxu0
        %v2187 = vadd.f32 %v1565, %v2186
        %v2188 = vpop.f32.mrb[0].mxu0
        %v2189 = vadd.f32 %v1569, %v2188
        %v2190 = vpop.f32.mrb[0].mxu0
        %v2191 = vadd.f32 %v1565, %v2190
        %v2192 = vpop.f32.mrb[0].mxu0
        %v2193 = vadd.f32 %v1569, %v2192
        %2194 = vmatprep.mubr.bf16.mxu0 %v1485
        %2195 = vmatmul.mubr.bf16.gmra.mrb[0].mxu0 %v1484
        %v2196 = vpop.f32.mrb[0].mxu0
        %v2197 = vadd.f32 %v1565, %v2196
        %v2198 = vpop.f32.mrb[0].mxu0
        %v2199 = vadd.f32 %v1569, %v2198
        %v2200 = vpop.f32.mrb[0].mxu0
        %v2201 = vadd.f32 %v1565, %v2200
        %v2202 = vpop.f32.mrb[0].mxu0
        %v2203 = vadd.f32 %v1569, %v2202
        %2204 = vmatprep.mubr.bf16.mxu0 %v1487
        %2205 = vmatmul.mubr.bf16.gmra.mrb[0].mxu0 %v1486
        %v2206 = vpop.f32.mrb[0].mxu0
        %v2207 = vadd.f32 %v1565, %v2206
        %v2208 = vpop.f32.mrb[0].mxu0
        %v2209 = vadd.f32 %v1569, %v2208
        %v2210 = vpop.f32.mrb[0].mxu0
        %v2211 = vadd.f32 %v1565, %v2210
        %v2212 = vpop.f32.mrb[0].mxu0
        %v2213 = vadd.f32 %v1569, %v2212
        %2214 = vmatprep.mubr.bf16.mxu0 %v1489
        %2215 = vmatmul.mubr.bf16.gmra.mrb[0].mxu0 %v1488
        %v2216 = vpop.f32.mrb[0].mxu0
        %v2217 = vadd.f32 %v1565, %v2216
        %v2218 = vpop.f32.mrb[0].mxu0
        %v2219 = vadd.f32 %v1569, %v2218
        %v2220 = vpop.f32.mrb[0].mxu0
        %v2221 = vadd.f32 %v1565, %v2220
        %v2222 = vpop.f32.mrb[0].mxu0
        %v2223 = vadd.f32 %v1569, %v2222
        %2224 = vmatprep.mubr.bf16.mxu0 %v1491
        %2225 = vmatmul.mubr.bf16.gmra.mrb[0].mxu0 %v1490
        %v2226 = vpop.f32.mrb[0].mxu0
        %v2227 = vadd.f32 %v1565, %v2226
        %v2228 = vpop.f32.mrb[0].mxu0
        %v2229 = vadd.f32 %v1569, %v2228
        %v2230 = vpop.f32.mrb[0].mxu0
        %v2231 = vadd.f32 %v1565, %v2230
        %v2232 = vpop.f32.mrb[0].mxu0
        %v2233 = vadd.f32 %v1569, %v2232
        %2234 = vmatprep.mubr.bf16.mxu0 %v1493
        %2235 = vmatmul.mubr.bf16.gmra.mrb[0].mxu0 %v1492
        %v2236 = vpop.f32.mrb[0].mxu0
        %v2237 = vadd.f32 %v1565, %v2236
        %v2238 = vpop.f32.mrb[0].mxu0
        %v2239 = vadd.f32 %v1569, %v2238
        %v2240 = vpop.f32.mrb[0].mxu0
        %v2241 = vadd.f32 %v1565, %v2240
        %v2242 = vpop.f32.mrb[0].mxu0
        %v2243 = vadd.f32 %v1569, %v2242
        %2244 = vmatprep.mubr.bf16.mxu0 %v1495
        %2245 = vmatmul.mubr.bf16.gmra.mrb[0].mxu0 %v1494
        %v2246 = vpop.f32.mrb[0].mxu0
        %v2247 = vadd.f32 %v1565, %v2246
        %v2248 = vpop.f32.mrb[0].mxu0
        %v2249 = vadd.f32 %v1569, %v2248
        %v2250 = vpop.f32.mrb[0].mxu0
        %v2251 = vadd.f32 %v1565, %v2250
        %v2252 = vpop.f32.mrb[0].mxu0
        %v2253 = vadd.f32 %v1569, %v2252
        %2254 = vdwg.mxu0
        %2255 = vmatprep.subr.bf16.mxu0 %v1777
        %2256 = vmatpush1.bf16.msra.mxu0 %v1776
        %2257 = vmatprep.subr.bf16.mxu0 %v1781
        %2258 = vmatpush1.bf16.msra.mxu0 %v1780
        %2259 = vmatprep.subr.bf16.mxu0 %v1785
        %2260 = vmatpush1.bf16.msra.mxu0 %v1784
        %2261 = vmatprep.subr.bf16.mxu0 %v1789
        %2262 = vmatpush1.bf16.msra.mxu0 %v1788
        %2263 = vmatprep.subr.bf16.mxu0 %v1793
        %2264 = vmatpush1.bf16.msra.mxu0 %v1792
        %2265 = vmatprep.subr.bf16.mxu0 %v1797
        %2266 = vmatpush1.bf16.msra.mxu0 %v1796
        %2267 = vmatprep.subr.bf16.mxu0 %v1801
        %2268 = vmatpush1.bf16.msra.mxu0 %v1800
        %2269 = vmatprep.subr.bf16.mxu0 %v1805
        %2270 = vmatpush1.bf16.msra.mxu0 %v1804
        %2271 = vmatprep.subr.bf16.mxu0 %v1809
        %2272 = vmatpush1.bf16.msra.mxu0 %v1808
        %2273 = vmatprep.subr.bf16.mxu0 %v1813
        %2274 = vmatpush1.bf16.msra.mxu0 %v1812
        %2275 = vmatprep.subr.bf16.mxu0 %v1817
        %2276 = vmatpush1.bf16.msra.mxu0 %v1816
        %2277 = vmatprep.subr.bf16.mxu0 %v1821
        %2278 = vmatpush1.bf16.msra.mxu0 %v1820
        %2279 = vmatprep.subr.bf16.mxu0 %v1825
        %2280 = vmatpush1.bf16.msra.mxu0 %v1824
        %2281 = vmatprep.subr.bf16.mxu0 %v1829
        %2282 = vmatpush1.bf16.msra.mxu0 %v1828
        %2283 = vmatprep.subr.bf16.mxu0 %v1833
        %2284 = vmatpush1.bf16.msra.mxu0 %v1832
        %2285 = vmatprep.subr.bf16.mxu0 %v1837
        %2286 = vmatpush1.bf16.msra.mxu0 %v1836
        %2287 = vmatprep.mubr.bf16.mxu0 %v1433
        %2288 = vmatmul.mubr.bf16.gmra.mrb[0].mxu0 %v1432
        %v2289 = vpop.f32.mrb[0].mxu0
        %v2290 = vadd.f32 %v1573, %v2289
        %v2291 = vpop.f32.mrb[0].mxu0
        %v2292 = vadd.f32 %v1577, %v2291
        %v2293 = vpop.f32.mrb[0].mxu0
        %v2294 = vadd.f32 %v1573, %v2293
        %v2295 = vpop.f32.mrb[0].mxu0
        %v2296 = vadd.f32 %v1577, %v2295
        %2297 = vmatprep.mubr.bf16.mxu0 %v1435
        %2298 = vmatmul.mubr.bf16.gmra.mrb[0].mxu0 %v1434
        %v2299 = vpop.f32.mrb[0].mxu0
        %v2300 = vadd.f32 %v1573, %v2299
        %v2301 = vpop.f32.mrb[0].mxu0
        %v2302 = vadd.f32 %v1577, %v2301
        %v2303 = vpop.f32.mrb[0].mxu0
        %v2304 = vadd.f32 %v1573, %v2303
        %v2305 = vpop.f32.mrb[0].mxu0
        %v2306 = vadd.f32 %v1577, %v2305
        %2307 = vmatprep.mubr.bf16.mxu0 %v1437
        %2308 = vmatmul.mubr.bf16.gmra.mrb[0].mxu0 %v1436
        %v2309 = vpop.f32.mrb[0].mxu0
        %v2310 = vadd.f32 %v1573, %v2309
        %v2311 = vpop.f32.mrb[0].mxu0
        %v2312 = vadd.f32 %v1577, %v2311
        %v2313 = vpop.f32.mrb[0].mxu0
        %v2314 = vadd.f32 %v1573, %v2313
        %v2315 = vpop.f32.mrb[0].mxu0
        %v2316 = vadd.f32 %v1577, %v2315
        %2317 = vmatprep.mubr.bf16.mxu0 %v1439
        %2318 = vmatmul.mubr.bf16.gmra.mrb[0].mxu0 %v1438
        %v2319 = vpop.f32.mrb[0].mxu0
        %v2320 = vadd.f32 %v1573, %v2319
        %v2321 = vpop.f32.mrb[0].mxu0
        %v2322 = vadd.f32 %v1577, %v2321
        %v2323 = vpop.f32.mrb[0].mxu0
        %v2324 = vadd.f32 %v1573, %v2323
        %v2325 = vpop.f32.mrb[0].mxu0
        %v2326 = vadd.f32 %v1577, %v2325
        %2327 = vmatprep.mubr.bf16.mxu0 %v1441
        %2328 = vmatmul.mubr.bf16.gmra.mrb[0].mxu0 %v1440
        %v2329 = vpop.f32.mrb[0].mxu0
        %v2330 = vadd.f32 %v1573, %v2329
        %v2331 = vpop.f32.mrb[0].mxu0
        %v2332 = vadd.f32 %v1577, %v2331
        %v2333 = vpop.f32.mrb[0].mxu0
        %v2334 = vadd.f32 %v1573, %v2333
        %v2335 = vpop.f32.mrb[0].mxu0
        %v2336 = vadd.f32 %v1577, %v2335
        %2337 = vmatprep.mubr.bf16.mxu0 %v1443
        %2338 = vmatmul.mubr.bf16.gmra.mrb[0].mxu0 %v1442
        %v2339 = vpop.f32.mrb[0].mxu0
        %v2340 = vadd.f32 %v1573, %v2339
        %v2341 = vpop.f32.mrb[0].mxu0
        %v2342 = vadd.f32 %v1577, %v2341
        %v2343 = vpop.f32.mrb[0].mxu0
        %v2344 = vadd.f32 %v1573, %v2343
        %v2345 = vpop.f32.mrb[0].mxu0
        %v2346 = vadd.f32 %v1577, %v2345
        %2347 = vmatprep.mubr.bf16.mxu0 %v1445
        %2348 = vmatmul.mubr.bf16.gmra.mrb[0].mxu0 %v1444
        %v2349 = vpop.f32.mrb[0].mxu0
        %v2350 = vadd.f32 %v1573, %v2349
        %v2351 = vpop.f32.mrb[0].mxu0
        %v2352 = vadd.f32 %v1577, %v2351
        %v2353 = vpop.f32.mrb[0].mxu0
        %v2354 = vadd.f32 %v1573, %v2353
        %v2355 = vpop.f32.mrb[0].mxu0
        %v2356 = vadd.f32 %v1577, %v2355
        %2357 = vmatprep.mubr.bf16.mxu0 %v1447
        %2358 = vmatmul.mubr.bf16.gmra.mrb[0].mxu0 %v1446
        %v2359 = vpop.f32.mrb[0].mxu0
        %v2360 = vadd.f32 %v1573, %v2359
        %v2361 = vpop.f32.mrb[0].mxu0
        %v2362 = vadd.f32 %v1577, %v2361
        %v2363 = vpop.f32.mrb[0].mxu0
        %v2364 = vadd.f32 %v1573, %v2363
        %v2365 = vpop.f32.mrb[0].mxu0
        %v2366 = vadd.f32 %v1577, %v2365
        %2367 = vmatprep.mubr.bf16.mxu0 %v1449
        %2368 = vmatmul.mubr.bf16.gmra.mrb[0].mxu0 %v1448
        %v2369 = vpop.f32.mrb[0].mxu0
        %v2370 = vadd.f32 %v1573, %v2369
        %v2371 = vpop.f32.mrb[0].mxu0
        %v2372 = vadd.f32 %v1577, %v2371
        %v2373 = vpop.f32.mrb[0].mxu0
        %v2374 = vadd.f32 %v1573, %v2373
        %v2375 = vpop.f32.mrb[0].mxu0
        %v2376 = vadd.f32 %v1577, %v2375
        %2377 = vmatprep.mubr.bf16.mxu0 %v1451
        %2378 = vmatmul.mubr.bf16.gmra.mrb[0].mxu0 %v1450
        %v2379 = vpop.f32.mrb[0].mxu0
        %v2380 = vadd.f32 %v1573, %v2379
        %v2381 = vpop.f32.mrb[0].mxu0
        %v2382 = vadd.f32 %v1577, %v2381
        %v2383 = vpop.f32.mrb[0].mxu0
        %v2384 = vadd.f32 %v1573, %v2383
        %v2385 = vpop.f32.mrb[0].mxu0
        %v2386 = vadd.f32 %v1577, %v2385
        %2387 = vmatprep.mubr.bf16.mxu0 %v1453
        %2388 = vmatmul.mubr.bf16.gmra.mrb[0].mxu0 %v1452
        %v2389 = vpop.f32.mrb[0].mxu0
        %v2390 = vadd.f32 %v1573, %v2389
        %v2391 = vpop.f32.mrb[0].mxu0
        %v2392 = vadd.f32 %v1577, %v2391
        %v2393 = vpop.f32.mrb[0].mxu0
        %v2394 = vadd.f32 %v1573, %v2393
        %v2395 = vpop.f32.mrb[0].mxu0
        %v2396 = vadd.f32 %v1577, %v2395
        %2397 = vmatprep.mubr.bf16.mxu0 %v1455
        %2398 = vmatmul.mubr.bf16.gmra.mrb[0].mxu0 %v1454
        %v2399 = vpop.f32.mrb[0].mxu0
        %v2400 = vadd.f32 %v1573, %v2399
        %v2401 = vpop.f32.mrb[0].mxu0
        %v2402 = vadd.f32 %v1577, %v2401
        %v2403 = vpop.f32.mrb[0].mxu0
        %v2404 = vadd.f32 %v1573, %v2403
        %v2405 = vpop.f32.mrb[0].mxu0
        %v2406 = vadd.f32 %v1577, %v2405
        %2407 = vmatprep.mubr.bf16.mxu0 %v1457
        %2408 = vmatmul.mubr.bf16.gmra.mrb[0].mxu0 %v1456
        %v2409 = vpop.f32.mrb[0].mxu0
        %v2410 = vadd.f32 %v1573, %v2409
        %v2411 = vpop.f32.mrb[0].mxu0
        %v2412 = vadd.f32 %v1577, %v2411
        %v2413 = vpop.f32.mrb[0].mxu0
        %v2414 = vadd.f32 %v1573, %v2413
        %v2415 = vpop.f32.mrb[0].mxu0
        %v2416 = vadd.f32 %v1577, %v2415
        %2417 = vmatprep.mubr.bf16.mxu0 %v1459
        %2418 = vmatmul.mubr.bf16.gmra.mrb[0].mxu0 %v1458
        %v2419 = vpop.f32.mrb[0].mxu0
        %v2420 = vadd.f32 %v1573, %v2419
        %v2421 = vpop.f32.mrb[0].mxu0
        %v2422 = vadd.f32 %v1577, %v2421
        %v2423 = vpop.f32.mrb[0].mxu0
        %v2424 = vadd.f32 %v1573, %v2423
        %v2425 = vpop.f32.mrb[0].mxu0
        %v2426 = vadd.f32 %v1577, %v2425
        %2427 = vmatprep.mubr.bf16.mxu0 %v1461
        %2428 = vmatmul.mubr.bf16.gmra.mrb[0].mxu0 %v1460
        %v2429 = vpop.f32.mrb[0].mxu0
        %v2430 = vadd.f32 %v1573, %v2429
        %v2431 = vpop.f32.mrb[0].mxu0
        %v2432 = vadd.f32 %v1577, %v2431
        %v2433 = vpop.f32.mrb[0].mxu0
        %v2434 = vadd.f32 %v1573, %v2433
        %v2435 = vpop.f32.mrb[0].mxu0
        %v2436 = vadd.f32 %v1577, %v2435
        %2437 = vmatprep.mubr.bf16.mxu0 %v1463
        %2438 = vmatmul.mubr.bf16.gmra.mrb[0].mxu0 %v1462
        %v2439 = vpop.f32.mrb[0].mxu0
        %v2440 = vadd.f32 %v1573, %v2439
        %v2441 = vpop.f32.mrb[0].mxu0
        %v2442 = vadd.f32 %v1577, %v2441
        %v2443 = vpop.f32.mrb[0].mxu0
        %v2444 = vadd.f32 %v1573, %v2443
        %v2445 = vpop.f32.mrb[0].mxu0
        %v2446 = vadd.f32 %v1577, %v2445
        %2447 = vmatprep.mubr.bf16.mxu0 %v1465
        %2448 = vmatmul.mubr.bf16.gmra.mrb[0].mxu0 %v1464
        %v2449 = vpop.f32.mrb[0].mxu0
        %v2450 = vadd.f32 %v1573, %v2449
        %v2451 = vpop.f32.mrb[0].mxu0
        %v2452 = vadd.f32 %v1577, %v2451
        %v2453 = vpop.f32.mrb[0].mxu0
        %v2454 = vadd.f32 %v1573, %v2453
        %v2455 = vpop.f32.mrb[0].mxu0
        %v2456 = vadd.f32 %v1577, %v2455
        %2457 = vmatprep.mubr.bf16.mxu0 %v1467
        %2458 = vmatmul.mubr.bf16.gmra.mrb[0].mxu0 %v1466
        %v2459 = vpop.f32.mrb[0].mxu0
        %v2460 = vadd.f32 %v1573, %v2459
        %v2461 = vpop.f32.mrb[0].mxu0
        %v2462 = vadd.f32 %v1577, %v2461
        %v2463 = vpop.f32.mrb[0].mxu0
        %v2464 = vadd.f32 %v1573, %v2463
        %v2465 = vpop.f32.mrb[0].mxu0
        %v2466 = vadd.f32 %v1577, %v2465
        %2467 = vmatprep.mubr.bf16.mxu0 %v1469
        %2468 = vmatmul.mubr.bf16.gmra.mrb[0].mxu0 %v1468
        %v2469 = vpop.f32.mrb[0].mxu0
        %v2470 = vadd.f32 %v1573, %v2469
        %v2471 = vpop.f32.mrb[0].mxu0
        %v2472 = vadd.f32 %v1577, %v2471
        %v2473 = vpop.f32.mrb[0].mxu0
        %v2474 = vadd.f32 %v1573, %v2473
        %v2475 = vpop.f32.mrb[0].mxu0
        %v2476 = vadd.f32 %v1577, %v2475
        %2477 = vmatprep.mubr.bf16.mxu0 %v1471
        %2478 = vmatmul.mubr.bf16.gmra.mrb[0].mxu0 %v1470
        %v2479 = vpop.f32.mrb[0].mxu0
        %v2480 = vadd.f32 %v1573, %v2479
        %v2481 = vpop.f32.mrb[0].mxu0
        %v2482 = vadd.f32 %v1577, %v2481
        %v2483 = vpop.f32.mrb[0].mxu0
        %v2484 = vadd.f32 %v1573, %v2483
        %v2485 = vpop.f32.mrb[0].mxu0
        %v2486 = vadd.f32 %v1577, %v2485
        %2487 = vmatprep.mubr.bf16.mxu0 %v1473
        %2488 = vmatmul.mubr.bf16.gmra.mrb[0].mxu0 %v1472
        %v2489 = vpop.f32.mrb[0].mxu0
        %v2490 = vadd.f32 %v1573, %v2489
        %v2491 = vpop.f32.mrb[0].mxu0
        %v2492 = vadd.f32 %v1577, %v2491
        %v2493 = vpop.f32.mrb[0].mxu0
        %v2494 = vadd.f32 %v1573, %v2493
        %v2495 = vpop.f32.mrb[0].mxu0
        %v2496 = vadd.f32 %v1577, %v2495
        %2497 = vmatprep.mubr.bf16.mxu0 %v1475
        %2498 = vmatmul.mubr.bf16.gmra.mrb[0].mxu0 %v1474
        %v2499 = vpop.f32.mrb[0].mxu0
        %v2500 = vadd.f32 %v1573, %v2499
        %v2501 = vpop.f32.mrb[0].mxu0
        %v2502 = vadd.f32 %v1577, %v2501
        %v2503 = vpop.f32.mrb[0].mxu0
        %v2504 = vadd.f32 %v1573, %v2503
        %v2505 = vpop.f32.mrb[0].mxu0
        %v2506 = vadd.f32 %v1577, %v2505
        %2507 = vmatprep.mubr.bf16.mxu0 %v1477
        %2508 = vmatmul.mubr.bf16.gmra.mrb[0].mxu0 %v1476
        %v2509 = vpop.f32.mrb[0].mxu0
        %v2510 = vadd.f32 %v1573, %v2509
        %v2511 = vpop.f32.mrb[0].mxu0
        %v2512 = vadd.f32 %v1577, %v2511
        %v2513 = vpop.f32.mrb[0].mxu0
        %v2514 = vadd.f32 %v1573, %v2513
        %v2515 = vpop.f32.mrb[0].mxu0
        %v2516 = vadd.f32 %v1577, %v2515
        %2517 = vmatprep.mubr.bf16.mxu0 %v1479
        %2518 = vmatmul.mubr.bf16.gmra.mrb[0].mxu0 %v1478
        %v2519 = vpop.f32.mrb[0].mxu0
        %v2520 = vadd.f32 %v1573, %v2519
        %v2521 = vpop.f32.mrb[0].mxu0
        %v2522 = vadd.f32 %v1577, %v2521
        %v2523 = vpop.f32.mrb[0].mxu0
        %v2524 = vadd.f32 %v1573, %v2523
        %v2525 = vpop.f32.mrb[0].mxu0
        %v2526 = vadd.f32 %v1577, %v2525
        %2527 = vmatprep.mubr.bf16.mxu0 %v1481
        %2528 = vmatmul.mubr.bf16.gmra.mrb[0].mxu0 %v1480
        %v2529 = vpop.f32.mrb[0].mxu0
        %v2530 = vadd.f32 %v1573, %v2529
        %v2531 = vpop.f32.mrb[0].mxu0
        %v2532 = vadd.f32 %v1577, %v2531
        %v2533 = vpop.f32.mrb[0].mxu0
        %v2534 = vadd.f32 %v1573, %v2533
        %v2535 = vpop.f32.mrb[0].mxu0
        %v2536 = vadd.f32 %v1577, %v2535
        %2537 = vmatprep.mubr.bf16.mxu0 %v1483
        %2538 = vmatmul.mubr.bf16.gmra.mrb[0].mxu0 %v1482
        %v2539 = vpop.f32.mrb[0].mxu0
        %v2540 = vadd.f32 %v1573, %v2539
        %v2541 = vpop.f32.mrb[0].mxu0
        %v2542 = vadd.f32 %v1577, %v2541
        %v2543 = vpop.f32.mrb[0].mxu0
        %v2544 = vadd.f32 %v1573, %v2543
        %v2545 = vpop.f32.mrb[0].mxu0
        %v2546 = vadd.f32 %v1577, %v2545
        %2547 = vmatprep.mubr.bf16.mxu0 %v1485
        %2548 = vmatmul.mubr.bf16.gmra.mrb[0].mxu0 %v1484
        %v2549 = vpop.f32.mrb[0].mxu0
        %v2550 = vadd.f32 %v1573, %v2549
        %v2551 = vpop.f32.mrb[0].mxu0
        %v2552 = vadd.f32 %v1577, %v2551
        %v2553 = vpop.f32.mrb[0].mxu0
        %v2554 = vadd.f32 %v1573, %v2553
        %v2555 = vpop.f32.mrb[0].mxu0
        %v2556 = vadd.f32 %v1577, %v2555
        %2557 = vmatprep.mubr.bf16.mxu0 %v1487
        %2558 = vmatmul.mubr.bf16.gmra.mrb[0].mxu0 %v1486
        %v2559 = vpop.f32.mrb[0].mxu0
        %v2560 = vadd.f32 %v1573, %v2559
        %v2561 = vpop.f32.mrb[0].mxu0
        %v2562 = vadd.f32 %v1577, %v2561
        %v2563 = vpop.f32.mrb[0].mxu0
        %v2564 = vadd.f32 %v1573, %v2563
        %v2565 = vpop.f32.mrb[0].mxu0
        %v2566 = vadd.f32 %v1577, %v2565
        %2567 = vmatprep.mubr.bf16.mxu0 %v1489
        %2568 = vmatmul.mubr.bf16.gmra.mrb[0].mxu0 %v1488
        %v2569 = vpop.f32.mrb[0].mxu0
        %v2570 = vadd.f32 %v1573, %v2569
        %v2571 = vpop.f32.mrb[0].mxu0
        %v2572 = vadd.f32 %v1577, %v2571
        %v2573 = vpop.f32.mrb[0].mxu0
        %v2574 = vadd.f32 %v1573, %v2573
        %v2575 = vpop.f32.mrb[0].mxu0
        %v2576 = vadd.f32 %v1577, %v2575
        %2577 = vmatprep.mubr.bf16.mxu0 %v1491
        %2578 = vmatmul.mubr.bf16.gmra.mrb[0].mxu0 %v1490
        %v2579 = vpop.f32.mrb[0].mxu0
        %v2580 = vadd.f32 %v1573, %v2579
        %v2581 = vpop.f32.mrb[0].mxu0
        %v2582 = vadd.f32 %v1577, %v2581
        %v2583 = vpop.f32.mrb[0].mxu0
        %v2584 = vadd.f32 %v1573, %v2583
        %v2585 = vpop.f32.mrb[0].mxu0
        %v2586 = vadd.f32 %v1577, %v2585
        %2587 = vmatprep.mubr.bf16.mxu0 %v1493
        %2588 = vmatmul.mubr.bf16.gmra.mrb[0].mxu0 %v1492
        %v2589 = vpop.f32.mrb[0].mxu0
        %v2590 = vadd.f32 %v1573, %v2589
        %v2591 = vpop.f32.mrb[0].mxu0
        %v2592 = vadd.f32 %v1577, %v2591
        %v2593 = vpop.f32.mrb[0].mxu0
        %v2594 = vadd.f32 %v1573, %v2593
        %v2595 = vpop.f32.mrb[0].mxu0
        %v2596 = vadd.f32 %v1577, %v2595
        %2597 = vmatprep.mubr.bf16.mxu0 %v1495
        %2598 = vmatmul.mubr.bf16.gmra.mrb[0].mxu0 %v1494
        %v2599 = vpop.f32.mrb[0].mxu0
        %v2600 = vadd.f32 %v1573, %v2599
        %v2601 = vpop.f32.mrb[0].mxu0
        %v2602 = vadd.f32 %v1577, %v2601
        %v2603 = vpop.f32.mrb[0].mxu0
        %v2604 = vadd.f32 %v1573, %v2603
        %v2605 = vpop.f32.mrb[0].mxu0
        %v2606 = vadd.f32 %v1577, %v2605
        %2607 = vdwg.mxu0
        %v2608 = vpack.c.bf16 %v1941, %v1937
        %v2609 = vpack.c.bf16 %v1943, %v1939
        %v2610 = vpack.c.bf16 %v2294, %v2290
        %v2611 = vpack.c.bf16 %v2296, %v2292
        %v2612 = vpack.c.bf16 %v1951, %v1947
        %v2613 = vpack.c.bf16 %v1953, %v1949
        %v2614 = vpack.c.bf16 %v2304, %v2300
        %v2615 = vpack.c.bf16 %v2306, %v2302
        %v2616 = vpack.c.bf16 %v1961, %v1957
        %v2617 = vpack.c.bf16 %v1963, %v1959
        %v2618 = vpack.c.bf16 %v2314, %v2310
        %v2619 = vpack.c.bf16 %v2316, %v2312
        %v2620 = vpack.c.bf16 %v1971, %v1967
        %v2621 = vpack.c.bf16 %v1973, %v1969
        %v2622 = vpack.c.bf16 %v2324, %v2320
        %v2623 = vpack.c.bf16 %v2326, %v2322
        %v2624 = vpack.c.bf16 %v1981, %v1977
        %v2625 = vpack.c.bf16 %v1983, %v1979
        %v2626 = vpack.c.bf16 %v2334, %v2330
        %v2627 = vpack.c.bf16 %v2336, %v2332
        %v2628 = vpack.c.bf16 %v1991, %v1987
        %v2629 = vpack.c.bf16 %v1993, %v1989
        %v2630 = vpack.c.bf16 %v2344, %v2340
        %v2631 = vpack.c.bf16 %v2346, %v2342
        %v2632 = vpack.c.bf16 %v2001, %v1997
        %v2633 = vpack.c.bf16 %v2003, %v1999
        %v2634 = vpack.c.bf16 %v2354, %v2350
        %v2635 = vpack.c.bf16 %v2356, %v2352
        %v2636 = vpack.c.bf16 %v2011, %v2007
        %v2637 = vpack.c.bf16 %v2013, %v2009
        %v2638 = vpack.c.bf16 %v2364, %v2360
        %v2639 = vpack.c.bf16 %v2366, %v2362
        %v2640 = vpack.c.bf16 %v2021, %v2017
        %v2641 = vpack.c.bf16 %v2023, %v2019
        %v2642 = vpack.c.bf16 %v2374, %v2370
        %v2643 = vpack.c.bf16 %v2376, %v2372
        %v2644 = vpack.c.bf16 %v2031, %v2027
        %v2645 = vpack.c.bf16 %v2033, %v2029
        %v2646 = vpack.c.bf16 %v2384, %v2380
        %v2647 = vpack.c.bf16 %v2386, %v2382
        %v2648 = vpack.c.bf16 %v2041, %v2037
        %v2649 = vpack.c.bf16 %v2043, %v2039
        %v2650 = vpack.c.bf16 %v2394, %v2390
        %v2651 = vpack.c.bf16 %v2396, %v2392
        %v2652 = vpack.c.bf16 %v2051, %v2047
        %v2653 = vpack.c.bf16 %v2053, %v2049
        %v2654 = vpack.c.bf16 %v2404, %v2400
        %v2655 = vpack.c.bf16 %v2406, %v2402
        %v2656 = vpack.c.bf16 %v2061, %v2057
        %v2657 = vpack.c.bf16 %v2063, %v2059
        %v2658 = vpack.c.bf16 %v2414, %v2410
        %v2659 = vpack.c.bf16 %v2416, %v2412
        %v2660 = vpack.c.bf16 %v2071, %v2067
        %v2661 = vpack.c.bf16 %v2073, %v2069
        %v2662 = vpack.c.bf16 %v2424, %v2420
        %v2663 = vpack.c.bf16 %v2426, %v2422
        %v2664 = vpack.c.bf16 %v2081, %v2077
        %v2665 = vpack.c.bf16 %v2083, %v2079
        %v2666 = vpack.c.bf16 %v2434, %v2430
        %v2667 = vpack.c.bf16 %v2436, %v2432
        %v2668 = vpack.c.bf16 %v2091, %v2087
        %v2669 = vpack.c.bf16 %v2093, %v2089
        %v2670 = vpack.c.bf16 %v2444, %v2440
        %v2671 = vpack.c.bf16 %v2446, %v2442
        %v2672 = vpack.c.bf16 %v2101, %v2097
        %v2673 = vpack.c.bf16 %v2103, %v2099
        %v2674 = vpack.c.bf16 %v2454, %v2450
        %v2675 = vpack.c.bf16 %v2456, %v2452
        %v2676 = vpack.c.bf16 %v2111, %v2107
        %v2677 = vpack.c.bf16 %v2113, %v2109
        %v2678 = vpack.c.bf16 %v2464, %v2460
        %v2679 = vpack.c.bf16 %v2466, %v2462
        %v2680 = vpack.c.bf16 %v2121, %v2117
        %v2681 = vpack.c.bf16 %v2123, %v2119
        %v2682 = vpack.c.bf16 %v2474, %v2470
        %v2683 = vpack.c.bf16 %v2476, %v2472
        %v2684 = vpack.c.bf16 %v2131, %v2127
        %v2685 = vpack.c.bf16 %v2133, %v2129
        %v2686 = vpack.c.bf16 %v2484, %v2480
        %v2687 = vpack.c.bf16 %v2486, %v2482
        %v2688 = vpack.c.bf16 %v2141, %v2137
        %v2689 = vpack.c.bf16 %v2143, %v2139
        %v2690 = vpack.c.bf16 %v2494, %v2490
        %v2691 = vpack.c.bf16 %v2496, %v2492
        %v2692 = vpack.c.bf16 %v2151, %v2147
        %v2693 = vpack.c.bf16 %v2153, %v2149
        %v2694 = vpack.c.bf16 %v2504, %v2500
        %v2695 = vpack.c.bf16 %v2506, %v2502
        %v2696 = vpack.c.bf16 %v2161, %v2157
        %v2697 = vpack.c.bf16 %v2163, %v2159
        %v2698 = vpack.c.bf16 %v2514, %v2510
        %v2699 = vpack.c.bf16 %v2516, %v2512
        %v2700 = vpack.c.bf16 %v2171, %v2167
        %v2701 = vpack.c.bf16 %v2173, %v2169
        %v2702 = vpack.c.bf16 %v2524, %v2520
        %v2703 = vpack.c.bf16 %v2526, %v2522
        %v2704 = vpack.c.bf16 %v2181, %v2177
        %v2705 = vpack.c.bf16 %v2183, %v2179
        %v2706 = vpack.c.bf16 %v2534, %v2530
        %v2707 = vpack.c.bf16 %v2536, %v2532
        %v2708 = vpack.c.bf16 %v2191, %v2187
        %v2709 = vpack.c.bf16 %v2193, %v2189
        %v2710 = vpack.c.bf16 %v2544, %v2540
        %v2711 = vpack.c.bf16 %v2546, %v2542
        %v2712 = vpack.c.bf16 %v2201, %v2197
        %v2713 = vpack.c.bf16 %v2203, %v2199
        %v2714 = vpack.c.bf16 %v2554, %v2550
        %v2715 = vpack.c.bf16 %v2556, %v2552
        %v2716 = vpack.c.bf16 %v2211, %v2207
        %v2717 = vpack.c.bf16 %v2213, %v2209
        %v2718 = vpack.c.bf16 %v2564, %v2560
        %v2719 = vpack.c.bf16 %v2566, %v2562
        %v2720 = vpack.c.bf16 %v2221, %v2217
        %v2721 = vpack.c.bf16 %v2223, %v2219
        %v2722 = vpack.c.bf16 %v2574, %v2570
        %v2723 = vpack.c.bf16 %v2576, %v2572
        %v2724 = vpack.c.bf16 %v2231, %v2227
        %v2725 = vpack.c.bf16 %v2233, %v2229
        %v2726 = vpack.c.bf16 %v2584, %v2580
        %v2727 = vpack.c.bf16 %v2586, %v2582
        %v2728 = vpack.c.bf16 %v2241, %v2237
        %v2729 = vpack.c.bf16 %v2243, %v2239
        %v2730 = vpack.c.bf16 %v2594, %v2590
        %v2731 = vpack.c.bf16 %v2596, %v2592
        %v2732 = vpack.c.bf16 %v2251, %v2247
        %v2733 = vpack.c.bf16 %v2253, %v2249
        %v2734 = vpack.c.bf16 %v2604, %v2600
        %v2735 = vpack.c.bf16 %v2606, %v2602
        %v2736 = vmul.bf16 %v2608, %v2608
        %v2737 = vmul.bf16 %v2609, %v2609
        %v2738 = vmul.bf16 %v2610, %v2610
        %v2739 = vmul.bf16 %v2611, %v2611
        %v2740 = vmul.bf16 %v2612, %v2612
        %v2741 = vmul.bf16 %v2613, %v2613
        %v2742 = vmul.bf16 %v2614, %v2614
        %v2743 = vmul.bf16 %v2615, %v2615
        %v2744 = vmul.bf16 %v2616, %v2616
        %v2745 = vmul.bf16 %v2617, %v2617
        %v2746 = vmul.bf16 %v2618, %v2618
        %v2747 = vmul.bf16 %v2619, %v2619
        %v2748 = vmul.bf16 %v2620, %v2620
        %v2749 = vmul.bf16 %v2621, %v2621
        %v2750 = vmul.bf16 %v2622, %v2622
        %v2751 = vmul.bf16 %v2623, %v2623
        %v2752 = vmul.bf16 %v2624, %v2624
        %v2753 = vmul.bf16 %v2625, %v2625
        %v2754 = vmul.bf16 %v2626, %v2626
        %v2755 = vmul.bf16 %v2627, %v2627
        %v2756 = vmul.bf16 %v2628, %v2628
        %v2757 = vmul.bf16 %v2629, %v2629
        %v2758 = vmul.bf16 %v2630, %v2630
        %v2759 = vmul.bf16 %v2631, %v2631
        %v2760 = vmul.bf16 %v2632, %v2632
        %v2761 = vmul.bf16 %v2633, %v2633
        %v2762 = vmul.bf16 %v2634, %v2634
        %v2763 = vmul.bf16 %v2635, %v2635
        %v2764 = vmul.bf16 %v2636, %v2636
        %v2765 = vmul.bf16 %v2637, %v2637
        %v2766 = vmul.bf16 %v2638, %v2638
        %v2767 = vmul.bf16 %v2639, %v2639
        %v2768 = vmul.bf16 %v2640, %v2640
        %v2769 = vmul.bf16 %v2641, %v2641
        %v2770 = vmul.bf16 %v2642, %v2642
        %v2771 = vmul.bf16 %v2643, %v2643
        %v2772 = vmul.bf16 %v2644, %v2644
        %v2773 = vmul.bf16 %v2645, %v2645
        %v2774 = vmul.bf16 %v2646, %v2646
        %v2775 = vmul.bf16 %v2647, %v2647
        %v2776 = vmul.bf16 %v2648, %v2648
        %v2777 = vmul.bf16 %v2649, %v2649
        %v2778 = vmul.bf16 %v2650, %v2650
        %v2779 = vmul.bf16 %v2651, %v2651
        %v2780 = vmul.bf16 %v2652, %v2652
        %v2781 = vmul.bf16 %v2653, %v2653
        %v2782 = vmul.bf16 %v2654, %v2654
        %v2783 = vmul.bf16 %v2655, %v2655
        %v2784 = vmul.bf16 %v2656, %v2656
        %v2785 = vmul.bf16 %v2657, %v2657
        %v2786 = vmul.bf16 %v2658, %v2658
        %v2787 = vmul.bf16 %v2659, %v2659
        %v2788 = vmul.bf16 %v2660, %v2660
        %v2789 = vmul.bf16 %v2661, %v2661
        %v2790 = vmul.bf16 %v2662, %v2662
        %v2791 = vmul.bf16 %v2663, %v2663
        %v2792 = vmul.bf16 %v2664, %v2664
        %v2793 = vmul.bf16 %v2665, %v2665
        %v2794 = vmul.bf16 %v2666, %v2666
        %v2795 = vmul.bf16 %v2667, %v2667
        %v2796 = vmul.bf16 %v2668, %v2668
        %v2797 = vmul.bf16 %v2669, %v2669
        %v2798 = vmul.bf16 %v2670, %v2670
        %v2799 = vmul.bf16 %v2671, %v2671
        %v2800 = vmul.bf16 %v2672, %v2672
        %v2801 = vmul.bf16 %v2673, %v2673
        %v2802 = vmul.bf16 %v2674, %v2674
        %v2803 = vmul.bf16 %v2675, %v2675
        %v2804 = vmul.bf16 %v2676, %v2676
        %v2805 = vmul.bf16 %v2677, %v2677
        %v2806 = vmul.bf16 %v2678, %v2678
        %v2807 = vmul.bf16 %v2679, %v2679
        %v2808 = vmul.bf16 %v2680, %v2680
        %v2809 = vmul.bf16 %v2681, %v2681
        %v2810 = vmul.bf16 %v2682, %v2682
        %v2811 = vmul.bf16 %v2683, %v2683
        %v2812 = vmul.bf16 %v2684, %v2684
        %v2813 = vmul.bf16 %v2685, %v2685
        %v2814 = vmul.bf16 %v2686, %v2686
        %v2815 = vmul.bf16 %v2687, %v2687
        %v2816 = vmul.bf16 %v2688, %v2688
        %v2817 = vmul.bf16 %v2689, %v2689
        %v2818 = vmul.bf16 %v2690, %v2690
        %v2819 = vmul.bf16 %v2691, %v2691
        %v2820 = vmul.bf16 %v2692, %v2692
        %v2821 = vmul.bf16 %v2693, %v2693
        %v2822 = vmul.bf16 %v2694, %v2694
        %v2823 = vmul.bf16 %v2695, %v2695
        %v2824 = vmul.bf16 %v2696, %v2696
        %v2825 = vmul.bf16 %v2697, %v2697
        %v2826 = vmul.bf16 %v2698, %v2698
        %v2827 = vmul.bf16 %v2699, %v2699
        %v2828 = vmul.bf16 %v2700, %v2700
        %v2829 = vmul.bf16 %v2701, %v2701
        %v2830 = vmul.bf16 %v2702, %v2702
        %v2831 = vmul.bf16 %v2703, %v2703
        %v2832 = vmul.bf16 %v2704, %v2704
        %v2833 = vmul.bf16 %v2705, %v2705
        %v2834 = vmul.bf16 %v2706, %v2706
        %v2835 = vmul.bf16 %v2707, %v2707
        %v2836 = vmul.bf16 %v2708, %v2708
        %v2837 = vmul.bf16 %v2709, %v2709
        %v2838 = vmul.bf16 %v2710, %v2710
        %v2839 = vmul.bf16 %v2711, %v2711
        %v2840 = vmul.bf16 %v2712, %v2712
        %v2841 = vmul.bf16 %v2713, %v2713
        %v2842 = vmul.bf16 %v2714, %v2714
        %v2843 = vmul.bf16 %v2715, %v2715
        %v2844 = vmul.bf16 %v2716, %v2716
        %v2845 = vmul.bf16 %v2717, %v2717
        %v2846 = vmul.bf16 %v2718, %v2718
        %v2847 = vmul.bf16 %v2719, %v2719
        %v2848 = vmul.bf16 %v2720, %v2720
        %v2849 = vmul.bf16 %v2721, %v2721
        %v2850 = vmul.bf16 %v2722, %v2722
        %v2851 = vmul.bf16 %v2723, %v2723
        %v2852 = vmul.bf16 %v2724, %v2724
        %v2853 = vmul.bf16 %v2725, %v2725
        %v2854 = vmul.bf16 %v2726, %v2726
        %v2855 = vmul.bf16 %v2727, %v2727
        %v2856 = vmul.bf16 %v2728, %v2728
        %v2857 = vmul.bf16 %v2729, %v2729
        %v2858 = vmul.bf16 %v2730, %v2730
        %v2859 = vmul.bf16 %v2731, %v2731
        %v2860 = vmul.bf16 %v2732, %v2732
        %v2861 = vmul.bf16 %v2733, %v2733
        %v2862 = vmul.bf16 %v2734, %v2734
        %v2863 = vmul.bf16 %v2735, %v2735
        %v2864 = vmul.bf16 %v2608, %v2736
        %v2865 = vmul.bf16 %v2609, %v2737
        %v2866 = vmul.bf16 %v2610, %v2738
        %v2867 = vmul.bf16 %v2611, %v2739
        %v2868 = vmul.bf16 %v2612, %v2740
        %v2869 = vmul.bf16 %v2613, %v2741
        %v2870 = vmul.bf16 %v2614, %v2742
        %v2871 = vmul.bf16 %v2615, %v2743
        %v2872 = vmul.bf16 %v2616, %v2744
        %v2873 = vmul.bf16 %v2617, %v2745
        %v2874 = vmul.bf16 %v2618, %v2746
        %v2875 = vmul.bf16 %v2619, %v2747
        %v2876 = vmul.bf16 %v2620, %v2748
        %v2877 = vmul.bf16 %v2621, %v2749
        %v2878 = vmul.bf16 %v2622, %v2750
        %v2879 = vmul.bf16 %v2623, %v2751
        %v2880 = vmul.bf16 %v2624, %v2752
        %v2881 = vmul.bf16 %v2625, %v2753
        %v2882 = vmul.bf16 %v2626, %v2754
        %v2883 = vmul.bf16 %v2627, %v2755
        %v2884 = vmul.bf16 %v2628, %v2756
        %v2885 = vmul.bf16 %v2629, %v2757
        %v2886 = vmul.bf16 %v2630, %v2758
        %v2887 = vmul.bf16 %v2631, %v2759
        %v2888 = vmul.bf16 %v2632, %v2760
        %v2889 = vmul.bf16 %v2633, %v2761
        %v2890 = vmul.bf16 %v2634, %v2762
        %v2891 = vmul.bf16 %v2635, %v2763
        %v2892 = vmul.bf16 %v2636, %v2764
        %v2893 = vmul.bf16 %v2637, %v2765
        %v2894 = vmul.bf16 %v2638, %v2766
        %v2895 = vmul.bf16 %v2639, %v2767
        %v2896 = vmul.bf16 %v2640, %v2768
        %v2897 = vmul.bf16 %v2641, %v2769
        %v2898 = vmul.bf16 %v2642, %v2770
        %v2899 = vmul.bf16 %v2643, %v2771
        %v2900 = vmul.bf16 %v2644, %v2772
        %v2901 = vmul.bf16 %v2645, %v2773
        %v2902 = vmul.bf16 %v2646, %v2774
        %v2903 = vmul.bf16 %v2647, %v2775
        %v2904 = vmul.bf16 %v2648, %v2776
        %v2905 = vmul.bf16 %v2649, %v2777
        %v2906 = vmul.bf16 %v2650, %v2778
        %v2907 = vmul.bf16 %v2651, %v2779
        %v2908 = vmul.bf16 %v2652, %v2780
        %v2909 = vmul.bf16 %v2653, %v2781
        %v2910 = vmul.bf16 %v2654, %v2782
        %v2911 = vmul.bf16 %v2655, %v2783
        %v2912 = vmul.bf16 %v2656, %v2784
        %v2913 = vmul.bf16 %v2657, %v2785
        %v2914 = vmul.bf16 %v2658, %v2786
        %v2915 = vmul.bf16 %v2659, %v2787
        %v2916 = vmul.bf16 %v2660, %v2788
        %v2917 = vmul.bf16 %v2661, %v2789
        %v2918 = vmul.bf16 %v2662, %v2790
        %v2919 = vmul.bf16 %v2663, %v2791
        %v2920 = vmul.bf16 %v2664, %v2792
        %v2921 = vmul.bf16 %v2665, %v2793
        %v2922 = vmul.bf16 %v2666, %v2794
        %v2923 = vmul.bf16 %v2667, %v2795
        %v2924 = vmul.bf16 %v2668, %v2796
        %v2925 = vmul.bf16 %v2669, %v2797
        %v2926 = vmul.bf16 %v2670, %v2798
        %v2927 = vmul.bf16 %v2671, %v2799
        %v2928 = vmul.bf16 %v2672, %v2800
        %v2929 = vmul.bf16 %v2673, %v2801
        %v2930 = vmul.bf16 %v2674, %v2802
        %v2931 = vmul.bf16 %v2675, %v2803
        %v2932 = vmul.bf16 %v2676, %v2804
        %v2933 = vmul.bf16 %v2677, %v2805
        %v2934 = vmul.bf16 %v2678, %v2806
        %v2935 = vmul.bf16 %v2679, %v2807
        %v2936 = vmul.bf16 %v2680, %v2808
        %v2937 = vmul.bf16 %v2681, %v2809
        %v2938 = vmul.bf16 %v2682, %v2810
        %v2939 = vmul.bf16 %v2683, %v2811
        %v2940 = vmul.bf16 %v2684, %v2812
        %v2941 = vmul.bf16 %v2685, %v2813
        %v2942 = vmul.bf16 %v2686, %v2814
        %v2943 = vmul.bf16 %v2687, %v2815
        %v2944 = vmul.bf16 %v2688, %v2816
        %v2945 = vmul.bf16 %v2689, %v2817
        %v2946 = vmul.bf16 %v2690, %v2818
        %v2947 = vmul.bf16 %v2691, %v2819
        %v2948 = vmul.bf16 %v2692, %v2820
        %v2949 = vmul.bf16 %v2693, %v2821
        %v2950 = vmul.bf16 %v2694, %v2822
        %v2951 = vmul.bf16 %v2695, %v2823
        %v2952 = vmul.bf16 %v2696, %v2824
        %v2953 = vmul.bf16 %v2697, %v2825
        %v2954 = vmul.bf16 %v2698, %v2826
        %v2955 = vmul.bf16 %v2699, %v2827
        %v2956 = vmul.bf16 %v2700, %v2828
        %v2957 = vmul.bf16 %v2701, %v2829
        %v2958 = vmul.bf16 %v2702, %v2830
        %v2959 = vmul.bf16 %v2703, %v2831
        %v2960 = vmul.bf16 %v2704, %v2832
        %v2961 = vmul.bf16 %v2705, %v2833
        %v2962 = vmul.bf16 %v2706, %v2834
        %v2963 = vmul.bf16 %v2707, %v2835
        %v2964 = vmul.bf16 %v2708, %v2836
        %v2965 = vmul.bf16 %v2709, %v2837
        %v2966 = vmul.bf16 %v2710, %v2838
        %v2967 = vmul.bf16 %v2711, %v2839
        %v2968 = vmul.bf16 %v2712, %v2840
        %v2969 = vmul.bf16 %v2713, %v2841
        %v2970 = vmul.bf16 %v2714, %v2842
        %v2971 = vmul.bf16 %v2715, %v2843
        %v2972 = vmul.bf16 %v2716, %v2844
        %v2973 = vmul.bf16 %v2717, %v2845
        %v2974 = vmul.bf16 %v2718, %v2846
        %v2975 = vmul.bf16 %v2719, %v2847
        %v2976 = vmul.bf16 %v2720, %v2848
        %v2977 = vmul.bf16 %v2721, %v2849
        %v2978 = vmul.bf16 %v2722, %v2850
        %v2979 = vmul.bf16 %v2723, %v2851
        %v2980 = vmul.bf16 %v2724, %v2852
        %v2981 = vmul.bf16 %v2725, %v2853
        %v2982 = vmul.bf16 %v2726, %v2854
        %v2983 = vmul.bf16 %v2727, %v2855
        %v2984 = vmul.bf16 %v2728, %v2856
        %v2985 = vmul.bf16 %v2729, %v2857
        %v2986 = vmul.bf16 %v2730, %v2858
        %v2987 = vmul.bf16 %v2731, %v2859
        %v2988 = vmul.bf16 %v2732, %v2860
        %v2989 = vmul.bf16 %v2733, %v2861
        %v2990 = vmul.bf16 %v2734, %v2862
        %v2991 = vmul.bf16 %v2735, %v2863
        %v2992 = vmul.bf16 %v2864, 1027030327
        %v2993 = vmul.bf16 %v2865, 1027030327
        %v2994 = vmul.bf16 %v2866, 1027030327
        %v2995 = vmul.bf16 %v2867, 1027030327
        %v2996 = vmul.bf16 %v2868, 1027030327
        %v2997 = vmul.bf16 %v2869, 1027030327
        %v2998 = vmul.bf16 %v2870, 1027030327
        %v2999 = vmul.bf16 %v2871, 1027030327
        %v3000 = vmul.bf16 %v2872, 1027030327
        %v3001 = vmul.bf16 %v2873, 1027030327
        %v3002 = vmul.bf16 %v2874, 1027030327
        %v3003 = vmul.bf16 %v2875, 1027030327
        %v3004 = vmul.bf16 %v2876, 1027030327
        %v3005 = vmul.bf16 %v2877, 1027030327
        %v3006 = vmul.bf16 %v2878, 1027030327
        %v3007 = vmul.bf16 %v2879, 1027030327
        %v3008 = vmul.bf16 %v2880, 1027030327
        %v3009 = vmul.bf16 %v2881, 1027030327
        %v3010 = vmul.bf16 %v2882, 1027030327
        %v3011 = vmul.bf16 %v2883, 1027030327
        %v3012 = vmul.bf16 %v2884, 1027030327
        %v3013 = vmul.bf16 %v2885, 1027030327
        %v3014 = vmul.bf16 %v2886, 1027030327
        %v3015 = vmul.bf16 %v2887, 1027030327
        %v3016 = vmul.bf16 %v2888, 1027030327
        %v3017 = vmul.bf16 %v2889, 1027030327
        %v3018 = vmul.bf16 %v2890, 1027030327
        %v3019 = vmul.bf16 %v2891, 1027030327
        %v3020 = vmul.bf16 %v2892, 1027030327
        %v3021 = vmul.bf16 %v2893, 1027030327
        %v3022 = vmul.bf16 %v2894, 1027030327
        %v3023 = vmul.bf16 %v2895, 1027030327
        %v3024 = vmul.bf16 %v2896, 1027030327
        %v3025 = vmul.bf16 %v2897, 1027030327
        %v3026 = vmul.bf16 %v2898, 1027030327
        %v3027 = vmul.bf16 %v2899, 1027030327
        %v3028 = vmul.bf16 %v2900, 1027030327
        %v3029 = vmul.bf16 %v2901, 1027030327
        %v3030 = vmul.bf16 %v2902, 1027030327
        %v3031 = vmul.bf16 %v2903, 1027030327
        %v3032 = vmul.bf16 %v2904, 1027030327
        %v3033 = vmul.bf16 %v2905, 1027030327
        %v3034 = vmul.bf16 %v2906, 1027030327
        %v3035 = vmul.bf16 %v2907, 1027030327
        %v3036 = vmul.bf16 %v2908, 1027030327
        %v3037 = vmul.bf16 %v2909, 1027030327
        %v3038 = vmul.bf16 %v2910, 1027030327
        %v3039 = vmul.bf16 %v2911, 1027030327
        %v3040 = vmul.bf16 %v2912, 1027030327
        %v3041 = vmul.bf16 %v2913, 1027030327
        %v3042 = vmul.bf16 %v2914, 1027030327
        %v3043 = vmul.bf16 %v2915, 1027030327
        %v3044 = vmul.bf16 %v2916, 1027030327
        %v3045 = vmul.bf16 %v2917, 1027030327
        %v3046 = vmul.bf16 %v2918, 1027030327
        %v3047 = vmul.bf16 %v2919, 1027030327
        %v3048 = vmul.bf16 %v2920, 1027030327
        %v3049 = vmul.bf16 %v2921, 1027030327
        %v3050 = vmul.bf16 %v2922, 1027030327
        %v3051 = vmul.bf16 %v2923, 1027030327
        %v3052 = vmul.bf16 %v2924, 1027030327
        %v3053 = vmul.bf16 %v2925, 1027030327
        %v3054 = vmul.bf16 %v2926, 1027030327
        %v3055 = vmul.bf16 %v2927, 1027030327
        %v3056 = vmul.bf16 %v2928, 1027030327
        %v3057 = vmul.bf16 %v2929, 1027030327
        %v3058 = vmul.bf16 %v2930, 1027030327
        %v3059 = vmul.bf16 %v2931, 1027030327
        %v3060 = vmul.bf16 %v2932, 1027030327
        %v3061 = vmul.bf16 %v2933, 1027030327
        %v3062 = vmul.bf16 %v2934, 1027030327
        %v3063 = vmul.bf16 %v2935, 1027030327
        %v3064 = vmul.bf16 %v2936, 1027030327
        %v3065 = vmul.bf16 %v2937, 1027030327
        %v3066 = vmul.bf16 %v2938, 1027030327
        %v3067 = vmul.bf16 %v2939, 1027030327
        %v3068 = vmul.bf16 %v2940, 1027030327
        %v3069 = vmul.bf16 %v2941, 1027030327
        %v3070 = vmul.bf16 %v2942, 1027030327
        %v3071 = vmul.bf16 %v2943, 1027030327
        %v3072 = vmul.bf16 %v2944, 1027030327
        %v3073 = vmul.bf16 %v2945, 1027030327
        %v3074 = vmul.bf16 %v2946, 1027030327
        %v3075 = vmul.bf16 %v2947, 1027030327
        %v3076 = vmul.bf16 %v2948, 1027030327
        %v3077 = vmul.bf16 %v2949, 1027030327
        %v3078 = vmul.bf16 %v2950, 1027030327
        %v3079 = vmul.bf16 %v2951, 1027030327
        %v3080 = vmul.bf16 %v2952, 1027030327
        %v3081 = vmul.bf16 %v2953, 1027030327
        %v3082 = vmul.bf16 %v2954, 1027030327
        %v3083 = vmul.bf16 %v2955, 1027030327
        %v3084 = vmul.bf16 %v2956, 1027030327
        %v3085 = vmul.bf16 %v2957, 1027030327
        %v3086 = vmul.bf16 %v2958, 1027030327
        %v3087 = vmul.bf16 %v2959, 1027030327
        %v3088 = vmul.bf16 %v2960, 1027030327
        %v3089 = vmul.bf16 %v2961, 1027030327
        %v3090 = vmul.bf16 %v2962, 1027030327
        %v3091 = vmul.bf16 %v2963, 1027030327
        %v3092 = vmul.bf16 %v2964, 1027030327
        %v3093 = vmul.bf16 %v2965, 1027030327
        %v3094 = vmul.bf16 %v2966, 1027030327
        %v3095 = vmul.bf16 %v2967, 1027030327
        %v3096 = vmul.bf16 %v2968, 1027030327
        %v3097 = vmul.bf16 %v2969, 1027030327
        %v3098 = vmul.bf16 %v2970, 1027030327
        %v3099 = vmul.bf16 %v2971, 1027030327
        %v3100 = vmul.bf16 %v2972, 1027030327
        %v3101 = vmul.bf16 %v2973, 1027030327
        %v3102 = vmul.bf16 %v2974, 1027030327
        %v3103 = vmul.bf16 %v2975, 1027030327
        %v3104 = vmul.bf16 %v2976, 1027030327
        %v3105 = vmul.bf16 %v2977, 1027030327
        %v3106 = vmul.bf16 %v2978, 1027030327
        %v3107 = vmul.bf16 %v2979, 1027030327
        %v3108 = vmul.bf16 %v2980, 1027030327
        %v3109 = vmul.bf16 %v2981, 1027030327
        %v3110 = vmul.bf16 %v2982, 1027030327
        %v3111 = vmul.bf16 %v2983, 1027030327
        %v3112 = vmul.bf16 %v2984, 1027030327
        %v3113 = vmul.bf16 %v2985, 1027030327
        %v3114 = vmul.bf16 %v2986, 1027030327
        %v3115 = vmul.bf16 %v2987, 1027030327
        %v3116 = vmul.bf16 %v2988, 1027030327
        %v3117 = vmul.bf16 %v2989, 1027030327
        %v3118 = vmul.bf16 %v2990, 1027030327
        %v3119 = vmul.bf16 %v2991, 1027030327
        %v3120 = vadd.bf16 %v2608, %v2992
        %v3121 = vadd.bf16 %v2609, %v2993
        %v3122 = vadd.bf16 %v2610, %v2994
        %v3123 = vadd.bf16 %v2611, %v2995
        %v3124 = vadd.bf16 %v2612, %v2996
        %v3125 = vadd.bf16 %v2613, %v2997
        %v3126 = vadd.bf16 %v2614, %v2998
        %v3127 = vadd.bf16 %v2615, %v2999
        %v3128 = vadd.bf16 %v2616, %v3000
        %v3129 = vadd.bf16 %v2617, %v3001
        %v3130 = vadd.bf16 %v2618, %v3002
        %v3131 = vadd.bf16 %v2619, %v3003
        %v3132 = vadd.bf16 %v2620, %v3004
        %v3133 = vadd.bf16 %v2621, %v3005
        %v3134 = vadd.bf16 %v2622, %v3006
        %v3135 = vadd.bf16 %v2623, %v3007
        %v3136 = vadd.bf16 %v2624, %v3008
        %v3137 = vadd.bf16 %v2625, %v3009
        %v3138 = vadd.bf16 %v2626, %v3010
        %v3139 = vadd.bf16 %v2627, %v3011
        %v3140 = vadd.bf16 %v2628, %v3012
        %v3141 = vadd.bf16 %v2629, %v3013
        %v3142 = vadd.bf16 %v2630, %v3014
        %v3143 = vadd.bf16 %v2631, %v3015
        %v3144 = vadd.bf16 %v2632, %v3016
        %v3145 = vadd.bf16 %v2633, %v3017
        %v3146 = vadd.bf16 %v2634, %v3018
        %v3147 = vadd.bf16 %v2635, %v3019
        %v3148 = vadd.bf16 %v2636, %v3020
        %v3149 = vadd.bf16 %v2637, %v3021
        %v3150 = vadd.bf16 %v2638, %v3022
        %v3151 = vadd.bf16 %v2639, %v3023
        %v3152 = vadd.bf16 %v2640, %v3024
        %v3153 = vadd.bf16 %v2641, %v3025
        %v3154 = vadd.bf16 %v2642, %v3026
        %v3155 = vadd.bf16 %v2643, %v3027
        %v3156 = vadd.bf16 %v2644, %v3028
        %v3157 = vadd.bf16 %v2645, %v3029
        %v3158 = vadd.bf16 %v2646, %v3030
        %v3159 = vadd.bf16 %v2647, %v3031
        %v3160 = vadd.bf16 %v2648, %v3032
        %v3161 = vadd.bf16 %v2649, %v3033
        %v3162 = vadd.bf16 %v2650, %v3034
        %v3163 = vadd.bf16 %v2651, %v3035
        %v3164 = vadd.bf16 %v2652, %v3036
        %v3165 = vadd.bf16 %v2653, %v3037
        %v3166 = vadd.bf16 %v2654, %v3038
        %v3167 = vadd.bf16 %v2655, %v3039
        %v3168 = vadd.bf16 %v2656, %v3040
        %v3169 = vadd.bf16 %v2657, %v3041
        %v3170 = vadd.bf16 %v2658, %v3042
        %v3171 = vadd.bf16 %v2659, %v3043
        %v3172 = vadd.bf16 %v2660, %v3044
        %v3173 = vadd.bf16 %v2661, %v3045
        %v3174 = vadd.bf16 %v2662, %v3046
        %v3175 = vadd.bf16 %v2663, %v3047
        %v3176 = vadd.bf16 %v2664, %v3048
        %v3177 = vadd.bf16 %v2665, %v3049
        %v3178 = vadd.bf16 %v2666, %v3050
        %v3179 = vadd.bf16 %v2667, %v3051
        %v3180 = vadd.bf16 %v2668, %v3052
        %v3181 = vadd.bf16 %v2669, %v3053
        %v3182 = vadd.bf16 %v2670, %v3054
        %v3183 = vadd.bf16 %v2671, %v3055
        %v3184 = vadd.bf16 %v2672, %v3056
        %v3185 = vadd.bf16 %v2673, %v3057
        %v3186 = vadd.bf16 %v2674, %v3058
        %v3187 = vadd.bf16 %v2675, %v3059
        %v3188 = vadd.bf16 %v2676, %v3060
        %v3189 = vadd.bf16 %v2677, %v3061
        %v3190 = vadd.bf16 %v2678, %v3062
        %v3191 = vadd.bf16 %v2679, %v3063
        %v3192 = vadd.bf16 %v2680, %v3064
        %v3193 = vadd.bf16 %v2681, %v3065
        %v3194 = vadd.bf16 %v2682, %v3066
        %v3195 = vadd.bf16 %v2683, %v3067
        %v3196 = vadd.bf16 %v2684, %v3068
        %v3197 = vadd.bf16 %v2685, %v3069
        %v3198 = vadd.bf16 %v2686, %v3070
        %v3199 = vadd.bf16 %v2687, %v3071
        %v3200 = vadd.bf16 %v2688, %v3072
        %v3201 = vadd.bf16 %v2689, %v3073
        %v3202 = vadd.bf16 %v2690, %v3074
        %v3203 = vadd.bf16 %v2691, %v3075
        %v3204 = vadd.bf16 %v2692, %v3076
        %v3205 = vadd.bf16 %v2693, %v3077
        %v3206 = vadd.bf16 %v2694, %v3078
        %v3207 = vadd.bf16 %v2695, %v3079
        %v3208 = vadd.bf16 %v2696, %v3080
        %v3209 = vadd.bf16 %v2697, %v3081
        %v3210 = vadd.bf16 %v2698, %v3082
        %v3211 = vadd.bf16 %v2699, %v3083
        %v3212 = vadd.bf16 %v2700, %v3084
        %v3213 = vadd.bf16 %v2701, %v3085
        %v3214 = vadd.bf16 %v2702, %v3086
        %v3215 = vadd.bf16 %v2703, %v3087
        %v3216 = vadd.bf16 %v2704, %v3088
        %v3217 = vadd.bf16 %v2705, %v3089
        %v3218 = vadd.bf16 %v2706, %v3090
        %v3219 = vadd.bf16 %v2707, %v3091
        %v3220 = vadd.bf16 %v2708, %v3092
        %v3221 = vadd.bf16 %v2709, %v3093
        %v3222 = vadd.bf16 %v2710, %v3094
        %v3223 = vadd.bf16 %v2711, %v3095
        %v3224 = vadd.bf16 %v2712, %v3096
        %v3225 = vadd.bf16 %v2713, %v3097
        %v3226 = vadd.bf16 %v2714, %v3098
        %v3227 = vadd.bf16 %v2715, %v3099
        %v3228 = vadd.bf16 %v2716, %v3100
        %v3229 = vadd.bf16 %v2717, %v3101
        %v3230 = vadd.bf16 %v2718, %v3102
        %v3231 = vadd.bf16 %v2719, %v3103
        %v3232 = vadd.bf16 %v2720, %v3104
        %v3233 = vadd.bf16 %v2721, %v3105
        %v3234 = vadd.bf16 %v2722, %v3106
        %v3235 = vadd.bf16 %v2723, %v3107
        %v3236 = vadd.bf16 %v2724, %v3108
        %v3237 = vadd.bf16 %v2725, %v3109
        %v3238 = vadd.bf16 %v2726, %v3110
        %v3239 = vadd.bf16 %v2727, %v3111
        %v3240 = vadd.bf16 %v2728, %v3112
        %v3241 = vadd.bf16 %v2729, %v3113
        %v3242 = vadd.bf16 %v2730, %v3114
        %v3243 = vadd.bf16 %v2731, %v3115
        %v3244 = vadd.bf16 %v2732, %v3116
        %v3245 = vadd.bf16 %v2733, %v3117
        %v3246 = vadd.bf16 %v2734, %v3118
        %v3247 = vadd.bf16 %v2735, %v3119
        %v3248 = vmul.bf16 %v3120, 1061961548
        %v3249 = vmul.bf16 %v3121, 1061961548
        %v3250 = vmul.bf16 %v3122, 1061961548
        %v3251 = vmul.bf16 %v3123, 1061961548
        %v3252 = vmul.bf16 %v3124, 1061961548
        %v3253 = vmul.bf16 %v3125, 1061961548
        %v3254 = vmul.bf16 %v3126, 1061961548
        %v3255 = vmul.bf16 %v3127, 1061961548
        %v3256 = vmul.bf16 %v3128, 1061961548
        %v3257 = vmul.bf16 %v3129, 1061961548
        %v3258 = vmul.bf16 %v3130, 1061961548
        %v3259 = vmul.bf16 %v3131, 1061961548
        %v3260 = vmul.bf16 %v3132, 1061961548
        %v3261 = vmul.bf16 %v3133, 1061961548
        %v3262 = vmul.bf16 %v3134, 1061961548
        %v3263 = vmul.bf16 %v3135, 1061961548
        %v3264 = vmul.bf16 %v3136, 1061961548
        %v3265 = vmul.bf16 %v3137, 1061961548
        %v3266 = vmul.bf16 %v3138, 1061961548
        %v3267 = vmul.bf16 %v3139, 1061961548
        %v3268 = vmul.bf16 %v3140, 1061961548
        %v3269 = vmul.bf16 %v3141, 1061961548
        %v3270 = vmul.bf16 %v3142, 1061961548
        %v3271 = vmul.bf16 %v3143, 1061961548
        %v3272 = vmul.bf16 %v3144, 1061961548
        %v3273 = vmul.bf16 %v3145, 1061961548
        %v3274 = vmul.bf16 %v3146, 1061961548
        %v3275 = vmul.bf16 %v3147, 1061961548
        %v3276 = vmul.bf16 %v3148, 1061961548
        %v3277 = vmul.bf16 %v3149, 1061961548
        %v3278 = vmul.bf16 %v3150, 1061961548
        %v3279 = vmul.bf16 %v3151, 1061961548
        %v3280 = vmul.bf16 %v3152, 1061961548
        %v3281 = vmul.bf16 %v3153, 1061961548
        %v3282 = vmul.bf16 %v3154, 1061961548
        %v3283 = vmul.bf16 %v3155, 1061961548
        %v3284 = vmul.bf16 %v3156, 1061961548
        %v3285 = vmul.bf16 %v3157, 1061961548
        %v3286 = vmul.bf16 %v3158, 1061961548
        %v3287 = vmul.bf16 %v3159, 1061961548
        %v3288 = vmul.bf16 %v3160, 1061961548
        %v3289 = vmul.bf16 %v3161, 1061961548
        %v3290 = vmul.bf16 %v3162, 1061961548
        %v3291 = vmul.bf16 %v3163, 1061961548
        %v3292 = vmul.bf16 %v3164, 1061961548
        %v3293 = vmul.bf16 %v3165, 1061961548
        %v3294 = vmul.bf16 %v3166, 1061961548
        %v3295 = vmul.bf16 %v3167, 1061961548
        %v3296 = vmul.bf16 %v3168, 1061961548
        %v3297 = vmul.bf16 %v3169, 1061961548
        %v3298 = vmul.bf16 %v3170, 1061961548
        %v3299 = vmul.bf16 %v3171, 1061961548
        %v3300 = vmul.bf16 %v3172, 1061961548
        %v3301 = vmul.bf16 %v3173, 1061961548
        %v3302 = vmul.bf16 %v3174, 1061961548
        %v3303 = vmul.bf16 %v3175, 1061961548
        %v3304 = vmul.bf16 %v3176, 1061961548
        %v3305 = vmul.bf16 %v3177, 1061961548
        %v3306 = vmul.bf16 %v3178, 1061961548
        %v3307 = vmul.bf16 %v3179, 1061961548
        %v3308 = vmul.bf16 %v3180, 1061961548
        %v3309 = vmul.bf16 %v3181, 1061961548
        %v3310 = vmul.bf16 %v3182, 1061961548
        %v3311 = vmul.bf16 %v3183, 1061961548
        %v3312 = vmul.bf16 %v3184, 1061961548
        %v3313 = vmul.bf16 %v3185, 1061961548
        %v3314 = vmul.bf16 %v3186, 1061961548
        %v3315 = vmul.bf16 %v3187, 1061961548
        %v3316 = vmul.bf16 %v3188, 1061961548
        %v3317 = vmul.bf16 %v3189, 1061961548
        %v3318 = vmul.bf16 %v3190, 1061961548
        %v3319 = vmul.bf16 %v3191, 1061961548
        %v3320 = vmul.bf16 %v3192, 1061961548
        %v3321 = vmul.bf16 %v3193, 1061961548
        %v3322 = vmul.bf16 %v3194, 1061961548
        %v3323 = vmul.bf16 %v3195, 1061961548
        %v3324 = vmul.bf16 %v3196, 1061961548
        %v3325 = vmul.bf16 %v3197, 1061961548
        %v3326 = vmul.bf16 %v3198, 1061961548
        %v3327 = vmul.bf16 %v3199, 1061961548
        %v3328 = vmul.bf16 %v3200, 1061961548
        %v3329 = vmul.bf16 %v3201, 1061961548
        %v3330 = vmul.bf16 %v3202, 1061961548
        %v3331 = vmul.bf16 %v3203, 1061961548
        %v3332 = vmul.bf16 %v3204, 1061961548
        %v3333 = vmul.bf16 %v3205, 1061961548
        %v3334 = vmul.bf16 %v3206, 1061961548
        %v3335 = vmul.bf16 %v3207, 1061961548
        %v3336 = vmul.bf16 %v3208, 1061961548
        %v3337 = vmul.bf16 %v3209, 1061961548
        %v3338 = vmul.bf16 %v3210, 1061961548
        %v3339 = vmul.bf16 %v3211, 1061961548
        %v3340 = vmul.bf16 %v3212, 1061961548
        %v3341 = vmul.bf16 %v3213, 1061961548
        %v3342 = vmul.bf16 %v3214, 1061961548
        %v3343 = vmul.bf16 %v3215, 1061961548
        %v3344 = vmul.bf16 %v3216, 1061961548
        %v3345 = vmul.bf16 %v3217, 1061961548
        %v3346 = vmul.bf16 %v3218, 1061961548
        %v3347 = vmul.bf16 %v3219, 1061961548
        %v3348 = vmul.bf16 %v3220, 1061961548
        %v3349 = vmul.bf16 %v3221, 1061961548
        %v3350 = vmul.bf16 %v3222, 1061961548
        %v3351 = vmul.bf16 %v3223, 1061961548
        %v3352 = vmul.bf16 %v3224, 1061961548
        %v3353 = vmul.bf16 %v3225, 1061961548
        %v3354 = vmul.bf16 %v3226, 1061961548
        %v3355 = vmul.bf16 %v3227, 1061961548
        %v3356 = vmul.bf16 %v3228, 1061961548
        %v3357 = vmul.bf16 %v3229, 1061961548
        %v3358 = vmul.bf16 %v3230, 1061961548
        %v3359 = vmul.bf16 %v3231, 1061961548
        %v3360 = vmul.bf16 %v3232, 1061961548
        %v3361 = vmul.bf16 %v3233, 1061961548
        %v3362 = vmul.bf16 %v3234, 1061961548
        %v3363 = vmul.bf16 %v3235, 1061961548
        %v3364 = vmul.bf16 %v3236, 1061961548
        %v3365 = vmul.bf16 %v3237, 1061961548
        %v3366 = vmul.bf16 %v3238, 1061961548
        %v3367 = vmul.bf16 %v3239, 1061961548
        %v3368 = vmul.bf16 %v3240, 1061961548
        %v3369 = vmul.bf16 %v3241, 1061961548
        %v3370 = vmul.bf16 %v3242, 1061961548
        %v3371 = vmul.bf16 %v3243, 1061961548
        %v3372 = vmul.bf16 %v3244, 1061961548
        %v3373 = vmul.bf16 %v3245, 1061961548
        %v3374 = vmul.bf16 %v3246, 1061961548
        %v3375 = vmul.bf16 %v3247, 1061961548
        %v3376 = vtanh.bf16.pop %v3248
        %v3377 = vtanh.bf16.pop %v3249
        %v3378 = vtanh.bf16.pop %v3250
        %v3379 = vtanh.bf16.pop %v3251
        %v3380 = vtanh.bf16.pop %v3252
        %v3381 = vtanh.bf16.pop %v3253
        %v3382 = vtanh.bf16.pop %v3254
        %v3383 = vtanh.bf16.pop %v3255
        %v3384 = vtanh.bf16.pop %v3256
        %v3385 = vtanh.bf16.pop %v3257
        %v3386 = vtanh.bf16.pop %v3258
        %v3387 = vtanh.bf16.pop %v3259
        %v3388 = vtanh.bf16.pop %v3260
        %v3389 = vtanh.bf16.pop %v3261
        %v3390 = vtanh.bf16.pop %v3262
        %v3391 = vtanh.bf16.pop %v3263
        %v3392 = vtanh.bf16.pop %v3264
        %v3393 = vtanh.bf16.pop %v3265
        %v3394 = vtanh.bf16.pop %v3266
        %v3395 = vtanh.bf16.pop %v3267
        %v3396 = vtanh.bf16.pop %v3268
        %v3397 = vtanh.bf16.pop %v3269
        %v3398 = vtanh.bf16.pop %v3270
        %v3399 = vtanh.bf16.pop %v3271
        %v3400 = vtanh.bf16.pop %v3272
        %v3401 = vtanh.bf16.pop %v3273
        %v3402 = vtanh.bf16.pop %v3274
        %v3403 = vtanh.bf16.pop %v3275
        %v3404 = vtanh.bf16.pop %v3276
        %v3405 = vtanh.bf16.pop %v3277
        %v3406 = vtanh.bf16.pop %v3278
        %v3407 = vtanh.bf16.pop %v3279
        %v3408 = vtanh.bf16.pop %v3280
        %v3409 = vtanh.bf16.pop %v3281
        %v3410 = vtanh.bf16.pop %v3282
        %v3411 = vtanh.bf16.pop %v3283
        %v3412 = vtanh.bf16.pop %v3284
        %v3413 = vtanh.bf16.pop %v3285
        %v3414 = vtanh.bf16.pop %v3286
        %v3415 = vtanh.bf16.pop %v3287
        %v3416 = vtanh.bf16.pop %v3288
        %v3417 = vtanh.bf16.pop %v3289
        %v3418 = vtanh.bf16.pop %v3290
        %v3419 = vtanh.bf16.pop %v3291
        %v3420 = vtanh.bf16.pop %v3292
        %v3421 = vtanh.bf16.pop %v3293
        %v3422 = vtanh.bf16.pop %v3294
        %v3423 = vtanh.bf16.pop %v3295
        %v3424 = vtanh.bf16.pop %v3296
        %v3425 = vtanh.bf16.pop %v3297
        %v3426 = vtanh.bf16.pop %v3298
        %v3427 = vtanh.bf16.pop %v3299
        %v3428 = vtanh.bf16.pop %v3300
        %v3429 = vtanh.bf16.pop %v3301
        %v3430 = vtanh.bf16.pop %v3302
        %v3431 = vtanh.bf16.pop %v3303
        %v3432 = vtanh.bf16.pop %v3304
        %v3433 = vtanh.bf16.pop %v3305
        %v3434 = vtanh.bf16.pop %v3306
        %v3435 = vtanh.bf16.pop %v3307
        %v3436 = vtanh.bf16.pop %v3308
        %v3437 = vtanh.bf16.pop %v3309
        %v3438 = vtanh.bf16.pop %v3310
        %v3439 = vtanh.bf16.pop %v3311
        %v3440 = vtanh.bf16.pop %v3312
        %v3441 = vtanh.bf16.pop %v3313
        %v3442 = vtanh.bf16.pop %v3314
        %v3443 = vtanh.bf16.pop %v3315
        %v3444 = vtanh.bf16.pop %v3316
        %v3445 = vtanh.bf16.pop %v3317
        %v3446 = vtanh.bf16.pop %v3318
        %v3447 = vtanh.bf16.pop %v3319
        %v3448 = vtanh.bf16.pop %v3320
        %v3449 = vtanh.bf16.pop %v3321
        %v3450 = vtanh.bf16.pop %v3322
        %v3451 = vtanh.bf16.pop %v3323
        %v3452 = vtanh.bf16.pop %v3324
        %v3453 = vtanh.bf16.pop %v3325
        %v3454 = vtanh.bf16.pop %v3326
        %v3455 = vtanh.bf16.pop %v3327
        %v3456 = vtanh.bf16.pop %v3328
        %v3457 = vtanh.bf16.pop %v3329
        %v3458 = vtanh.bf16.pop %v3330
        %v3459 = vtanh.bf16.pop %v3331
        %v3460 = vtanh.bf16.pop %v3332
        %v3461 = vtanh.bf16.pop %v3333
        %v3462 = vtanh.bf16.pop %v3334
        %v3463 = vtanh.bf16.pop %v3335
        %v3464 = vtanh.bf16.pop %v3336
        %v3465 = vtanh.bf16.pop %v3337
        %v3466 = vtanh.bf16.pop %v3338
        %v3467 = vtanh.bf16.pop %v3339
        %v3468 = vtanh.bf16.pop %v3340
        %v3469 = vtanh.bf16.pop %v3341
        %v3470 = vtanh.bf16.pop %v3342
        %v3471 = vtanh.bf16.pop %v3343
        %v3472 = vtanh.bf16.pop %v3344
        %v3473 = vtanh.bf16.pop %v3345
        %v3474 = vtanh.bf16.pop %v3346
        %v3475 = vtanh.bf16.pop %v3347
        %v3476 = vtanh.bf16.pop %v3348
        %v3477 = vtanh.bf16.pop %v3349
        %v3478 = vtanh.bf16.pop %v3350
        %v3479 = vtanh.bf16.pop %v3351
        %v3480 = vtanh.bf16.pop %v3352
        %v3481 = vtanh.bf16.pop %v3353
        %v3482 = vtanh.bf16.pop %v3354
        %v3483 = vtanh.bf16.pop %v3355
        %v3484 = vtanh.bf16.pop %v3356
        %v3485 = vtanh.bf16.pop %v3357
        %v3486 = vtanh.bf16.pop %v3358
        %v3487 = vtanh.bf16.pop %v3359
        %v3488 = vtanh.bf16.pop %v3360
        %v3489 = vtanh.bf16.pop %v3361
        %v3490 = vtanh.bf16.pop %v3362
        %v3491 = vtanh.bf16.pop %v3363
        %v3492 = vtanh.bf16.pop %v3364
        %v3493 = vtanh.bf16.pop %v3365
        %v3494 = vtanh.bf16.pop %v3366
        %v3495 = vtanh.bf16.pop %v3367
        %v3496 = vtanh.bf16.pop %v3368
        %v3497 = vtanh.bf16.pop %v3369
        %v3498 = vtanh.bf16.pop %v3370
        %v3499 = vtanh.bf16.pop %v3371
        %v3500 = vtanh.bf16.pop %v3372
        %v3501 = vtanh.bf16.pop %v3373
        %v3502 = vtanh.bf16.pop %v3374
        %v3503 = vtanh.bf16.pop %v3375
        %v3504 = vadd.bf16 %v3376, 1065369472
        %v3505 = vadd.bf16 %v3377, 1065369472
        %v3506 = vadd.bf16 %v3378, 1065369472
        %v3507 = vadd.bf16 %v3379, 1065369472
        %v3508 = vadd.bf16 %v3380, 1065369472
        %v3509 = vadd.bf16 %v3381, 1065369472
        %v3510 = vadd.bf16 %v3382, 1065369472
        %v3511 = vadd.bf16 %v3383, 1065369472
        %v3512 = vadd.bf16 %v3384, 1065369472
        %v3513 = vadd.bf16 %v3385, 1065369472
        %v3514 = vadd.bf16 %v3386, 1065369472
        %v3515 = vadd.bf16 %v3387, 1065369472
        %v3516 = vadd.bf16 %v3388, 1065369472
        %v3517 = vadd.bf16 %v3389, 1065369472
        %v3518 = vadd.bf16 %v3390, 1065369472
        %v3519 = vadd.bf16 %v3391, 1065369472
        %v3520 = vadd.bf16 %v3392, 1065369472
        %v3521 = vadd.bf16 %v3393, 1065369472
        %v3522 = vadd.bf16 %v3394, 1065369472
        %v3523 = vadd.bf16 %v3395, 1065369472
        %v3524 = vadd.bf16 %v3396, 1065369472
        %v3525 = vadd.bf16 %v3397, 1065369472
        %v3526 = vadd.bf16 %v3398, 1065369472
        %v3527 = vadd.bf16 %v3399, 1065369472
        %v3528 = vadd.bf16 %v3400, 1065369472
        %v3529 = vadd.bf16 %v3401, 1065369472
        %v3530 = vadd.bf16 %v3402, 1065369472
        %v3531 = vadd.bf16 %v3403, 1065369472
        %v3532 = vadd.bf16 %v3404, 1065369472
        %v3533 = vadd.bf16 %v3405, 1065369472
        %v3534 = vadd.bf16 %v3406, 1065369472
        %v3535 = vadd.bf16 %v3407, 1065369472
        %v3536 = vadd.bf16 %v3408, 1065369472
        %v3537 = vadd.bf16 %v3409, 1065369472
        %v3538 = vadd.bf16 %v3410, 1065369472
        %v3539 = vadd.bf16 %v3411, 1065369472
        %v3540 = vadd.bf16 %v3412, 1065369472
        %v3541 = vadd.bf16 %v3413, 1065369472
        %v3542 = vadd.bf16 %v3414, 1065369472
        %v3543 = vadd.bf16 %v3415, 1065369472
        %v3544 = vadd.bf16 %v3416, 1065369472
        %v3545 = vadd.bf16 %v3417, 1065369472
        %v3546 = vadd.bf16 %v3418, 1065369472
        %v3547 = vadd.bf16 %v3419, 1065369472
        %v3548 = vadd.bf16 %v3420, 1065369472
        %v3549 = vadd.bf16 %v3421, 1065369472
        %v3550 = vadd.bf16 %v3422, 1065369472
        %v3551 = vadd.bf16 %v3423, 1065369472
        %v3552 = vadd.bf16 %v3424, 1065369472
        %v3553 = vadd.bf16 %v3425, 1065369472
        %v3554 = vadd.bf16 %v3426, 1065369472
        %v3555 = vadd.bf16 %v3427, 1065369472
        %v3556 = vadd.bf16 %v3428, 1065369472
        %v3557 = vadd.bf16 %v3429, 1065369472
        %v3558 = vadd.bf16 %v3430, 1065369472
        %v3559 = vadd.bf16 %v3431, 1065369472
        %v3560 = vadd.bf16 %v3432, 1065369472
        %v3561 = vadd.bf16 %v3433, 1065369472
        %v3562 = vadd.bf16 %v3434, 1065369472
        %v3563 = vadd.bf16 %v3435, 1065369472
        %v3564 = vadd.bf16 %v3436, 1065369472
        %v3565 = vadd.bf16 %v3437, 1065369472
        %v3566 = vadd.bf16 %v3438, 1065369472
        %v3567 = vadd.bf16 %v3439, 1065369472
        %v3568 = vadd.bf16 %v3440, 1065369472
        %v3569 = vadd.bf16 %v3441, 1065369472
        %v3570 = vadd.bf16 %v3442, 1065369472
        %v3571 = vadd.bf16 %v3443, 1065369472
        %v3572 = vadd.bf16 %v3444, 1065369472
        %v3573 = vadd.bf16 %v3445, 1065369472
        %v3574 = vadd.bf16 %v3446, 1065369472
        %v3575 = vadd.bf16 %v3447, 1065369472
        %v3576 = vadd.bf16 %v3448, 1065369472
        %v3577 = vadd.bf16 %v3449, 1065369472
        %v3578 = vadd.bf16 %v3450, 1065369472
        %v3579 = vadd.bf16 %v3451, 1065369472
        %v3580 = vadd.bf16 %v3452, 1065369472
        %v3581 = vadd.bf16 %v3453, 1065369472
        %v3582 = vadd.bf16 %v3454, 1065369472
        %v3583 = vadd.bf16 %v3455, 1065369472
        %v3584 = vadd.bf16 %v3456, 1065369472
        %v3585 = vadd.bf16 %v3457, 1065369472
        %v3586 = vadd.bf16 %v3458, 1065369472
        %v3587 = vadd.bf16 %v3459, 1065369472
        %v3588 = vadd.bf16 %v3460, 1065369472
        %v3589 = vadd.bf16 %v3461, 1065369472
        %v3590 = vadd.bf16 %v3462, 1065369472
        %v3591 = vadd.bf16 %v3463, 1065369472
        %v3592 = vadd.bf16 %v3464, 1065369472
        %v3593 = vadd.bf16 %v3465, 1065369472
        %v3594 = vadd.bf16 %v3466, 1065369472
        %v3595 = vadd.bf16 %v3467, 1065369472
        %v3596 = vadd.bf16 %v3468, 1065369472
        %v3597 = vadd.bf16 %v3469, 1065369472
        %v3598 = vadd.bf16 %v3470, 1065369472
        %v3599 = vadd.bf16 %v3471, 1065369472
        %v3600 = vadd.bf16 %v3472, 1065369472
        %v3601 = vadd.bf16 %v3473, 1065369472
        %v3602 = vadd.bf16 %v3474, 1065369472
        %v3603 = vadd.bf16 %v3475, 1065369472
        %v3604 = vadd.bf16 %v3476, 1065369472
        %v3605 = vadd.bf16 %v3477, 1065369472
        %v3606 = vadd.bf16 %v3478, 1065369472
        %v3607 = vadd.bf16 %v3479, 1065369472
        %v3608 = vadd.bf16 %v3480, 1065369472
        %v3609 = vadd.bf16 %v3481, 1065369472
        %v3610 = vadd.bf16 %v3482, 1065369472
        %v3611 = vadd.bf16 %v3483, 1065369472
        %v3612 = vadd.bf16 %v3484, 1065369472
        %v3613 = vadd.bf16 %v3485, 1065369472
        %v3614 = vadd.bf16 %v3486, 1065369472
        %v3615 = vadd.bf16 %v3487, 1065369472
        %v3616 = vadd.bf16 %v3488, 1065369472
        %v3617 = vadd.bf16 %v3489, 1065369472
        %v3618 = vadd.bf16 %v3490, 1065369472
        %v3619 = vadd.bf16 %v3491, 1065369472
        %v3620 = vadd.bf16 %v3492, 1065369472
        %v3621 = vadd.bf16 %v3493, 1065369472
        %v3622 = vadd.bf16 %v3494, 1065369472
        %v3623 = vadd.bf16 %v3495, 1065369472
        %v3624 = vadd.bf16 %v3496, 1065369472
        %v3625 = vadd.bf16 %v3497, 1065369472
        %v3626 = vadd.bf16 %v3498, 1065369472
        %v3627 = vadd.bf16 %v3499, 1065369472
        %v3628 = vadd.bf16 %v3500, 1065369472
        %v3629 = vadd.bf16 %v3501, 1065369472
        %v3630 = vadd.bf16 %v3502, 1065369472
        %v3631 = vadd.bf16 %v3503, 1065369472
        %v3632 = vmul.bf16 %v3504, 1056980736
        %v3633 = vmul.bf16 %v3505, 1056980736
        %v3634 = vmul.bf16 %v3506, 1056980736
        %v3635 = vmul.bf16 %v3507, 1056980736
        %v3636 = vmul.bf16 %v3508, 1056980736
        %v3637 = vmul.bf16 %v3509, 1056980736
        %v3638 = vmul.bf16 %v3510, 1056980736
        %v3639 = vmul.bf16 %v3511, 1056980736
        %v3640 = vmul.bf16 %v3512, 1056980736
        %v3641 = vmul.bf16 %v3513, 1056980736
        %v3642 = vmul.bf16 %v3514, 1056980736
        %v3643 = vmul.bf16 %v3515, 1056980736
        %v3644 = vmul.bf16 %v3516, 1056980736
        %v3645 = vmul.bf16 %v3517, 1056980736
        %v3646 = vmul.bf16 %v3518, 1056980736
        %v3647 = vmul.bf16 %v3519, 1056980736
        %v3648 = vmul.bf16 %v3520, 1056980736
        %v3649 = vmul.bf16 %v3521, 1056980736
        %v3650 = vmul.bf16 %v3522, 1056980736
        %v3651 = vmul.bf16 %v3523, 1056980736
        %v3652 = vmul.bf16 %v3524, 1056980736
        %v3653 = vmul.bf16 %v3525, 1056980736
        %v3654 = vmul.bf16 %v3526, 1056980736
        %v3655 = vmul.bf16 %v3527, 1056980736
        %v3656 = vmul.bf16 %v3528, 1056980736
        %v3657 = vmul.bf16 %v3529, 1056980736
        %v3658 = vmul.bf16 %v3530, 1056980736
        %v3659 = vmul.bf16 %v3531, 1056980736
        %v3660 = vmul.bf16 %v3532, 1056980736
        %v3661 = vmul.bf16 %v3533, 1056980736
        %v3662 = vmul.bf16 %v3534, 1056980736
        %v3663 = vmul.bf16 %v3535, 1056980736
        %v3664 = vmul.bf16 %v3536, 1056980736
        %v3665 = vmul.bf16 %v3537, 1056980736
        %v3666 = vmul.bf16 %v3538, 1056980736
        %v3667 = vmul.bf16 %v3539, 1056980736
        %v3668 = vmul.bf16 %v3540, 1056980736
        %v3669 = vmul.bf16 %v3541, 1056980736
        %v3670 = vmul.bf16 %v3542, 1056980736
        %v3671 = vmul.bf16 %v3543, 1056980736
        %v3672 = vmul.bf16 %v3544, 1056980736
        %v3673 = vmul.bf16 %v3545, 1056980736
        %v3674 = vmul.bf16 %v3546, 1056980736
        %v3675 = vmul.bf16 %v3547, 1056980736
        %v3676 = vmul.bf16 %v3548, 1056980736
        %v3677 = vmul.bf16 %v3549, 1056980736
        %v3678 = vmul.bf16 %v3550, 1056980736
        %v3679 = vmul.bf16 %v3551, 1056980736
        %v3680 = vmul.bf16 %v3552, 1056980736
        %v3681 = vmul.bf16 %v3553, 1056980736
        %v3682 = vmul.bf16 %v3554, 1056980736
        %v3683 = vmul.bf16 %v3555, 1056980736
        %v3684 = vmul.bf16 %v3556, 1056980736
        %v3685 = vmul.bf16 %v3557, 1056980736
        %v3686 = vmul.bf16 %v3558, 1056980736
        %v3687 = vmul.bf16 %v3559, 1056980736
        %v3688 = vmul.bf16 %v3560, 1056980736
        %v3689 = vmul.bf16 %v3561, 1056980736
        %v3690 = vmul.bf16 %v3562, 1056980736
        %v3691 = vmul.bf16 %v3563, 1056980736
        %v3692 = vmul.bf16 %v3564, 1056980736
        %v3693 = vmul.bf16 %v3565, 1056980736
        %v3694 = vmul.bf16 %v3566, 1056980736
        %v3695 = vmul.bf16 %v3567, 1056980736
        %v3696 = vmul.bf16 %v3568, 1056980736
        %v3697 = vmul.bf16 %v3569, 1056980736
        %v3698 = vmul.bf16 %v3570, 1056980736
        %v3699 = vmul.bf16 %v3571, 1056980736
        %v3700 = vmul.bf16 %v3572, 1056980736
        %v3701 = vmul.bf16 %v3573, 1056980736
        %v3702 = vmul.bf16 %v3574, 1056980736
        %v3703 = vmul.bf16 %v3575, 1056980736
        %v3704 = vmul.bf16 %v3576, 1056980736
        %v3705 = vmul.bf16 %v3577, 1056980736
        %v3706 = vmul.bf16 %v3578, 1056980736
        %v3707 = vmul.bf16 %v3579, 1056980736
        %v3708 = vmul.bf16 %v3580, 1056980736
        %v3709 = vmul.bf16 %v3581, 1056980736
        %v3710 = vmul.bf16 %v3582, 1056980736
        %v3711 = vmul.bf16 %v3583, 1056980736
        %v3712 = vmul.bf16 %v3584, 1056980736
        %v3713 = vmul.bf16 %v3585, 1056980736
        %v3714 = vmul.bf16 %v3586, 1056980736
        %v3715 = vmul.bf16 %v3587, 1056980736
        %v3716 = vmul.bf16 %v3588, 1056980736
        %v3717 = vmul.bf16 %v3589, 1056980736
        %v3718 = vmul.bf16 %v3590, 1056980736
        %v3719 = vmul.bf16 %v3591, 1056980736
        %v3720 = vmul.bf16 %v3592, 1056980736
        %v3721 = vmul.bf16 %v3593, 1056980736
        %v3722 = vmul.bf16 %v3594, 1056980736
        %v3723 = vmul.bf16 %v3595, 1056980736
        %v3724 = vmul.bf16 %v3596, 1056980736
        %v3725 = vmul.bf16 %v3597, 1056980736
        %v3726 = vmul.bf16 %v3598, 1056980736
        %v3727 = vmul.bf16 %v3599, 1056980736
        %v3728 = vmul.bf16 %v3600, 1056980736
        %v3729 = vmul.bf16 %v3601, 1056980736
        %v3730 = vmul.bf16 %v3602, 1056980736
        %v3731 = vmul.bf16 %v3603, 1056980736
        %v3732 = vmul.bf16 %v3604, 1056980736
        %v3733 = vmul.bf16 %v3605, 1056980736
        %v3734 = vmul.bf16 %v3606, 1056980736
        %v3735 = vmul.bf16 %v3607, 1056980736
        %v3736 = vmul.bf16 %v3608, 1056980736
        %v3737 = vmul.bf16 %v3609, 1056980736
        %v3738 = vmul.bf16 %v3610, 1056980736
        %v3739 = vmul.bf16 %v3611, 1056980736
        %v3740 = vmul.bf16 %v3612, 1056980736
        %v3741 = vmul.bf16 %v3613, 1056980736
        %v3742 = vmul.bf16 %v3614, 1056980736
        %v3743 = vmul.bf16 %v3615, 1056980736
        %v3744 = vmul.bf16 %v3616, 1056980736
        %v3745 = vmul.bf16 %v3617, 1056980736
        %v3746 = vmul.bf16 %v3618, 1056980736
        %v3747 = vmul.bf16 %v3619, 1056980736
        %v3748 = vmul.bf16 %v3620, 1056980736
        %v3749 = vmul.bf16 %v3621, 1056980736
        %v3750 = vmul.bf16 %v3622, 1056980736
        %v3751 = vmul.bf16 %v3623, 1056980736
        %v3752 = vmul.bf16 %v3624, 1056980736
        %v3753 = vmul.bf16 %v3625, 1056980736
        %v3754 = vmul.bf16 %v3626, 1056980736
        %v3755 = vmul.bf16 %v3627, 1056980736
        %v3756 = vmul.bf16 %v3628, 1056980736
        %v3757 = vmul.bf16 %v3629, 1056980736
        %v3758 = vmul.bf16 %v3630, 1056980736
        %v3759 = vmul.bf16 %v3631, 1056980736
        %v3760 = vmul.bf16 %v2608, %v3632
        %v3761 = vmul.bf16 %v2609, %v3633
        %v3762 = vmul.bf16 %v2610, %v3634
        %v3763 = vmul.bf16 %v2611, %v3635
        %v3764 = vmul.bf16 %v2612, %v3636
        %v3765 = vmul.bf16 %v2613, %v3637
        %v3766 = vmul.bf16 %v2614, %v3638
        %v3767 = vmul.bf16 %v2615, %v3639
        %v3768 = vmul.bf16 %v2616, %v3640
        %v3769 = vmul.bf16 %v2617, %v3641
        %v3770 = vmul.bf16 %v2618, %v3642
        %v3771 = vmul.bf16 %v2619, %v3643
        %v3772 = vmul.bf16 %v2620, %v3644
        %v3773 = vmul.bf16 %v2621, %v3645
        %v3774 = vmul.bf16 %v2622, %v3646
        %v3775 = vmul.bf16 %v2623, %v3647
        %v3776 = vmul.bf16 %v2624, %v3648
        %v3777 = vmul.bf16 %v2625, %v3649
        %v3778 = vmul.bf16 %v2626, %v3650
        %v3779 = vmul.bf16 %v2627, %v3651
        %v3780 = vmul.bf16 %v2628, %v3652
        %v3781 = vmul.bf16 %v2629, %v3653
        %v3782 = vmul.bf16 %v2630, %v3654
        %v3783 = vmul.bf16 %v2631, %v3655
        %v3784 = vmul.bf16 %v2632, %v3656
        %v3785 = vmul.bf16 %v2633, %v3657
        %v3786 = vmul.bf16 %v2634, %v3658
        %v3787 = vmul.bf16 %v2635, %v3659
        %v3788 = vmul.bf16 %v2636, %v3660
        %v3789 = vmul.bf16 %v2637, %v3661
        %v3790 = vmul.bf16 %v2638, %v3662
        %v3791 = vmul.bf16 %v2639, %v3663
        %v3792 = vmul.bf16 %v2640, %v3664
        %v3793 = vmul.bf16 %v2641, %v3665
        %v3794 = vmul.bf16 %v2642, %v3666
        %v3795 = vmul.bf16 %v2643, %v3667
        %v3796 = vmul.bf16 %v2644, %v3668
        %v3797 = vmul.bf16 %v2645, %v3669
        %v3798 = vmul.bf16 %v2646, %v3670
        %v3799 = vmul.bf16 %v2647, %v3671
        %v3800 = vmul.bf16 %v2648, %v3672
        %v3801 = vmul.bf16 %v2649, %v3673
        %v3802 = vmul.bf16 %v2650, %v3674
        %v3803 = vmul.bf16 %v2651, %v3675
        %v3804 = vmul.bf16 %v2652, %v3676
        %v3805 = vmul.bf16 %v2653, %v3677
        %v3806 = vmul.bf16 %v2654, %v3678
        %v3807 = vmul.bf16 %v2655, %v3679
        %v3808 = vmul.bf16 %v2656, %v3680
        %v3809 = vmul.bf16 %v2657, %v3681
        %v3810 = vmul.bf16 %v2658, %v3682
        %v3811 = vmul.bf16 %v2659, %v3683
        %v3812 = vmul.bf16 %v2660, %v3684
        %v3813 = vmul.bf16 %v2661, %v3685
        %v3814 = vmul.bf16 %v2662, %v3686
        %v3815 = vmul.bf16 %v2663, %v3687
        %v3816 = vmul.bf16 %v2664, %v3688
        %v3817 = vmul.bf16 %v2665, %v3689
        %v3818 = vmul.bf16 %v2666, %v3690
        %v3819 = vmul.bf16 %v2667, %v3691
        %v3820 = vmul.bf16 %v2668, %v3692
        %v3821 = vmul.bf16 %v2669, %v3693
        %v3822 = vmul.bf16 %v2670, %v3694
        %v3823 = vmul.bf16 %v2671, %v3695
        %v3824 = vmul.bf16 %v2672, %v3696
        %v3825 = vmul.bf16 %v2673, %v3697
        %v3826 = vmul.bf16 %v2674, %v3698
        %v3827 = vmul.bf16 %v2675, %v3699
        %v3828 = vmul.bf16 %v2676, %v3700
        %v3829 = vmul.bf16 %v2677, %v3701
        %v3830 = vmul.bf16 %v2678, %v3702
        %v3831 = vmul.bf16 %v2679, %v3703
        %v3832 = vmul.bf16 %v2680, %v3704
        %v3833 = vmul.bf16 %v2681, %v3705
        %v3834 = vmul.bf16 %v2682, %v3706
        %v3835 = vmul.bf16 %v2683, %v3707
        %v3836 = vmul.bf16 %v2684, %v3708
        %v3837 = vmul.bf16 %v2685, %v3709
        %v3838 = vmul.bf16 %v2686, %v3710
        %v3839 = vmul.bf16 %v2687, %v3711
        %v3840 = vmul.bf16 %v2688, %v3712
        %v3841 = vmul.bf16 %v2689, %v3713
        %v3842 = vmul.bf16 %v2690, %v3714
        %v3843 = vmul.bf16 %v2691, %v3715
        %v3844 = vmul.bf16 %v2692, %v3716
        %v3845 = vmul.bf16 %v2693, %v3717
        %v3846 = vmul.bf16 %v2694, %v3718
        %v3847 = vmul.bf16 %v2695, %v3719
        %v3848 = vmul.bf16 %v2696, %v3720
        %v3849 = vmul.bf16 %v2697, %v3721
        %v3850 = vmul.bf16 %v2698, %v3722
        %v3851 = vmul.bf16 %v2699, %v3723
        %v3852 = vmul.bf16 %v2700, %v3724
        %v3853 = vmul.bf16 %v2701, %v3725
        %v3854 = vmul.bf16 %v2702, %v3726
        %v3855 = vmul.bf16 %v2703, %v3727
        %v3856 = vmul.bf16 %v2704, %v3728
        %v3857 = vmul.bf16 %v2705, %v3729
        %v3858 = vmul.bf16 %v2706, %v3730
        %v3859 = vmul.bf16 %v2707, %v3731
        %v3860 = vmul.bf16 %v2708, %v3732
        %v3861 = vmul.bf16 %v2709, %v3733
        %v3862 = vmul.bf16 %v2710, %v3734
        %v3863 = vmul.bf16 %v2711, %v3735
        %v3864 = vmul.bf16 %v2712, %v3736
        %v3865 = vmul.bf16 %v2713, %v3737
        %v3866 = vmul.bf16 %v2714, %v3738
        %v3867 = vmul.bf16 %v2715, %v3739
        %v3868 = vmul.bf16 %v2716, %v3740
        %v3869 = vmul.bf16 %v2717, %v3741
        %v3870 = vmul.bf16 %v2718, %v3742
        %v3871 = vmul.bf16 %v2719, %v3743
        %v3872 = vmul.bf16 %v2720, %v3744
        %v3873 = vmul.bf16 %v2721, %v3745
        %v3874 = vmul.bf16 %v2722, %v3746
        %v3875 = vmul.bf16 %v2723, %v3747
        %v3876 = vmul.bf16 %v2724, %v3748
        %v3877 = vmul.bf16 %v2725, %v3749
        %v3878 = vmul.bf16 %v2726, %v3750
        %v3879 = vmul.bf16 %v2727, %v3751
        %v3880 = vmul.bf16 %v2728, %v3752
        %v3881 = vmul.bf16 %v2729, %v3753
        %v3882 = vmul.bf16 %v2730, %v3754
        %v3883 = vmul.bf16 %v2731, %v3755
        %v3884 = vmul.bf16 %v2732, %v3756
        %v3885 = vmul.bf16 %v2733, %v3757
        %v3886 = vmul.bf16 %v2734, %v3758
        %v3887 = vmul.bf16 %v2735, %v3759
        %v3888 = vld [vmem:[#allocation7] sm:$0xff]
        %v3889 = vld [vmem:[#allocation7 + $0x8] sm:$0xff]
        %v3890 = vld [vmem:[#allocation7 + $0x10] sm:$0xff]
        %v3891 = vld [vmem:[#allocation7 + $0x18] sm:$0xff]
        %v3892 = vld [vmem:[#allocation7 + $0x20] sm:$0xff]
        %v3893 = vld [vmem:[#allocation7 + $0x28] sm:$0xff]
        %v3894 = vld [vmem:[#allocation7 + $0x30] sm:$0xff]
        %v3895 = vld [vmem:[#allocation7 + $0x38] sm:$0xff]
        %v3896 = vld [vmem:[#allocation7 + $0x40] sm:$0xff]
        %v3897 = vld [vmem:[#allocation7 + $0x48] sm:$0xff]
        %v3898 = vld [vmem:[#allocation7 + $0x50] sm:$0xff]
        %v3899 = vld [vmem:[#allocation7 + $0x58] sm:$0xff]
        %v3900 = vld [vmem:[#allocation7 + $0x60] sm:$0xff]
        %v3901 = vld [vmem:[#allocation7 + $0x68] sm:$0xff]
        %v3902 = vld [vmem:[#allocation7 + $0x70] sm:$0xff]
        %v3903 = vld [vmem:[#allocation7 + $0x78] sm:$0xff]
        %v3904 = vld [vmem:[#allocation7 + $0x80] sm:$0xff]
        %v3905 = vld [vmem:[#allocation7 + $0x88] sm:$0xff]
        %v3906 = vld [vmem:[#allocation7 + $0x90] sm:$0xff]
        %v3907 = vld [vmem:[#allocation7 + $0x98] sm:$0xff]
        %v3908 = vld [vmem:[#allocation7 + $0xa0] sm:$0xff]
        %v3909 = vld [vmem:[#allocation7 + $0xa8] sm:$0xff]
        %v3910 = vld [vmem:[#allocation7 + $0xb0] sm:$0xff]
        %v3911 = vld [vmem:[#allocation7 + $0xb8] sm:$0xff]
        %v3912 = vld [vmem:[#allocation7 + $0xc0] sm:$0xff]
        %v3913 = vld [vmem:[#allocation7 + $0xc8] sm:$0xff]
        %v3914 = vld [vmem:[#allocation7 + $0xd0] sm:$0xff]
        %v3915 = vld [vmem:[#allocation7 + $0xd8] sm:$0xff]
        %v3916 = vld [vmem:[#allocation7 + $0xe0] sm:$0xff]
        %v3917 = vld [vmem:[#allocation7 + $0xe8] sm:$0xff]
        %v3918 = vld [vmem:[#allocation7 + $0xf0] sm:$0xff]
        %v3919 = vld [vmem:[#allocation7 + $0xf8] sm:$0xff]
        %v3920 = vld [vmem:[#allocation7 + $0x100] sm:$0xff]
        %v3921 = vld [vmem:[#allocation7 + $0x108] sm:$0xff]
        %v3922 = vld [vmem:[#allocation7 + $0x110] sm:$0xff]
        %v3923 = vld [vmem:[#allocation7 + $0x118] sm:$0xff]
        %v3924 = vld [vmem:[#allocation7 + $0x120] sm:$0xff]
        %v3925 = vld [vmem:[#allocation7 + $0x128] sm:$0xff]
        %v3926 = vld [vmem:[#allocation7 + $0x130] sm:$0xff]
        %v3927 = vld [vmem:[#allocation7 + $0x138] sm:$0xff]
        %v3928 = vld [vmem:[#allocation7 + $0x140] sm:$0xff]
        %v3929 = vld [vmem:[#allocation7 + $0x148] sm:$0xff]
        %v3930 = vld [vmem:[#allocation7 + $0x150] sm:$0xff]
        %v3931 = vld [vmem:[#allocation7 + $0x158] sm:$0xff]
        %v3932 = vld [vmem:[#allocation7 + $0x160] sm:$0xff]
        %v3933 = vld [vmem:[#allocation7 + $0x168] sm:$0xff]
        %v3934 = vld [vmem:[#allocation7 + $0x170] sm:$0xff]
        %v3935 = vld [vmem:[#allocation7 + $0x178] sm:$0xff]
        %v3936 = vld [vmem:[#allocation7 + $0x180] sm:$0xff]
        %v3937 = vld [vmem:[#allocation7 + $0x188] sm:$0xff]
        %v3938 = vld [vmem:[#allocation7 + $0x190] sm:$0xff]
        %v3939 = vld [vmem:[#allocation7 + $0x198] sm:$0xff]
        %v3940 = vld [vmem:[#allocation7 + $0x1a0] sm:$0xff]
        %v3941 = vld [vmem:[#allocation7 + $0x1a8] sm:$0xff]
        %v3942 = vld [vmem:[#allocation7 + $0x1b0] sm:$0xff]
        %v3943 = vld [vmem:[#allocation7 + $0x1b8] sm:$0xff]
        %v3944 = vld [vmem:[#allocation7 + $0x1c0] sm:$0xff]
        %v3945 = vld [vmem:[#allocation7 + $0x1c8] sm:$0xff]
        %v3946 = vld [vmem:[#allocation7 + $0x1d0] sm:$0xff]
        %v3947 = vld [vmem:[#allocation7 + $0x1d8] sm:$0xff]
        %v3948 = vld [vmem:[#allocation7 + $0x1e0] sm:$0xff]
        %v3949 = vld [vmem:[#allocation7 + $0x1e8] sm:$0xff]
        %v3950 = vld [vmem:[#allocation7 + $0x1f0] sm:$0xff]
        %v3951 = vld [vmem:[#allocation7 + $0x1f8] sm:$0xff]
        %v3952 = vld [vmem:[%s4] sm:$0x3]
        %v3954 = vlaneseq
        %v3955 = vshrl.u32 %v3954, 7
        %v3956 = vsub.s32 0, %v3955
        %v3957 = vrot.slane %v3952, %v3956
        %v3958 = vlaneseq
        %v3959 = vshrl.u32 %v3958, 7
        %v3960 = vsub.s32 1, %v3959
        %v3961 = vrot.slane %v3952, %v3960
        %v4028 = vunpack.c.l.b16 %v3888
        %v4029 = vunpack.c.h.b16 %v3888
        %v4030 = vunpack.c.l.b16 %v3889
        %v4031 = vunpack.c.h.b16 %v3889
        %v4032 = vunpack.c.l.b16 %v3890
        %v4033 = vunpack.c.h.b16 %v3890
        %v4034 = vunpack.c.l.b16 %v3891
        %v4035 = vunpack.c.h.b16 %v3891
        %v4036 = vunpack.c.l.b16 %v3892
        %v4037 = vunpack.c.h.b16 %v3892
        %v4038 = vunpack.c.l.b16 %v3893
        %v4039 = vunpack.c.h.b16 %v3893
        %v4040 = vunpack.c.l.b16 %v3894
        %v4041 = vunpack.c.h.b16 %v3894
        %v4042 = vunpack.c.l.b16 %v3895
        %v4043 = vunpack.c.h.b16 %v3895
        %v4044 = vunpack.c.l.b16 %v3896
        %v4045 = vunpack.c.h.b16 %v3896
        %v4046 = vunpack.c.l.b16 %v3897
        %v4047 = vunpack.c.h.b16 %v3897
        %v4048 = vunpack.c.l.b16 %v3898
        %v4049 = vunpack.c.h.b16 %v3898
        %v4050 = vunpack.c.l.b16 %v3899
        %v4051 = vunpack.c.h.b16 %v3899
        %v4052 = vunpack.c.l.b16 %v3900
        %v4053 = vunpack.c.h.b16 %v3900
        %v4054 = vunpack.c.l.b16 %v3901
        %v4055 = vunpack.c.h.b16 %v3901
        %v4056 = vunpack.c.l.b16 %v3902
        %v4057 = vunpack.c.h.b16 %v3902
        %v4058 = vunpack.c.l.b16 %v3903
        %v4059 = vunpack.c.h.b16 %v3903
        %v4060 = vunpack.c.l.b16 %v3904
        %v4061 = vunpack.c.h.b16 %v3904
        %v4062 = vunpack.c.l.b16 %v3905
        %v4063 = vunpack.c.h.b16 %v3905
        %v4064 = vunpack.c.l.b16 %v3906
        %v4065 = vunpack.c.h.b16 %v3906
        %v4066 = vunpack.c.l.b16 %v3907
        %v4067 = vunpack.c.h.b16 %v3907
        %v4068 = vunpack.c.l.b16 %v3908
        %v4069 = vunpack.c.h.b16 %v3908
        %v4070 = vunpack.c.l.b16 %v3909
        %v4071 = vunpack.c.h.b16 %v3909
        %v4072 = vunpack.c.l.b16 %v3910
        %v4073 = vunpack.c.h.b16 %v3910
        %v4074 = vunpack.c.l.b16 %v3911
        %v4075 = vunpack.c.h.b16 %v3911
        %v4076 = vunpack.c.l.b16 %v3912
        %v4077 = vunpack.c.h.b16 %v3912
        %v4078 = vunpack.c.l.b16 %v3913
        %v4079 = vunpack.c.h.b16 %v3913
        %v4080 = vunpack.c.l.b16 %v3914
        %v4081 = vunpack.c.h.b16 %v3914
        %v4082 = vunpack.c.l.b16 %v3915
        %v4083 = vunpack.c.h.b16 %v3915
        %v4084 = vunpack.c.l.b16 %v3916
        %v4085 = vunpack.c.h.b16 %v3916
        %v4086 = vunpack.c.l.b16 %v3917
        %v4087 = vunpack.c.h.b16 %v3917
        %v4088 = vunpack.c.l.b16 %v3918
        %v4089 = vunpack.c.h.b16 %v3918
        %v4090 = vunpack.c.l.b16 %v3919
        %v4091 = vunpack.c.h.b16 %v3919
        %v4092 = vunpack.c.l.b16 %v3920
        %v4093 = vunpack.c.h.b16 %v3920
        %v4094 = vunpack.c.l.b16 %v3921
        %v4095 = vunpack.c.h.b16 %v3921
        %v4096 = vunpack.c.l.b16 %v3922
        %v4097 = vunpack.c.h.b16 %v3922
        %v4098 = vunpack.c.l.b16 %v3923
        %v4099 = vunpack.c.h.b16 %v3923
        %v4100 = vunpack.c.l.b16 %v3924
        %v4101 = vunpack.c.h.b16 %v3924
        %v4102 = vunpack.c.l.b16 %v3925
        %v4103 = vunpack.c.h.b16 %v3925
        %v4104 = vunpack.c.l.b16 %v3926
        %v4105 = vunpack.c.h.b16 %v3926
        %v4106 = vunpack.c.l.b16 %v3927
        %v4107 = vunpack.c.h.b16 %v3927
        %v4108 = vunpack.c.l.b16 %v3928
        %v4109 = vunpack.c.h.b16 %v3928
        %v4110 = vunpack.c.l.b16 %v3929
        %v4111 = vunpack.c.h.b16 %v3929
        %v4112 = vunpack.c.l.b16 %v3930
        %v4113 = vunpack.c.h.b16 %v3930
        %v4114 = vunpack.c.l.b16 %v3931
        %v4115 = vunpack.c.h.b16 %v3931
        %v4116 = vunpack.c.l.b16 %v3932
        %v4117 = vunpack.c.h.b16 %v3932
        %v4118 = vunpack.c.l.b16 %v3933
        %v4119 = vunpack.c.h.b16 %v3933
        %v4120 = vunpack.c.l.b16 %v3934
        %v4121 = vunpack.c.h.b16 %v3934
        %v4122 = vunpack.c.l.b16 %v3935
        %v4123 = vunpack.c.h.b16 %v3935
        %v4124 = vunpack.c.l.b16 %v3936
        %v4125 = vunpack.c.h.b16 %v3936
        %v4126 = vunpack.c.l.b16 %v3937
        %v4127 = vunpack.c.h.b16 %v3937
        %v4128 = vunpack.c.l.b16 %v3938
        %v4129 = vunpack.c.h.b16 %v3938
        %v4130 = vunpack.c.l.b16 %v3939
        %v4131 = vunpack.c.h.b16 %v3939
        %v4132 = vunpack.c.l.b16 %v3940
        %v4133 = vunpack.c.h.b16 %v3940
        %v4134 = vunpack.c.l.b16 %v3941
        %v4135 = vunpack.c.h.b16 %v3941
        %v4136 = vunpack.c.l.b16 %v3942
        %v4137 = vunpack.c.h.b16 %v3942
        %v4138 = vunpack.c.l.b16 %v3943
        %v4139 = vunpack.c.h.b16 %v3943
        %v4140 = vunpack.c.l.b16 %v3944
        %v4141 = vunpack.c.h.b16 %v3944
        %v4142 = vunpack.c.l.b16 %v3945
        %v4143 = vunpack.c.h.b16 %v3945
        %v4144 = vunpack.c.l.b16 %v3946
        %v4145 = vunpack.c.h.b16 %v3946
        %v4146 = vunpack.c.l.b16 %v3947
        %v4147 = vunpack.c.h.b16 %v3947
        %v4148 = vunpack.c.l.b16 %v3948
        %v4149 = vunpack.c.h.b16 %v3948
        %v4150 = vunpack.c.l.b16 %v3949
        %v4151 = vunpack.c.h.b16 %v3949
        %v4152 = vunpack.c.l.b16 %v3950
        %v4153 = vunpack.c.h.b16 %v3950
        %v4154 = vunpack.c.l.b16 %v3951
        %v4155 = vunpack.c.h.b16 %v3951
        %v4156 = vpack.c.b16 %v4030, %v4028
        %v4157 = vpack.c.b16 %v4031, %v4029
        %v4158 = vpack.c.b16 %v4034, %v4032
        %v4159 = vpack.c.b16 %v4035, %v4033
        %v4160 = vpack.c.b16 %v4038, %v4036
        %v4161 = vpack.c.b16 %v4039, %v4037
        %v4162 = vpack.c.b16 %v4042, %v4040
        %v4163 = vpack.c.b16 %v4043, %v4041
        %v4164 = vpack.c.b16 %v4046, %v4044
        %v4165 = vpack.c.b16 %v4047, %v4045
        %v4166 = vpack.c.b16 %v4050, %v4048
        %v4167 = vpack.c.b16 %v4051, %v4049
        %v4168 = vpack.c.b16 %v4054, %v4052
        %v4169 = vpack.c.b16 %v4055, %v4053
        %v4170 = vpack.c.b16 %v4058, %v4056
        %v4171 = vpack.c.b16 %v4059, %v4057
        %v4172 = vpack.c.b16 %v4062, %v4060
        %v4173 = vpack.c.b16 %v4063, %v4061
        %v4174 = vpack.c.b16 %v4066, %v4064
        %v4175 = vpack.c.b16 %v4067, %v4065
        %v4176 = vpack.c.b16 %v4070, %v4068
        %v4177 = vpack.c.b16 %v4071, %v4069
        %v4178 = vpack.c.b16 %v4074, %v4072
        %v4179 = vpack.c.b16 %v4075, %v4073
        %v4180 = vpack.c.b16 %v4078, %v4076
        %v4181 = vpack.c.b16 %v4079, %v4077
        %v4182 = vpack.c.b16 %v4082, %v4080
        %v4183 = vpack.c.b16 %v4083, %v4081
        %v4184 = vpack.c.b16 %v4086, %v4084
        %v4185 = vpack.c.b16 %v4087, %v4085
        %v4186 = vpack.c.b16 %v4090, %v4088
        %v4187 = vpack.c.b16 %v4091, %v4089
        %v4188 = vpack.c.b16 %v4094, %v4092
        %v4189 = vpack.c.b16 %v4095, %v4093
        %v4190 = vpack.c.b16 %v4098, %v4096
        %v4191 = vpack.c.b16 %v4099, %v4097
        %v4192 = vpack.c.b16 %v4102, %v4100
        %v4193 = vpack.c.b16 %v4103, %v4101
        %v4194 = vpack.c.b16 %v4106, %v4104
        %v4195 = vpack.c.b16 %v4107, %v4105
        %v4196 = vpack.c.b16 %v4110, %v4108
        %v4197 = vpack.c.b16 %v4111, %v4109
        %v4198 = vpack.c.b16 %v4114, %v4112
        %v4199 = vpack.c.b16 %v4115, %v4113
        %v4200 = vpack.c.b16 %v4118, %v4116
        %v4201 = vpack.c.b16 %v4119, %v4117
        %v4202 = vpack.c.b16 %v4122, %v4120
        %v4203 = vpack.c.b16 %v4123, %v4121
        %v4204 = vpack.c.b16 %v4126, %v4124
        %v4205 = vpack.c.b16 %v4127, %v4125
        %v4206 = vpack.c.b16 %v4130, %v4128
        %v4207 = vpack.c.b16 %v4131, %v4129
        %v4208 = vpack.c.b16 %v4134, %v4132
        %v4209 = vpack.c.b16 %v4135, %v4133
        %v4210 = vpack.c.b16 %v4138, %v4136
        %v4211 = vpack.c.b16 %v4139, %v4137
        %v4212 = vpack.c.b16 %v4142, %v4140
        %v4213 = vpack.c.b16 %v4143, %v4141
        %v4214 = vpack.c.b16 %v4146, %v4144
        %v4215 = vpack.c.b16 %v4147, %v4145
        %v4216 = vpack.c.b16 %v4150, %v4148
        %v4217 = vpack.c.b16 %v4151, %v4149
        %v4218 = vpack.c.b16 %v4154, %v4152
        %v4219 = vpack.c.b16 %v4155, %v4153
        %4284 = vmatprep.subr.bf16.mxu0 %v4157
        %4285 = vmatpush1.bf16.msra.mxu0 %v4156
        %4286 = vmatprep.subr.bf16.mxu0 %v4159
        %4287 = vmatpush1.bf16.msra.mxu0 %v4158
        %4288 = vmatprep.subr.bf16.mxu0 %v4161
        %4289 = vmatpush1.bf16.msra.mxu0 %v4160
        %4290 = vmatprep.subr.bf16.mxu0 %v4163
        %4291 = vmatpush1.bf16.msra.mxu0 %v4162
        %4292 = vmatprep.subr.bf16.mxu0 %v4165
        %4293 = vmatpush1.bf16.msra.mxu0 %v4164
        %4294 = vmatprep.subr.bf16.mxu0 %v4167
        %4295 = vmatpush1.bf16.msra.mxu0 %v4166
        %4296 = vmatprep.subr.bf16.mxu0 %v4169
        %4297 = vmatpush1.bf16.msra.mxu0 %v4168
        %4298 = vmatprep.subr.bf16.mxu0 %v4171
        %4299 = vmatpush1.bf16.msra.mxu0 %v4170
        %4300 = vmatprep.subr.bf16.mxu0 %v4173
        %4301 = vmatpush1.bf16.msra.mxu0 %v4172
        %4302 = vmatprep.subr.bf16.mxu0 %v4175
        %4303 = vmatpush1.bf16.msra.mxu0 %v4174
        %4304 = vmatprep.subr.bf16.mxu0 %v4177
        %4305 = vmatpush1.bf16.msra.mxu0 %v4176
        %4306 = vmatprep.subr.bf16.mxu0 %v4179
        %4307 = vmatpush1.bf16.msra.mxu0 %v4178
        %4308 = vmatprep.subr.bf16.mxu0 %v4181
        %4309 = vmatpush1.bf16.msra.mxu0 %v4180
        %4310 = vmatprep.subr.bf16.mxu0 %v4183
        %4311 = vmatpush1.bf16.msra.mxu0 %v4182
        %4312 = vmatprep.subr.bf16.mxu0 %v4185
        %4313 = vmatpush1.bf16.msra.mxu0 %v4184
        %4314 = vmatprep.subr.bf16.mxu0 %v4187
        %4315 = vmatpush1.bf16.msra.mxu0 %v4186
        %4316 = vmatprep.mubr.bf16.mxu0 %v3761
        %4317 = vmatmul.mubr.bf16.gmra.mrb[0].mxu0 %v3760
        %v4318 = vpop.f32.mrb[0].mxu0
        %v4319 = vadd.f32 %v3957, %v4318
        %v4320 = vpop.f32.mrb[0].mxu0
        %v4321 = vadd.f32 %v3961, %v4320
        %v4322 = vpop.f32.mrb[0].mxu0
        %v4323 = vadd.f32 %v3957, %v4322
        %v4324 = vpop.f32.mrb[0].mxu0
        %v4325 = vadd.f32 %v3961, %v4324
        %4326 = vmatprep.mubr.bf16.mxu0 %v3765
        %4327 = vmatmul.mubr.bf16.gmra.mrb[0].mxu0 %v3764
        %v4328 = vpop.f32.mrb[0].mxu0
        %v4329 = vadd.f32 %v3957, %v4328
        %v4330 = vpop.f32.mrb[0].mxu0
        %v4331 = vadd.f32 %v3961, %v4330
        %v4332 = vpop.f32.mrb[0].mxu0
        %v4333 = vadd.f32 %v3957, %v4332
        %v4334 = vpop.f32.mrb[0].mxu0
        %v4335 = vadd.f32 %v3961, %v4334
        %4336 = vmatprep.mubr.bf16.mxu0 %v3769
        %4337 = vmatmul.mubr.bf16.gmra.mrb[0].mxu0 %v3768
        %v4338 = vpop.f32.mrb[0].mxu0
        %v4339 = vadd.f32 %v3957, %v4338
        %v4340 = vpop.f32.mrb[0].mxu0
        %v4341 = vadd.f32 %v3961, %v4340
        %v4342 = vpop.f32.mrb[0].mxu0
        %v4343 = vadd.f32 %v3957, %v4342
        %v4344 = vpop.f32.mrb[0].mxu0
        %v4345 = vadd.f32 %v3961, %v4344
        %4346 = vmatprep.mubr.bf16.mxu0 %v3773
        %4347 = vmatmul.mubr.bf16.gmra.mrb[0].mxu0 %v3772
        %v4348 = vpop.f32.mrb[0].mxu0
        %v4349 = vadd.f32 %v3957, %v4348
        %v4350 = vpop.f32.mrb[0].mxu0
        %v4351 = vadd.f32 %v3961, %v4350
        %v4352 = vpop.f32.mrb[0].mxu0
        %v4353 = vadd.f32 %v3957, %v4352
        %v4354 = vpop.f32.mrb[0].mxu0
        %v4355 = vadd.f32 %v3961, %v4354
        %4356 = vmatprep.mubr.bf16.mxu0 %v3777
        %4357 = vmatmul.mubr.bf16.gmra.mrb[0].mxu0 %v3776
        %v4358 = vpop.f32.mrb[0].mxu0
        %v4359 = vadd.f32 %v3957, %v4358
        %v4360 = vpop.f32.mrb[0].mxu0
        %v4361 = vadd.f32 %v3961, %v4360
        %v4362 = vpop.f32.mrb[0].mxu0
        %v4363 = vadd.f32 %v3957, %v4362
        %v4364 = vpop.f32.mrb[0].mxu0
        %v4365 = vadd.f32 %v3961, %v4364
        %4366 = vmatprep.mubr.bf16.mxu0 %v3781
        %4367 = vmatmul.mubr.bf16.gmra.mrb[0].mxu0 %v3780
        %v4368 = vpop.f32.mrb[0].mxu0
        %v4369 = vadd.f32 %v3957, %v4368
        %v4370 = vpop.f32.mrb[0].mxu0
        %v4371 = vadd.f32 %v3961, %v4370
        %v4372 = vpop.f32.mrb[0].mxu0
        %v4373 = vadd.f32 %v3957, %v4372
        %v4374 = vpop.f32.mrb[0].mxu0
        %v4375 = vadd.f32 %v3961, %v4374
        %4376 = vmatprep.mubr.bf16.mxu0 %v3785
        %4377 = vmatmul.mubr.bf16.gmra.mrb[0].mxu0 %v3784
        %v4378 = vpop.f32.mrb[0].mxu0
        %v4379 = vadd.f32 %v3957, %v4378
        %v4380 = vpop.f32.mrb[0].mxu0
        %v4381 = vadd.f32 %v3961, %v4380
        %v4382 = vpop.f32.mrb[0].mxu0
        %v4383 = vadd.f32 %v3957, %v4382
        %v4384 = vpop.f32.mrb[0].mxu0
        %v4385 = vadd.f32 %v3961, %v4384
        %4386 = vmatprep.mubr.bf16.mxu0 %v3789
        %4387 = vmatmul.mubr.bf16.gmra.mrb[0].mxu0 %v3788
        %v4388 = vpop.f32.mrb[0].mxu0
        %v4389 = vadd.f32 %v3957, %v4388
        %v4390 = vpop.f32.mrb[0].mxu0
        %v4391 = vadd.f32 %v3961, %v4390
        %v4392 = vpop.f32.mrb[0].mxu0
        %v4393 = vadd.f32 %v3957, %v4392
        %v4394 = vpop.f32.mrb[0].mxu0
        %v4395 = vadd.f32 %v3961, %v4394
        %4396 = vmatprep.mubr.bf16.mxu0 %v3793
        %4397 = vmatmul.mubr.bf16.gmra.mrb[0].mxu0 %v3792
        %v4398 = vpop.f32.mrb[0].mxu0
        %v4399 = vadd.f32 %v3957, %v4398
        %v4400 = vpop.f32.mrb[0].mxu0
        %v4401 = vadd.f32 %v3961, %v4400
        %v4402 = vpop.f32.mrb[0].mxu0
        %v4403 = vadd.f32 %v3957, %v4402
        %v4404 = vpop.f32.mrb[0].mxu0
        %v4405 = vadd.f32 %v3961, %v4404
        %4406 = vmatprep.mubr.bf16.mxu0 %v3797
        %4407 = vmatmul.mubr.bf16.gmra.mrb[0].mxu0 %v3796
        %v4408 = vpop.f32.mrb[0].mxu0
        %v4409 = vadd.f32 %v3957, %v4408
        %v4410 = vpop.f32.mrb[0].mxu0
        %v4411 = vadd.f32 %v3961, %v4410
        %v4412 = vpop.f32.mrb[0].mxu0
        %v4413 = vadd.f32 %v3957, %v4412
        %v4414 = vpop.f32.mrb[0].mxu0
        %v4415 = vadd.f32 %v3961, %v4414
        %4416 = vmatprep.mubr.bf16.mxu0 %v3801
        %4417 = vmatmul.mubr.bf16.gmra.mrb[0].mxu0 %v3800
        %v4418 = vpop.f32.mrb[0].mxu0
        %v4419 = vadd.f32 %v3957, %v4418
        %v4420 = vpop.f32.mrb[0].mxu0
        %v4421 = vadd.f32 %v3961, %v4420
        %v4422 = vpop.f32.mrb[0].mxu0
        %v4423 = vadd.f32 %v3957, %v4422
        %v4424 = vpop.f32.mrb[0].mxu0
        %v4425 = vadd.f32 %v3961, %v4424
        %4426 = vmatprep.mubr.bf16.mxu0 %v3805
        %4427 = vmatmul.mubr.bf16.gmra.mrb[0].mxu0 %v3804
        %v4428 = vpop.f32.mrb[0].mxu0
        %v4429 = vadd.f32 %v3957, %v4428
        %v4430 = vpop.f32.mrb[0].mxu0
        %v4431 = vadd.f32 %v3961, %v4430
        %v4432 = vpop.f32.mrb[0].mxu0
        %v4433 = vadd.f32 %v3957, %v4432
        %v4434 = vpop.f32.mrb[0].mxu0
        %v4435 = vadd.f32 %v3961, %v4434
        %4436 = vmatprep.mubr.bf16.mxu0 %v3809
        %4437 = vmatmul.mubr.bf16.gmra.mrb[0].mxu0 %v3808
        %v4438 = vpop.f32.mrb[0].mxu0
        %v4439 = vadd.f32 %v3957, %v4438
        %v4440 = vpop.f32.mrb[0].mxu0
        %v4441 = vadd.f32 %v3961, %v4440
        %v4442 = vpop.f32.mrb[0].mxu0
        %v4443 = vadd.f32 %v3957, %v4442
        %v4444 = vpop.f32.mrb[0].mxu0
        %v4445 = vadd.f32 %v3961, %v4444
        %4446 = vmatprep.mubr.bf16.mxu0 %v3813
        %4447 = vmatmul.mubr.bf16.gmra.mrb[0].mxu0 %v3812
        %v4448 = vpop.f32.mrb[0].mxu0
        %v4449 = vadd.f32 %v3957, %v4448
        %v4450 = vpop.f32.mrb[0].mxu0
        %v4451 = vadd.f32 %v3961, %v4450
        %v4452 = vpop.f32.mrb[0].mxu0
        %v4453 = vadd.f32 %v3957, %v4452
        %v4454 = vpop.f32.mrb[0].mxu0
        %v4455 = vadd.f32 %v3961, %v4454
        %4456 = vmatprep.mubr.bf16.mxu0 %v3817
        %4457 = vmatmul.mubr.bf16.gmra.mrb[0].mxu0 %v3816
        %v4458 = vpop.f32.mrb[0].mxu0
        %v4459 = vadd.f32 %v3957, %v4458
        %v4460 = vpop.f32.mrb[0].mxu0
        %v4461 = vadd.f32 %v3961, %v4460
        %v4462 = vpop.f32.mrb[0].mxu0
        %v4463 = vadd.f32 %v3957, %v4462
        %v4464 = vpop.f32.mrb[0].mxu0
        %v4465 = vadd.f32 %v3961, %v4464
        %4466 = vmatprep.mubr.bf16.mxu0 %v3821
        %4467 = vmatmul.mubr.bf16.gmra.mrb[0].mxu0 %v3820
        %v4468 = vpop.f32.mrb[0].mxu0
        %v4469 = vadd.f32 %v3957, %v4468
        %v4470 = vpop.f32.mrb[0].mxu0
        %v4471 = vadd.f32 %v3961, %v4470
        %v4472 = vpop.f32.mrb[0].mxu0
        %v4473 = vadd.f32 %v3957, %v4472
        %v4474 = vpop.f32.mrb[0].mxu0
        %v4475 = vadd.f32 %v3961, %v4474
        %4476 = vmatprep.mubr.bf16.mxu0 %v3825
        %4477 = vmatmul.mubr.bf16.gmra.mrb[0].mxu0 %v3824
        %v4478 = vpop.f32.mrb[0].mxu0
        %v4479 = vadd.f32 %v3957, %v4478
        %v4480 = vpop.f32.mrb[0].mxu0
        %v4481 = vadd.f32 %v3961, %v4480
        %v4482 = vpop.f32.mrb[0].mxu0
        %v4483 = vadd.f32 %v3957, %v4482
        %v4484 = vpop.f32.mrb[0].mxu0
        %v4485 = vadd.f32 %v3961, %v4484
        %4486 = vmatprep.mubr.bf16.mxu0 %v3829
        %4487 = vmatmul.mubr.bf16.gmra.mrb[0].mxu0 %v3828
        %v4488 = vpop.f32.mrb[0].mxu0
        %v4489 = vadd.f32 %v3957, %v4488
        %v4490 = vpop.f32.mrb[0].mxu0
        %v4491 = vadd.f32 %v3961, %v4490
        %v4492 = vpop.f32.mrb[0].mxu0
        %v4493 = vadd.f32 %v3957, %v4492
        %v4494 = vpop.f32.mrb[0].mxu0
        %v4495 = vadd.f32 %v3961, %v4494
        %4496 = vmatprep.mubr.bf16.mxu0 %v3833
        %4497 = vmatmul.mubr.bf16.gmra.mrb[0].mxu0 %v3832
        %v4498 = vpop.f32.mrb[0].mxu0
        %v4499 = vadd.f32 %v3957, %v4498
        %v4500 = vpop.f32.mrb[0].mxu0
        %v4501 = vadd.f32 %v3961, %v4500
        %v4502 = vpop.f32.mrb[0].mxu0
        %v4503 = vadd.f32 %v3957, %v4502
        %v4504 = vpop.f32.mrb[0].mxu0
        %v4505 = vadd.f32 %v3961, %v4504
        %4506 = vmatprep.mubr.bf16.mxu0 %v3837
        %4507 = vmatmul.mubr.bf16.gmra.mrb[0].mxu0 %v3836
        %v4508 = vpop.f32.mrb[0].mxu0
        %v4509 = vadd.f32 %v3957, %v4508
        %v4510 = vpop.f32.mrb[0].mxu0
        %v4511 = vadd.f32 %v3961, %v4510
        %v4512 = vpop.f32.mrb[0].mxu0
        %v4513 = vadd.f32 %v3957, %v4512
        %v4514 = vpop.f32.mrb[0].mxu0
        %v4515 = vadd.f32 %v3961, %v4514
        %4516 = vmatprep.mubr.bf16.mxu0 %v3841
        %4517 = vmatmul.mubr.bf16.gmra.mrb[0].mxu0 %v3840
        %v4518 = vpop.f32.mrb[0].mxu0
        %v4519 = vadd.f32 %v3957, %v4518
        %v4520 = vpop.f32.mrb[0].mxu0
        %v4521 = vadd.f32 %v3961, %v4520
        %v4522 = vpop.f32.mrb[0].mxu0
        %v4523 = vadd.f32 %v3957, %v4522
        %v4524 = vpop.f32.mrb[0].mxu0
        %v4525 = vadd.f32 %v3961, %v4524
        %4526 = vmatprep.mubr.bf16.mxu0 %v3845
        %4527 = vmatmul.mubr.bf16.gmra.mrb[0].mxu0 %v3844
        %v4528 = vpop.f32.mrb[0].mxu0
        %v4529 = vadd.f32 %v3957, %v4528
        %v4530 = vpop.f32.mrb[0].mxu0
        %v4531 = vadd.f32 %v3961, %v4530
        %v4532 = vpop.f32.mrb[0].mxu0
        %v4533 = vadd.f32 %v3957, %v4532
        %v4534 = vpop.f32.mrb[0].mxu0
        %v4535 = vadd.f32 %v3961, %v4534
        %4536 = vmatprep.mubr.bf16.mxu0 %v3849
        %4537 = vmatmul.mubr.bf16.gmra.mrb[0].mxu0 %v3848
        %v4538 = vpop.f32.mrb[0].mxu0
        %v4539 = vadd.f32 %v3957, %v4538
        %v4540 = vpop.f32.mrb[0].mxu0
        %v4541 = vadd.f32 %v3961, %v4540
        %v4542 = vpop.f32.mrb[0].mxu0
        %v4543 = vadd.f32 %v3957, %v4542
        %v4544 = vpop.f32.mrb[0].mxu0
        %v4545 = vadd.f32 %v3961, %v4544
        %4546 = vmatprep.mubr.bf16.mxu0 %v3853
        %4547 = vmatmul.mubr.bf16.gmra.mrb[0].mxu0 %v3852
        %v4548 = vpop.f32.mrb[0].mxu0
        %v4549 = vadd.f32 %v3957, %v4548
        %v4550 = vpop.f32.mrb[0].mxu0
        %v4551 = vadd.f32 %v3961, %v4550
        %v4552 = vpop.f32.mrb[0].mxu0
        %v4553 = vadd.f32 %v3957, %v4552
        %v4554 = vpop.f32.mrb[0].mxu0
        %v4555 = vadd.f32 %v3961, %v4554
        %4556 = vmatprep.mubr.bf16.mxu0 %v3857
        %4557 = vmatmul.mubr.bf16.gmra.mrb[0].mxu0 %v3856
        %v4558 = vpop.f32.mrb[0].mxu0
        %v4559 = vadd.f32 %v3957, %v4558
        %v4560 = vpop.f32.mrb[0].mxu0
        %v4561 = vadd.f32 %v3961, %v4560
        %v4562 = vpop.f32.mrb[0].mxu0
        %v4563 = vadd.f32 %v3957, %v4562
        %v4564 = vpop.f32.mrb[0].mxu0
        %v4565 = vadd.f32 %v3961, %v4564
        %4566 = vmatprep.mubr.bf16.mxu0 %v3861
        %4567 = vmatmul.mubr.bf16.gmra.mrb[0].mxu0 %v3860
        %v4568 = vpop.f32.mrb[0].mxu0
        %v4569 = vadd.f32 %v3957, %v4568
        %v4570 = vpop.f32.mrb[0].mxu0
        %v4571 = vadd.f32 %v3961, %v4570
        %v4572 = vpop.f32.mrb[0].mxu0
        %v4573 = vadd.f32 %v3957, %v4572
        %v4574 = vpop.f32.mrb[0].mxu0
        %v4575 = vadd.f32 %v3961, %v4574
        %4576 = vmatprep.mubr.bf16.mxu0 %v3865
        %4577 = vmatmul.mubr.bf16.gmra.mrb[0].mxu0 %v3864
        %v4578 = vpop.f32.mrb[0].mxu0
        %v4579 = vadd.f32 %v3957, %v4578
        %v4580 = vpop.f32.mrb[0].mxu0
        %v4581 = vadd.f32 %v3961, %v4580
        %v4582 = vpop.f32.mrb[0].mxu0
        %v4583 = vadd.f32 %v3957, %v4582
        %v4584 = vpop.f32.mrb[0].mxu0
        %v4585 = vadd.f32 %v3961, %v4584
        %4586 = vmatprep.mubr.bf16.mxu0 %v3869
        %4587 = vmatmul.mubr.bf16.gmra.mrb[0].mxu0 %v3868
        %v4588 = vpop.f32.mrb[0].mxu0
        %v4589 = vadd.f32 %v3957, %v4588
        %v4590 = vpop.f32.mrb[0].mxu0
        %v4591 = vadd.f32 %v3961, %v4590
        %v4592 = vpop.f32.mrb[0].mxu0
        %v4593 = vadd.f32 %v3957, %v4592
        %v4594 = vpop.f32.mrb[0].mxu0
        %v4595 = vadd.f32 %v3961, %v4594
        %4596 = vmatprep.mubr.bf16.mxu0 %v3873
        %4597 = vmatmul.mubr.bf16.gmra.mrb[0].mxu0 %v3872
        %v4598 = vpop.f32.mrb[0].mxu0
        %v4599 = vadd.f32 %v3957, %v4598
        %v4600 = vpop.f32.mrb[0].mxu0
        %v4601 = vadd.f32 %v3961, %v4600
        %v4602 = vpop.f32.mrb[0].mxu0
        %v4603 = vadd.f32 %v3957, %v4602
        %v4604 = vpop.f32.mrb[0].mxu0
        %v4605 = vadd.f32 %v3961, %v4604
        %4606 = vmatprep.mubr.bf16.mxu0 %v3877
        %4607 = vmatmul.mubr.bf16.gmra.mrb[0].mxu0 %v3876
        %v4608 = vpop.f32.mrb[0].mxu0
        %v4609 = vadd.f32 %v3957, %v4608
        %v4610 = vpop.f32.mrb[0].mxu0
        %v4611 = vadd.f32 %v3961, %v4610
        %v4612 = vpop.f32.mrb[0].mxu0
        %v4613 = vadd.f32 %v3957, %v4612
        %v4614 = vpop.f32.mrb[0].mxu0
        %v4615 = vadd.f32 %v3961, %v4614
        %4616 = vmatprep.mubr.bf16.mxu0 %v3881
        %4617 = vmatmul.mubr.bf16.gmra.mrb[0].mxu0 %v3880
        %v4618 = vpop.f32.mrb[0].mxu0
        %v4619 = vadd.f32 %v3957, %v4618
        %v4620 = vpop.f32.mrb[0].mxu0
        %v4621 = vadd.f32 %v3961, %v4620
        %v4622 = vpop.f32.mrb[0].mxu0
        %v4623 = vadd.f32 %v3957, %v4622
        %v4624 = vpop.f32.mrb[0].mxu0
        %v4625 = vadd.f32 %v3961, %v4624
        %4626 = vmatprep.mubr.bf16.mxu0 %v3885
        %4627 = vmatmul.mubr.bf16.gmra.mrb[0].mxu0 %v3884
        %v4628 = vpop.f32.mrb[0].mxu0
        %v4629 = vadd.f32 %v3957, %v4628
        %v4630 = vpop.f32.mrb[0].mxu0
        %v4631 = vadd.f32 %v3961, %v4630
        %v4632 = vpop.f32.mrb[0].mxu0
        %v4633 = vadd.f32 %v3957, %v4632
        %v4634 = vpop.f32.mrb[0].mxu0
        %v4635 = vadd.f32 %v3961, %v4634
        %4636 = vdwg.mxu0
        %4637 = vmatprep.subr.bf16.mxu0 %v4189
        %4638 = vmatpush1.bf16.msra.mxu0 %v4188
        %4639 = vmatprep.subr.bf16.mxu0 %v4191
        %4640 = vmatpush1.bf16.msra.mxu0 %v4190
        %4641 = vmatprep.subr.bf16.mxu0 %v4193
        %4642 = vmatpush1.bf16.msra.mxu0 %v4192
        %4643 = vmatprep.subr.bf16.mxu0 %v4195
        %4644 = vmatpush1.bf16.msra.mxu0 %v4194
        %4645 = vmatprep.subr.bf16.mxu0 %v4197
        %4646 = vmatpush1.bf16.msra.mxu0 %v4196
        %4647 = vmatprep.subr.bf16.mxu0 %v4199
        %4648 = vmatpush1.bf16.msra.mxu0 %v4198
        %4649 = vmatprep.subr.bf16.mxu0 %v4201
        %4650 = vmatpush1.bf16.msra.mxu0 %v4200
        %4651 = vmatprep.subr.bf16.mxu0 %v4203
        %4652 = vmatpush1.bf16.msra.mxu0 %v4202
        %4653 = vmatprep.subr.bf16.mxu0 %v4205
        %4654 = vmatpush1.bf16.msra.mxu0 %v4204
        %4655 = vmatprep.subr.bf16.mxu0 %v4207
        %4656 = vmatpush1.bf16.msra.mxu0 %v4206
        %4657 = vmatprep.subr.bf16.mxu0 %v4209
        %4658 = vmatpush1.bf16.msra.mxu0 %v4208
        %4659 = vmatprep.subr.bf16.mxu0 %v4211
        %4660 = vmatpush1.bf16.msra.mxu0 %v4210
        %4661 = vmatprep.subr.bf16.mxu0 %v4213
        %4662 = vmatpush1.bf16.msra.mxu0 %v4212
        %4663 = vmatprep.subr.bf16.mxu0 %v4215
        %4664 = vmatpush1.bf16.msra.mxu0 %v4214
        %4665 = vmatprep.subr.bf16.mxu0 %v4217
        %4666 = vmatpush1.bf16.msra.mxu0 %v4216
        %4667 = vmatprep.subr.bf16.mxu0 %v4219
        %4668 = vmatpush1.bf16.msra.mxu0 %v4218
        %4669 = vmatprep.mubr.bf16.mxu0 %v3763
        %4670 = vmatmul.mubr.bf16.gmra.mrb[0].mxu0 %v3762
        %v4671 = vpop.f32.mrb[0].mxu0
        %v4672 = vadd.f32 %v4319, %v4671
        %v4673 = vpop.f32.mrb[0].mxu0
        %v4674 = vadd.f32 %v4321, %v4673
        %v4675 = vpop.f32.mrb[0].mxu0
        %v4676 = vadd.f32 %v4323, %v4675
        %v4677 = vpop.f32.mrb[0].mxu0
        %v4678 = vadd.f32 %v4325, %v4677
        %4679 = vmatprep.mubr.bf16.mxu0 %v3767
        %4680 = vmatmul.mubr.bf16.gmra.mrb[0].mxu0 %v3766
        %v4681 = vpop.f32.mrb[0].mxu0
        %v4682 = vadd.f32 %v4329, %v4681
        %v4683 = vpop.f32.mrb[0].mxu0
        %v4684 = vadd.f32 %v4331, %v4683
        %v4685 = vpop.f32.mrb[0].mxu0
        %v4686 = vadd.f32 %v4333, %v4685
        %v4687 = vpop.f32.mrb[0].mxu0
        %v4688 = vadd.f32 %v4335, %v4687
        %4689 = vmatprep.mubr.bf16.mxu0 %v3771
        %4690 = vmatmul.mubr.bf16.gmra.mrb[0].mxu0 %v3770
        %v4691 = vpop.f32.mrb[0].mxu0
        %v4692 = vadd.f32 %v4339, %v4691
        %v4693 = vpop.f32.mrb[0].mxu0
        %v4694 = vadd.f32 %v4341, %v4693
        %v4695 = vpop.f32.mrb[0].mxu0
        %v4696 = vadd.f32 %v4343, %v4695
        %v4697 = vpop.f32.mrb[0].mxu0
        %v4698 = vadd.f32 %v4345, %v4697
        %4699 = vmatprep.mubr.bf16.mxu0 %v3775
        %4700 = vmatmul.mubr.bf16.gmra.mrb[0].mxu0 %v3774
        %v4701 = vpop.f32.mrb[0].mxu0
        %v4702 = vadd.f32 %v4349, %v4701
        %v4703 = vpop.f32.mrb[0].mxu0
        %v4704 = vadd.f32 %v4351, %v4703
        %v4705 = vpop.f32.mrb[0].mxu0
        %v4706 = vadd.f32 %v4353, %v4705
        %v4707 = vpop.f32.mrb[0].mxu0
        %v4708 = vadd.f32 %v4355, %v4707
        %4709 = vmatprep.mubr.bf16.mxu0 %v3779
        %4710 = vmatmul.mubr.bf16.gmra.mrb[0].mxu0 %v3778
        %v4711 = vpop.f32.mrb[0].mxu0
        %v4712 = vadd.f32 %v4359, %v4711
        %v4713 = vpop.f32.mrb[0].mxu0
        %v4714 = vadd.f32 %v4361, %v4713
        %v4715 = vpop.f32.mrb[0].mxu0
        %v4716 = vadd.f32 %v4363, %v4715
        %v4717 = vpop.f32.mrb[0].mxu0
        %v4718 = vadd.f32 %v4365, %v4717
        %4719 = vmatprep.mubr.bf16.mxu0 %v3783
        %4720 = vmatmul.mubr.bf16.gmra.mrb[0].mxu0 %v3782
        %v4721 = vpop.f32.mrb[0].mxu0
        %v4722 = vadd.f32 %v4369, %v4721
        %v4723 = vpop.f32.mrb[0].mxu0
        %v4724 = vadd.f32 %v4371, %v4723
        %v4725 = vpop.f32.mrb[0].mxu0
        %v4726 = vadd.f32 %v4373, %v4725
        %v4727 = vpop.f32.mrb[0].mxu0
        %v4728 = vadd.f32 %v4375, %v4727
        %4729 = vmatprep.mubr.bf16.mxu0 %v3787
        %4730 = vmatmul.mubr.bf16.gmra.mrb[0].mxu0 %v3786
        %v4731 = vpop.f32.mrb[0].mxu0
        %v4732 = vadd.f32 %v4379, %v4731
        %v4733 = vpop.f32.mrb[0].mxu0
        %v4734 = vadd.f32 %v4381, %v4733
        %v4735 = vpop.f32.mrb[0].mxu0
        %v4736 = vadd.f32 %v4383, %v4735
        %v4737 = vpop.f32.mrb[0].mxu0
        %v4738 = vadd.f32 %v4385, %v4737
        %4739 = vmatprep.mubr.bf16.mxu0 %v3791
        %4740 = vmatmul.mubr.bf16.gmra.mrb[0].mxu0 %v3790
        %v4741 = vpop.f32.mrb[0].mxu0
        %v4742 = vadd.f32 %v4389, %v4741
        %v4743 = vpop.f32.mrb[0].mxu0
        %v4744 = vadd.f32 %v4391, %v4743
        %v4745 = vpop.f32.mrb[0].mxu0
        %v4746 = vadd.f32 %v4393, %v4745
        %v4747 = vpop.f32.mrb[0].mxu0
        %v4748 = vadd.f32 %v4395, %v4747
        %4749 = vmatprep.mubr.bf16.mxu0 %v3795
        %4750 = vmatmul.mubr.bf16.gmra.mrb[0].mxu0 %v3794
        %v4751 = vpop.f32.mrb[0].mxu0
        %v4752 = vadd.f32 %v4399, %v4751
        %v4753 = vpop.f32.mrb[0].mxu0
        %v4754 = vadd.f32 %v4401, %v4753
        %v4755 = vpop.f32.mrb[0].mxu0
        %v4756 = vadd.f32 %v4403, %v4755
        %v4757 = vpop.f32.mrb[0].mxu0
        %v4758 = vadd.f32 %v4405, %v4757
        %4759 = vmatprep.mubr.bf16.mxu0 %v3799
        %4760 = vmatmul.mubr.bf16.gmra.mrb[0].mxu0 %v3798
        %v4761 = vpop.f32.mrb[0].mxu0
        %v4762 = vadd.f32 %v4409, %v4761
        %v4763 = vpop.f32.mrb[0].mxu0
        %v4764 = vadd.f32 %v4411, %v4763
        %v4765 = vpop.f32.mrb[0].mxu0
        %v4766 = vadd.f32 %v4413, %v4765
        %v4767 = vpop.f32.mrb[0].mxu0
        %v4768 = vadd.f32 %v4415, %v4767
        %4769 = vmatprep.mubr.bf16.mxu0 %v3803
        %4770 = vmatmul.mubr.bf16.gmra.mrb[0].mxu0 %v3802
        %v4771 = vpop.f32.mrb[0].mxu0
        %v4772 = vadd.f32 %v4419, %v4771
        %v4773 = vpop.f32.mrb[0].mxu0
        %v4774 = vadd.f32 %v4421, %v4773
        %v4775 = vpop.f32.mrb[0].mxu0
        %v4776 = vadd.f32 %v4423, %v4775
        %v4777 = vpop.f32.mrb[0].mxu0
        %v4778 = vadd.f32 %v4425, %v4777
        %4779 = vmatprep.mubr.bf16.mxu0 %v3807
        %4780 = vmatmul.mubr.bf16.gmra.mrb[0].mxu0 %v3806
        %v4781 = vpop.f32.mrb[0].mxu0
        %v4782 = vadd.f32 %v4429, %v4781
        %v4783 = vpop.f32.mrb[0].mxu0
        %v4784 = vadd.f32 %v4431, %v4783
        %v4785 = vpop.f32.mrb[0].mxu0
        %v4786 = vadd.f32 %v4433, %v4785
        %v4787 = vpop.f32.mrb[0].mxu0
        %v4788 = vadd.f32 %v4435, %v4787
        %4789 = vmatprep.mubr.bf16.mxu0 %v3811
        %4790 = vmatmul.mubr.bf16.gmra.mrb[0].mxu0 %v3810
        %v4791 = vpop.f32.mrb[0].mxu0
        %v4792 = vadd.f32 %v4439, %v4791
        %v4793 = vpop.f32.mrb[0].mxu0
        %v4794 = vadd.f32 %v4441, %v4793
        %v4795 = vpop.f32.mrb[0].mxu0
        %v4796 = vadd.f32 %v4443, %v4795
        %v4797 = vpop.f32.mrb[0].mxu0
        %v4798 = vadd.f32 %v4445, %v4797
        %4799 = vmatprep.mubr.bf16.mxu0 %v3815
        %4800 = vmatmul.mubr.bf16.gmra.mrb[0].mxu0 %v3814
        %v4801 = vpop.f32.mrb[0].mxu0
        %v4802 = vadd.f32 %v4449, %v4801
        %v4803 = vpop.f32.mrb[0].mxu0
        %v4804 = vadd.f32 %v4451, %v4803
        %v4805 = vpop.f32.mrb[0].mxu0
        %v4806 = vadd.f32 %v4453, %v4805
        %v4807 = vpop.f32.mrb[0].mxu0
        %v4808 = vadd.f32 %v4455, %v4807
        %4809 = vmatprep.mubr.bf16.mxu0 %v3819
        %4810 = vmatmul.mubr.bf16.gmra.mrb[0].mxu0 %v3818
        %v4811 = vpop.f32.mrb[0].mxu0
        %v4812 = vadd.f32 %v4459, %v4811
        %v4813 = vpop.f32.mrb[0].mxu0
        %v4814 = vadd.f32 %v4461, %v4813
        %v4815 = vpop.f32.mrb[0].mxu0
        %v4816 = vadd.f32 %v4463, %v4815
        %v4817 = vpop.f32.mrb[0].mxu0
        %v4818 = vadd.f32 %v4465, %v4817
        %4819 = vmatprep.mubr.bf16.mxu0 %v3823
        %4820 = vmatmul.mubr.bf16.gmra.mrb[0].mxu0 %v3822
        %v4821 = vpop.f32.mrb[0].mxu0
        %v4822 = vadd.f32 %v4469, %v4821
        %v4823 = vpop.f32.mrb[0].mxu0
        %v4824 = vadd.f32 %v4471, %v4823
        %v4825 = vpop.f32.mrb[0].mxu0
        %v4826 = vadd.f32 %v4473, %v4825
        %v4827 = vpop.f32.mrb[0].mxu0
        %v4828 = vadd.f32 %v4475, %v4827
        %4829 = vmatprep.mubr.bf16.mxu0 %v3827
        %4830 = vmatmul.mubr.bf16.gmra.mrb[0].mxu0 %v3826
        %v4831 = vpop.f32.mrb[0].mxu0
        %v4832 = vadd.f32 %v4479, %v4831
        %v4833 = vpop.f32.mrb[0].mxu0
        %v4834 = vadd.f32 %v4481, %v4833
        %v4835 = vpop.f32.mrb[0].mxu0
        %v4836 = vadd.f32 %v4483, %v4835
        %v4837 = vpop.f32.mrb[0].mxu0
        %v4838 = vadd.f32 %v4485, %v4837
        %4839 = vmatprep.mubr.bf16.mxu0 %v3831
        %4840 = vmatmul.mubr.bf16.gmra.mrb[0].mxu0 %v3830
        %v4841 = vpop.f32.mrb[0].mxu0
        %v4842 = vadd.f32 %v4489, %v4841
        %v4843 = vpop.f32.mrb[0].mxu0
        %v4844 = vadd.f32 %v4491, %v4843
        %v4845 = vpop.f32.mrb[0].mxu0
        %v4846 = vadd.f32 %v4493, %v4845
        %v4847 = vpop.f32.mrb[0].mxu0
        %v4848 = vadd.f32 %v4495, %v4847
        %4849 = vmatprep.mubr.bf16.mxu0 %v3835
        %4850 = vmatmul.mubr.bf16.gmra.mrb[0].mxu0 %v3834
        %v4851 = vpop.f32.mrb[0].mxu0
        %v4852 = vadd.f32 %v4499, %v4851
        %v4853 = vpop.f32.mrb[0].mxu0
        %v4854 = vadd.f32 %v4501, %v4853
        %v4855 = vpop.f32.mrb[0].mxu0
        %v4856 = vadd.f32 %v4503, %v4855
        %v4857 = vpop.f32.mrb[0].mxu0
        %v4858 = vadd.f32 %v4505, %v4857
        %4859 = vmatprep.mubr.bf16.mxu0 %v3839
        %4860 = vmatmul.mubr.bf16.gmra.mrb[0].mxu0 %v3838
        %v4861 = vpop.f32.mrb[0].mxu0
        %v4862 = vadd.f32 %v4509, %v4861
        %v4863 = vpop.f32.mrb[0].mxu0
        %v4864 = vadd.f32 %v4511, %v4863
        %v4865 = vpop.f32.mrb[0].mxu0
        %v4866 = vadd.f32 %v4513, %v4865
        %v4867 = vpop.f32.mrb[0].mxu0
        %v4868 = vadd.f32 %v4515, %v4867
        %4869 = vmatprep.mubr.bf16.mxu0 %v3843
        %4870 = vmatmul.mubr.bf16.gmra.mrb[0].mxu0 %v3842
        %v4871 = vpop.f32.mrb[0].mxu0
        %v4872 = vadd.f32 %v4519, %v4871
        %v4873 = vpop.f32.mrb[0].mxu0
        %v4874 = vadd.f32 %v4521, %v4873
        %v4875 = vpop.f32.mrb[0].mxu0
        %v4876 = vadd.f32 %v4523, %v4875
        %v4877 = vpop.f32.mrb[0].mxu0
        %v4878 = vadd.f32 %v4525, %v4877
        %4879 = vmatprep.mubr.bf16.mxu0 %v3847
        %4880 = vmatmul.mubr.bf16.gmra.mrb[0].mxu0 %v3846
        %v4881 = vpop.f32.mrb[0].mxu0
        %v4882 = vadd.f32 %v4529, %v4881
        %v4883 = vpop.f32.mrb[0].mxu0
        %v4884 = vadd.f32 %v4531, %v4883
        %v4885 = vpop.f32.mrb[0].mxu0
        %v4886 = vadd.f32 %v4533, %v4885
        %v4887 = vpop.f32.mrb[0].mxu0
        %v4888 = vadd.f32 %v4535, %v4887
        %4889 = vmatprep.mubr.bf16.mxu0 %v3851
        %4890 = vmatmul.mubr.bf16.gmra.mrb[0].mxu0 %v3850
        %v4891 = vpop.f32.mrb[0].mxu0
        %v4892 = vadd.f32 %v4539, %v4891
        %v4893 = vpop.f32.mrb[0].mxu0
        %v4894 = vadd.f32 %v4541, %v4893
        %v4895 = vpop.f32.mrb[0].mxu0
        %v4896 = vadd.f32 %v4543, %v4895
        %v4897 = vpop.f32.mrb[0].mxu0
        %v4898 = vadd.f32 %v4545, %v4897
        %4899 = vmatprep.mubr.bf16.mxu0 %v3855
        %4900 = vmatmul.mubr.bf16.gmra.mrb[0].mxu0 %v3854
        %v4901 = vpop.f32.mrb[0].mxu0
        %v4902 = vadd.f32 %v4549, %v4901
        %v4903 = vpop.f32.mrb[0].mxu0
        %v4904 = vadd.f32 %v4551, %v4903
        %v4905 = vpop.f32.mrb[0].mxu0
        %v4906 = vadd.f32 %v4553, %v4905
        %v4907 = vpop.f32.mrb[0].mxu0
        %v4908 = vadd.f32 %v4555, %v4907
        %4909 = vmatprep.mubr.bf16.mxu0 %v3859
        %4910 = vmatmul.mubr.bf16.gmra.mrb[0].mxu0 %v3858
        %v4911 = vpop.f32.mrb[0].mxu0
        %v4912 = vadd.f32 %v4559, %v4911
        %v4913 = vpop.f32.mrb[0].mxu0
        %v4914 = vadd.f32 %v4561, %v4913
        %v4915 = vpop.f32.mrb[0].mxu0
        %v4916 = vadd.f32 %v4563, %v4915
        %v4917 = vpop.f32.mrb[0].mxu0
        %v4918 = vadd.f32 %v4565, %v4917
        %4919 = vmatprep.mubr.bf16.mxu0 %v3863
        %4920 = vmatmul.mubr.bf16.gmra.mrb[0].mxu0 %v3862
        %v4921 = vpop.f32.mrb[0].mxu0
        %v4922 = vadd.f32 %v4569, %v4921
        %v4923 = vpop.f32.mrb[0].mxu0
        %v4924 = vadd.f32 %v4571, %v4923
        %v4925 = vpop.f32.mrb[0].mxu0
        %v4926 = vadd.f32 %v4573, %v4925
        %v4927 = vpop.f32.mrb[0].mxu0
        %v4928 = vadd.f32 %v4575, %v4927
        %4929 = vmatprep.mubr.bf16.mxu0 %v3867
        %4930 = vmatmul.mubr.bf16.gmra.mrb[0].mxu0 %v3866
        %v4931 = vpop.f32.mrb[0].mxu0
        %v4932 = vadd.f32 %v4579, %v4931
        %v4933 = vpop.f32.mrb[0].mxu0
        %v4934 = vadd.f32 %v4581, %v4933
        %v4935 = vpop.f32.mrb[0].mxu0
        %v4936 = vadd.f32 %v4583, %v4935
        %v4937 = vpop.f32.mrb[0].mxu0
        %v4938 = vadd.f32 %v4585, %v4937
        %4939 = vmatprep.mubr.bf16.mxu0 %v3871
        %4940 = vmatmul.mubr.bf16.gmra.mrb[0].mxu0 %v3870
        %v4941 = vpop.f32.mrb[0].mxu0
        %v4942 = vadd.f32 %v4589, %v4941
        %v4943 = vpop.f32.mrb[0].mxu0
        %v4944 = vadd.f32 %v4591, %v4943
        %v4945 = vpop.f32.mrb[0].mxu0
        %v4946 = vadd.f32 %v4593, %v4945
        %v4947 = vpop.f32.mrb[0].mxu0
        %v4948 = vadd.f32 %v4595, %v4947
        %4949 = vmatprep.mubr.bf16.mxu0 %v3875
        %4950 = vmatmul.mubr.bf16.gmra.mrb[0].mxu0 %v3874
        %v4951 = vpop.f32.mrb[0].mxu0
        %v4952 = vadd.f32 %v4599, %v4951
        %v4953 = vpop.f32.mrb[0].mxu0
        %v4954 = vadd.f32 %v4601, %v4953
        %v4955 = vpop.f32.mrb[0].mxu0
        %v4956 = vadd.f32 %v4603, %v4955
        %v4957 = vpop.f32.mrb[0].mxu0
        %v4958 = vadd.f32 %v4605, %v4957
        %4959 = vmatprep.mubr.bf16.mxu0 %v3879
        %4960 = vmatmul.mubr.bf16.gmra.mrb[0].mxu0 %v3878
        %v4961 = vpop.f32.mrb[0].mxu0
        %v4962 = vadd.f32 %v4609, %v4961
        %v4963 = vpop.f32.mrb[0].mxu0
        %v4964 = vadd.f32 %v4611, %v4963
        %v4965 = vpop.f32.mrb[0].mxu0
        %v4966 = vadd.f32 %v4613, %v4965
        %v4967 = vpop.f32.mrb[0].mxu0
        %v4968 = vadd.f32 %v4615, %v4967
        %4969 = vmatprep.mubr.bf16.mxu0 %v3883
        %4970 = vmatmul.mubr.bf16.gmra.mrb[0].mxu0 %v3882
        %v4971 = vpop.f32.mrb[0].mxu0
        %v4972 = vadd.f32 %v4619, %v4971
        %v4973 = vpop.f32.mrb[0].mxu0
        %v4974 = vadd.f32 %v4621, %v4973
        %v4975 = vpop.f32.mrb[0].mxu0
        %v4976 = vadd.f32 %v4623, %v4975
        %v4977 = vpop.f32.mrb[0].mxu0
        %v4978 = vadd.f32 %v4625, %v4977
        %4979 = vmatprep.mubr.bf16.mxu0 %v3887
        %4980 = vmatmul.mubr.bf16.gmra.mrb[0].mxu0 %v3886
        %v4981 = vpop.f32.mrb[0].mxu0
        %v4982 = vadd.f32 %v4629, %v4981
        %v4983 = vpop.f32.mrb[0].mxu0
        %v4984 = vadd.f32 %v4631, %v4983
        %v4985 = vpop.f32.mrb[0].mxu0
        %v4986 = vadd.f32 %v4633, %v4985
        %v4987 = vpop.f32.mrb[0].mxu0
        %v4988 = vadd.f32 %v4635, %v4987
        %4989 = vdwg.mxu0
        %v4990 = vadd.f32 %v4672, %v279
        %v4991 = vadd.f32 %v4674, %v280
        %v4992 = vadd.f32 %v4676, %v281
        %v4993 = vadd.f32 %v4678, %v282
        %v4994 = vadd.f32 %v4682, %v283
        %v4995 = vadd.f32 %v4684, %v284
        %v4996 = vadd.f32 %v4686, %v285
        %v4997 = vadd.f32 %v4688, %v286
        %v4998 = vadd.f32 %v4692, %v287
        %v4999 = vadd.f32 %v4694, %v288
        %v5000 = vadd.f32 %v4696, %v289
        %v5001 = vadd.f32 %v4698, %v290
        %v5002 = vadd.f32 %v4702, %v291
        %v5003 = vadd.f32 %v4704, %v292
        %v5004 = vadd.f32 %v4706, %v293
        %v5005 = vadd.f32 %v4708, %v294
        %v5006 = vadd.f32 %v4712, %v295
        %v5007 = vadd.f32 %v4714, %v296
        %v5008 = vadd.f32 %v4716, %v297
        %v5009 = vadd.f32 %v4718, %v298
        %v5010 = vadd.f32 %v4722, %v299
        %v5011 = vadd.f32 %v4724, %v300
        %v5012 = vadd.f32 %v4726, %v301
        %v5013 = vadd.f32 %v4728, %v302
        %v5014 = vadd.f32 %v4732, %v303
        %v5015 = vadd.f32 %v4734, %v304
        %v5016 = vadd.f32 %v4736, %v305
        %v5017 = vadd.f32 %v4738, %v306
        %v5018 = vadd.f32 %v4742, %v307
        %v5019 = vadd.f32 %v4744, %v308
        %v5020 = vadd.f32 %v4746, %v309
        %v5021 = vadd.f32 %v4748, %v310
        %v5022 = vadd.f32 %v4752, %v311
        %v5023 = vadd.f32 %v4754, %v312
        %v5024 = vadd.f32 %v4756, %v313
        %v5025 = vadd.f32 %v4758, %v314
        %v5026 = vadd.f32 %v4762, %v315
        %v5027 = vadd.f32 %v4764, %v316
        %v5028 = vadd.f32 %v4766, %v317
        %v5029 = vadd.f32 %v4768, %v318
        %v5030 = vadd.f32 %v4772, %v319
        %v5031 = vadd.f32 %v4774, %v320
        %v5032 = vadd.f32 %v4776, %v321
        %v5033 = vadd.f32 %v4778, %v322
        %v5034 = vadd.f32 %v4782, %v323
        %v5035 = vadd.f32 %v4784, %v324
        %v5036 = vadd.f32 %v4786, %v325
        %v5037 = vadd.f32 %v4788, %v326
        %v5038 = vadd.f32 %v4792, %v327
        %v5039 = vadd.f32 %v4794, %v328
        %v5040 = vadd.f32 %v4796, %v329
        %v5041 = vadd.f32 %v4798, %v330
        %v5042 = vadd.f32 %v4802, %v331
        %v5043 = vadd.f32 %v4804, %v332
        %v5044 = vadd.f32 %v4806, %v333
        %v5045 = vadd.f32 %v4808, %v334
        %v5046 = vadd.f32 %v4812, %v335
        %v5047 = vadd.f32 %v4814, %v336
        %v5048 = vadd.f32 %v4816, %v337
        %v5049 = vadd.f32 %v4818, %v338
        %v5050 = vadd.f32 %v4822, %v339
        %v5051 = vadd.f32 %v4824, %v340
        %v5052 = vadd.f32 %v4826, %v341
        %v5053 = vadd.f32 %v4828, %v342
        %v5054 = vadd.f32 %v4832, %v343
        %v5055 = vadd.f32 %v4834, %v344
        %v5056 = vadd.f32 %v4836, %v345
        %v5057 = vadd.f32 %v4838, %v346
        %v5058 = vadd.f32 %v4842, %v347
        %v5059 = vadd.f32 %v4844, %v348
        %v5060 = vadd.f32 %v4846, %v349
        %v5061 = vadd.f32 %v4848, %v350
        %v5062 = vadd.f32 %v4852, %v351
        %v5063 = vadd.f32 %v4854, %v352
        %v5064 = vadd.f32 %v4856, %v353
        %v5065 = vadd.f32 %v4858, %v354
        %v5066 = vadd.f32 %v4862, %v355
        %v5067 = vadd.f32 %v4864, %v356
        %v5068 = vadd.f32 %v4866, %v357
        %v5069 = vadd.f32 %v4868, %v358
        %v5070 = vadd.f32 %v4872, %v359
        %v5071 = vadd.f32 %v4874, %v360
        %v5072 = vadd.f32 %v4876, %v361
        %v5073 = vadd.f32 %v4878, %v362
        %v5074 = vadd.f32 %v4882, %v363
        %v5075 = vadd.f32 %v4884, %v364
        %v5076 = vadd.f32 %v4886, %v365
        %v5077 = vadd.f32 %v4888, %v366
        %v5078 = vadd.f32 %v4892, %v367
        %v5079 = vadd.f32 %v4894, %v368
        %v5080 = vadd.f32 %v4896, %v369
        %v5081 = vadd.f32 %v4898, %v370
        %v5082 = vadd.f32 %v4902, %v371
        %v5083 = vadd.f32 %v4904, %v372
        %v5084 = vadd.f32 %v4906, %v373
        %v5085 = vadd.f32 %v4908, %v374
        %v5086 = vadd.f32 %v4912, %v375
        %v5087 = vadd.f32 %v4914, %v376
        %v5088 = vadd.f32 %v4916, %v377
        %v5089 = vadd.f32 %v4918, %v378
        %v5090 = vadd.f32 %v4922, %v379
        %v5091 = vadd.f32 %v4924, %v380
        %v5092 = vadd.f32 %v4926, %v381
        %v5093 = vadd.f32 %v4928, %v382
        %v5094 = vadd.f32 %v4932, %v383
        %v5095 = vadd.f32 %v4934, %v384
        %v5096 = vadd.f32 %v4936, %v385
        %v5097 = vadd.f32 %v4938, %v386
        %v5098 = vadd.f32 %v4942, %v387
        %v5099 = vadd.f32 %v4944, %v388
        %v5100 = vadd.f32 %v4946, %v389
        %v5101 = vadd.f32 %v4948, %v390
        %v5102 = vadd.f32 %v4952, %v391
        %v5103 = vadd.f32 %v4954, %v392
        %v5104 = vadd.f32 %v4956, %v393
        %v5105 = vadd.f32 %v4958, %v394
        %v5106 = vadd.f32 %v4962, %v395
        %v5107 = vadd.f32 %v4964, %v396
        %v5108 = vadd.f32 %v4966, %v397
        %v5109 = vadd.f32 %v4968, %v398
        %v5110 = vadd.f32 %v4972, %v399
        %v5111 = vadd.f32 %v4974, %v400
        %v5112 = vadd.f32 %v4976, %v401
        %v5113 = vadd.f32 %v4978, %v402
        %v5114 = vadd.f32 %v4982, %v403
        %v5115 = vadd.f32 %v4984, %v404
        %v5116 = vadd.f32 %v4986, %v405
        %v5117 = vadd.f32 %v4988, %v406
        %5118 = vst [vmem:[%s272] sm:$0xff] %v4990
        %5119 = vst [vmem:[%s272 + $0x8] sm:$0xff] %v4991
        %5120 = vst [vmem:[%s272 + $0x10] sm:$0xff] %v4992
        %5121 = vst [vmem:[%s272 + $0x18] sm:$0xff] %v4993
        %5122 = vst [vmem:[%s272 + $0x20] sm:$0xff] %v4994
        %5123 = vst [vmem:[%s272 + $0x28] sm:$0xff] %v4995
        %5124 = vst [vmem:[%s272 + $0x30] sm:$0xff] %v4996
        %5125 = vst [vmem:[%s272 + $0x38] sm:$0xff] %v4997
        %5126 = vst [vmem:[%s272 + $0x40] sm:$0xff] %v4998
        %5127 = vst [vmem:[%s272 + $0x48] sm:$0xff] %v4999
        %5128 = vst [vmem:[%s272 + $0x50] sm:$0xff] %v5000
        %5129 = vst [vmem:[%s272 + $0x58] sm:$0xff] %v5001
        %5130 = vst [vmem:[%s272 + $0x60] sm:$0xff] %v5002
        %5131 = vst [vmem:[%s272 + $0x68] sm:$0xff] %v5003
        %5132 = vst [vmem:[%s272 + $0x70] sm:$0xff] %v5004
        %5133 = vst [vmem:[%s272 + $0x78] sm:$0xff] %v5005
        %5134 = vst [vmem:[%s272 + $0x80] sm:$0xff] %v5006
        %5135 = vst [vmem:[%s272 + $0x88] sm:$0xff] %v5007
        %5136 = vst [vmem:[%s272 + $0x90] sm:$0xff] %v5008
        %5137 = vst [vmem:[%s272 + $0x98] sm:$0xff] %v5009
        %5138 = vst [vmem:[%s272 + $0xa0] sm:$0xff] %v5010
        %5139 = vst [vmem:[%s272 + $0xa8] sm:$0xff] %v5011
        %5140 = vst [vmem:[%s272 + $0xb0] sm:$0xff] %v5012
        %5141 = vst [vmem:[%s272 + $0xb8] sm:$0xff] %v5013
        %5142 = vst [vmem:[%s272 + $0xc0] sm:$0xff] %v5014
        %5143 = vst [vmem:[%s272 + $0xc8] sm:$0xff] %v5015
        %5144 = vst [vmem:[%s272 + $0xd0] sm:$0xff] %v5016
        %5145 = vst [vmem:[%s272 + $0xd8] sm:$0xff] %v5017
        %5146 = vst [vmem:[%s272 + $0xe0] sm:$0xff] %v5018
        %5147 = vst [vmem:[%s272 + $0xe8] sm:$0xff] %v5019
        %5148 = vst [vmem:[%s272 + $0xf0] sm:$0xff] %v5020
        %5149 = vst [vmem:[%s272 + $0xf8] sm:$0xff] %v5021
        %5150 = vst [vmem:[%s272 + $0x100] sm:$0xff] %v5022
        %5151 = vst [vmem:[%s272 + $0x108] sm:$0xff] %v5023
        %5152 = vst [vmem:[%s272 + $0x110] sm:$0xff] %v5024
        %5153 = vst [vmem:[%s272 + $0x118] sm:$0xff] %v5025
        %5154 = vst [vmem:[%s272 + $0x120] sm:$0xff] %v5026
        %5155 = vst [vmem:[%s272 + $0x128] sm:$0xff] %v5027
        %5156 = vst [vmem:[%s272 + $0x130] sm:$0xff] %v5028
        %5157 = vst [vmem:[%s272 + $0x138] sm:$0xff] %v5029
        %5158 = vst [vmem:[%s272 + $0x140] sm:$0xff] %v5030
        %5159 = vst [vmem:[%s272 + $0x148] sm:$0xff] %v5031
        %5160 = vst [vmem:[%s272 + $0x150] sm:$0xff] %v5032
        %5161 = vst [vmem:[%s272 + $0x158] sm:$0xff] %v5033
        %5162 = vst [vmem:[%s272 + $0x160] sm:$0xff] %v5034
        %5163 = vst [vmem:[%s272 + $0x168] sm:$0xff] %v5035
        %5164 = vst [vmem:[%s272 + $0x170] sm:$0xff] %v5036
        %5165 = vst [vmem:[%s272 + $0x178] sm:$0xff] %v5037
        %5166 = vst [vmem:[%s272 + $0x180] sm:$0xff] %v5038
        %5167 = vst [vmem:[%s272 + $0x188] sm:$0xff] %v5039
        %5168 = vst [vmem:[%s272 + $0x190] sm:$0xff] %v5040
        %5169 = vst [vmem:[%s272 + $0x198] sm:$0xff] %v5041
        %5170 = vst [vmem:[%s272 + $0x1a0] sm:$0xff] %v5042
        %5171 = vst [vmem:[%s272 + $0x1a8] sm:$0xff] %v5043
        %5172 = vst [vmem:[%s272 + $0x1b0] sm:$0xff] %v5044
        %5173 = vst [vmem:[%s272 + $0x1b8] sm:$0xff] %v5045
        %5174 = vst [vmem:[%s272 + $0x1c0] sm:$0xff] %v5046
        %5175 = vst [vmem:[%s272 + $0x1c8] sm:$0xff] %v5047
        %5176 = vst [vmem:[%s272 + $0x1d0] sm:$0xff] %v5048
        %5177 = vst [vmem:[%s272 + $0x1d8] sm:$0xff] %v5049
        %5178 = vst [vmem:[%s272 + $0x1e0] sm:$0xff] %v5050
        %5179 = vst [vmem:[%s272 + $0x1e8] sm:$0xff] %v5051
        %5180 = vst [vmem:[%s272 + $0x1f0] sm:$0xff] %v5052
        %5181 = vst [vmem:[%s272 + $0x1f8] sm:$0xff] %v5053
        %5182 = vst [vmem:[%s272 + $0x200] sm:$0xff] %v5054
        %5183 = vst [vmem:[%s272 + $0x208] sm:$0xff] %v5055
        %5184 = vst [vmem:[%s272 + $0x210] sm:$0xff] %v5056
        %5185 = vst [vmem:[%s272 + $0x218] sm:$0xff] %v5057
        %5186 = vst [vmem:[%s272 + $0x220] sm:$0xff] %v5058
        %5187 = vst [vmem:[%s272 + $0x228] sm:$0xff] %v5059
        %5188 = vst [vmem:[%s272 + $0x230] sm:$0xff] %v5060
        %5189 = vst [vmem:[%s272 + $0x238] sm:$0xff] %v5061
        %5190 = vst [vmem:[%s272 + $0x240] sm:$0xff] %v5062
        %5191 = vst [vmem:[%s272 + $0x248] sm:$0xff] %v5063
        %5192 = vst [vmem:[%s272 + $0x250] sm:$0xff] %v5064
        %5193 = vst [vmem:[%s272 + $0x258] sm:$0xff] %v5065
        %5194 = vst [vmem:[%s272 + $0x260] sm:$0xff] %v5066
        %5195 = vst [vmem:[%s272 + $0x268] sm:$0xff] %v5067
        %5196 = vst [vmem:[%s272 + $0x270] sm:$0xff] %v5068
        %5197 = vst [vmem:[%s272 + $0x278] sm:$0xff] %v5069
        %5198 = vst [vmem:[%s272 + $0x280] sm:$0xff] %v5070
        %5199 = vst [vmem:[%s272 + $0x288] sm:$0xff] %v5071
        %5200 = vst [vmem:[%s272 + $0x290] sm:$0xff] %v5072
        %5201 = vst [vmem:[%s272 + $0x298] sm:$0xff] %v5073
        %5202 = vst [vmem:[%s272 + $0x2a0] sm:$0xff] %v5074
        %5203 = vst [vmem:[%s272 + $0x2a8] sm:$0xff] %v5075
        %5204 = vst [vmem:[%s272 + $0x2b0] sm:$0xff] %v5076
        %5205 = vst [vmem:[%s272 + $0x2b8] sm:$0xff] %v5077
        %5206 = vst [vmem:[%s272 + $0x2c0] sm:$0xff] %v5078
        %5207 = vst [vmem:[%s272 + $0x2c8] sm:$0xff] %v5079
        %5208 = vst [vmem:[%s272 + $0x2d0] sm:$0xff] %v5080
        %5209 = vst [vmem:[%s272 + $0x2d8] sm:$0xff] %v5081
        %5210 = vst [vmem:[%s272 + $0x2e0] sm:$0xff] %v5082
        %5211 = vst [vmem:[%s272 + $0x2e8] sm:$0xff] %v5083
        %5212 = vst [vmem:[%s272 + $0x2f0] sm:$0xff] %v5084
        %5213 = vst [vmem:[%s272 + $0x2f8] sm:$0xff] %v5085
        %5214 = vst [vmem:[%s272 + $0x300] sm:$0xff] %v5086
        %5215 = vst [vmem:[%s272 + $0x308] sm:$0xff] %v5087
        %5216 = vst [vmem:[%s272 + $0x310] sm:$0xff] %v5088
        %5217 = vst [vmem:[%s272 + $0x318] sm:$0xff] %v5089
        %5218 = vst [vmem:[%s272 + $0x320] sm:$0xff] %v5090
        %5219 = vst [vmem:[%s272 + $0x328] sm:$0xff] %v5091
        %5220 = vst [vmem:[%s272 + $0x330] sm:$0xff] %v5092
        %5221 = vst [vmem:[%s272 + $0x338] sm:$0xff] %v5093
        %5222 = vst [vmem:[%s272 + $0x340] sm:$0xff] %v5094
        %5223 = vst [vmem:[%s272 + $0x348] sm:$0xff] %v5095
        %5224 = vst [vmem:[%s272 + $0x350] sm:$0xff] %v5096
        %5225 = vst [vmem:[%s272 + $0x358] sm:$0xff] %v5097
        %5226 = vst [vmem:[%s272 + $0x360] sm:$0xff] %v5098
        %5227 = vst [vmem:[%s272 + $0x368] sm:$0xff] %v5099
        %5228 = vst [vmem:[%s272 + $0x370] sm:$0xff] %v5100
        %5229 = vst [vmem:[%s272 + $0x378] sm:$0xff] %v5101
        %5230 = vst [vmem:[%s272 + $0x380] sm:$0xff] %v5102
        %5231 = vst [vmem:[%s272 + $0x388] sm:$0xff] %v5103
        %5232 = vst [vmem:[%s272 + $0x390] sm:$0xff] %v5104
        %5233 = vst [vmem:[%s272 + $0x398] sm:$0xff] %v5105
        %5234 = vst [vmem:[%s272 + $0x3a0] sm:$0xff] %v5106
        %5235 = vst [vmem:[%s272 + $0x3a8] sm:$0xff] %v5107
        %5236 = vst [vmem:[%s272 + $0x3b0] sm:$0xff] %v5108
        %5237 = vst [vmem:[%s272 + $0x3b8] sm:$0xff] %v5109
        %5238 = vst [vmem:[%s272 + $0x3c0] sm:$0xff] %v5110
        %5239 = vst [vmem:[%s272 + $0x3c8] sm:$0xff] %v5111
        %5240 = vst [vmem:[%s272 + $0x3d0] sm:$0xff] %v5112
        %5241 = vst [vmem:[%s272 + $0x3d8] sm:$0xff] %v5113
        %5242 = vst [vmem:[%s272 + $0x3e0] sm:$0xff] %v5114
        %5243 = vst [vmem:[%s272 + $0x3e8] sm:$0xff] %v5115
        %5244 = vst [vmem:[%s272 + $0x3f0] sm:$0xff] %v5116
        %5245 = vst [vmem:[%s272 + $0x3f8] sm:$0xff] %v5117
        %s5246 = sand.u32 %s141, 1
        %s5247 = scalar_lea.sflag [#allocation4], %s5246
        %s5248 = sand.u32 %s141, 1
        %s5249 = smul.addr %s5248, 1024
        %s5250 = scalar_lea.vmem [#allocation8], %s5249
        // Predicated region
        $region53: #{tpu_custom_call.1} parent=39 // pred_check
          %p5251 = pneg %p151
        $region54: #{tpu_custom_call.1} parent=39 // pred_check_branch
          %5253 = sbr.rel (%p5251) target = $region56
        $region55: #{tpu_custom_call.1} parent=39 // pred_region
          %s5254 = smul.u32 64, %s23
          %s5256 = ssub.s32 16384, 16384
          %5257 = vsyncadd %s5247, %s5256
          %s5258 = smul.addr %s5254, 2
          %s5259 = smul.addr %s5258, 128
          %s5260 = scalar_lea.hbm %s5, %s5259
          %s5261 = sshll.u32 %s5250, 4
          %s5262 = int_to_ptr.vmem [resolvable:$true] %s5261
          %5267 = dma.vmem_to_hbm [thread:$0]  %s5262, 16384, %s5260, %s5247, 256, 256, 16
        $region56: #{tpu_custom_call.1} parent=39 // pred_fallthru
          _
      $region40: #{tpu_custom_call.1} parent=5 // pred_fallthru
        _
      %p5268 = scmp.le.s32.totalorder 2, %s18
      // Predicated region
      $region57: #{tpu_custom_call.1} parent=5 // pred_check
        %p5269 = pneg %p5268
      $region58: #{tpu_custom_call.1} parent=5 // pred_check_branch
        %5271 = sbr.rel (%p5269) target = $region60
      $region59: #{tpu_custom_call.1} parent=5 // pred_region
        %s5272 = ssub.s32 %s18, 2
        // Predicated region
        $region61: #{tpu_custom_call.1} parent=59 // pred_check
          %p5273 = pneg %p157
        $region62: #{tpu_custom_call.1} parent=59 // pred_check_branch
          %5275 = sbr.rel (%p5273) target = $region64
        $region63: #{tpu_custom_call.1} parent=59 // pred_region
          %s5276 = sand.u32 %s142, 1
          %s5277 = scalar_lea.sflag [#allocation4], %s5276
          %s5278 = sand.u32 %s142, 1
          %s5279 = smul.addr %s5278, 1024
          %s5280 = scalar_lea.vmem [#allocation8], %s5279
          %5281 = dma.done %s5277, 16384
        $region64: #{tpu_custom_call.1} parent=59 // pred_fallthru
          _
      $region60: #{tpu_custom_call.1} parent=5 // pred_fallthru
        _
    $region6: #{tpu_custom_call.1} parent=1 // loop_footer
      %s22 = sadd.s32 1, %s18
    $region7: #{tpu_custom_call.1} parent=1 // loop_footer_branch
      %17 = sbr.rel target = $region3
    $region8: #{tpu_custom_call.1} parent=1 // loop_exit
      _
    %5282 = vsyncpa [#allocation3], 1
    %s5283 = scalar_lea.sflag [#allocation3], 1
    %5284 = vsyncpa %s5283, 1
    %5285 = vsyncpa [#allocation6], 1
    %5286 = vsyncpa [#allocation4], 1
    %s5287 = scalar_lea.sflag [#allocation4], 1
    %5288 = vsyncpa %s5287, 1

</llo_original>
